<compile_context>
chip_gen: v6e
topology: v6e:2x2x1
jax: 0.10.0
libtpu: 0.0.40
codegen_flags: <defaults>
</compile_context>

<pallas_src>
import jax
import jax.numpy as jnp
from jax.experimental import pallas as pl
from jax.experimental.pallas import tpu as pltpu

KH = KW = 3  # fixed 3x3 kernel


def conv3x3_tanh_kernel(x_ref, w_ref, b_ref, o_ref, xp_ref):
    # x_ref : (1, Cin, H, W)    f32 VMEM   (full unpadded image for batch n)
    # w_ref : (Cout*Cin*KH*KW,) f32 SMEM   (flattened PyTorch OIHW weight)
    # b_ref : (Cout,)           f32 SMEM
    # o_ref : (1, Cout, Hb, W)  f32 VMEM   (one horizontal stripe of output)
    # xp_ref: (Cin, H+2, WPAD)  f32 VMEM scratch (halo- and lane-padded plane)
    _, cout, Hb, W = o_ref.shape
    _, cin, H, _ = x_ref.shape

    # Build the zero-padded plane in VMEM (replaces the wrapper-side jnp.pad).
    xp_ref[...] = jnp.zeros_like(xp_ref)
    for ci in range(cin):
        xp_ref[ci, pl.ds(1, H), pl.ds(1, W)] = x_ref[0, ci, :, :]

    # Row offset of this output stripe inside the padded plane.
    row0 = pl.program_id(1) * Hb
    if Hb % 8 == 0:
        row0 = pl.multiple_of(row0, 8)

    # One accumulator per output channel, seeded with the bias.
    accs = [jnp.full((Hb, W), b_ref[co], dtype=jnp.float32)
            for co in range(cout)]

    for ci in range(cin):
        for kh in range(KH):
            for kw in range(KW):
                # Static (kh, kw) offset load from the padded plane; the patch
                # is reused for every output channel (co innermost).
                patch = xp_ref[ci, pl.ds(row0 + kh, Hb), pl.ds(kw, W)]
                for co in range(cout):
                    wv = w_ref[((co * cin + ci) * KH + kh) * KW + kw]
                    accs[co] = accs[co] + patch * wv

    # EUP tanh sits in the same basic block as the tail FMAs (LLO hides it).
    for co in range(cout):
        o_ref[0, co, :, :] = jnp.tanh(accs[co])


def _default_h_blocks(n, h):
    """1 stripe on single-TC chips (v5e/v6e); 2 on v7x when batch can't split."""
    if n >= 2:
        return 1  # batch grid axis already feeds both TensorCores
    try:
        kind = jax.devices()[0].device_kind.lower()
    except Exception:  # pragma: no cover - defensive
        kind = ""
    two_tc = ("v7" in kind) or ("7x" in kind)
    if two_tc and h % 2 == 0 and (h // 2) % 8 == 0:
        return 2
    return 1


def conv_tanh(x, weight, bias, *, h_blocks=None):
    """x: (N, Cin, H, W) f32; weight: (Cout, Cin, 3, 3); bias: (Cout,)."""
    N, cin, H, W = x.shape
    cout = weight.shape[0]

    if h_blocks is None:
        h_blocks = _default_h_blocks(N, H)
    if H % h_blocks or (h_blocks > 1 and (H // h_blocks) % 8):
        h_blocks = 1  # fall back to a single stripe
    Hb = H // h_blocks

    # Lane-padded scratch width; must cover the 2-column halo.
    WPAD = pl.cdiv(W + 2, 128) * 128
    assert WPAD >= W + 2, "scratch plane too narrow for the conv halo"

    w_flat = weight.reshape(-1).astype(jnp.float32)
    b = bias.astype(jnp.float32)

    return pl.pallas_call(
        conv3x3_tanh_kernel,
        out_shape=jax.ShapeDtypeStruct((N, cout, H, W), jnp.float32),
        grid=(N, h_blocks),
        in_specs=[
            pl.BlockSpec((1, cin, H, W), lambda n, h: (n, 0, 0, 0)),
            pl.BlockSpec(memory_space=pltpu.MemorySpace.SMEM),
            pl.BlockSpec(memory_space=pltpu.MemorySpace.SMEM),
        ],
        out_specs=pl.BlockSpec((1, cout, Hb, W), lambda n, h: (n, 0, h, 0)),
        scratch_shapes=[pltpu.VMEM((cin, H + 2, WPAD), jnp.float32)],
        compiler_params=pltpu.CompilerParams(
            dimension_semantics=("parallel", "parallel")),
        cost_estimate=pl.CostEstimate(
            flops=2 * N * cout * cin * KH * KW * H * W,
            transcendentals=N * cout * H * W,
            bytes_accessed=4 * (N * cin * H * W + N * cout * H * W
                                + cout * cin * KH * KW + cout)),
    )(x.astype(jnp.float32), w_flat, b)


if __name__ == "__main__":
    key = jax.random.PRNGKey(0)
    kx, kw_key, kb_key = jax.random.split(key, 3)

    # Shapes implied by the module: Conv2d(3 -> 3, 3x3), input (1, 3, 64, 64).
    N, C, H, W = 1, 3, 64, 64
    Cout = 3
    x = jax.random.normal(kx, (N, C, H, W), dtype=jnp.float32)

    # Deterministic PyTorch-style init: U(-1/sqrt(fan_in), 1/sqrt(fan_in)).
    fan_in = C * KH * KW
    bound = 1.0 / (fan_in ** 0.5)
    weight = jax.random.uniform(kw_key, (Cout, C, KH, KW), jnp.float32,
                                -bound, bound)
    bias = jax.random.uniform(kb_key, (Cout,), jnp.float32, -bound, bound)

    out = conv_tanh(x, weight, bias)
    out = jax.block_until_ready(out)

    # Pure-JAX reference for sanity.
    ref = jnp.tanh(
        jax.lax.conv_general_dilated(
            x, weight, window_strides=(1, 1), padding=((1, 1), (1, 1)),
            dimension_numbers=("NCHW", "OIHW", "NCHW"))
        + bias[None, :, None, None])
    assert out.shape == (N, Cout, H, W)
    assert jnp.allclose(out, ref, atol=1e-4, rtol=1e-4), "mismatch vs reference"
    print("KERNEL_OK")
</pallas_src>

<mosaic_0001>
module attributes {stable_mosaic.version = 11 : i64} {
  func.func @conv3x3_tanh_kernel(%arg0: i32, %arg1: i32, %arg2: memref<1x3x64x64xf32, #tpu.memory_space<vmem>>, %arg3: memref<81xf32, #tpu.memory_space<smem>>, %arg4: memref<3xf32, #tpu.memory_space<smem>>, %arg5: memref<1x3x64x64xf32, #tpu.memory_space<vmem>>, %arg6: memref<3x66x128xf32, #tpu.memory_space<vmem>>) attributes {dimension_semantics = [#tpu.dimension_semantics<parallel>, #tpu.dimension_semantics<parallel>], iteration_bounds = array<i64: 1, 1>, scalar_prefetch = 0 : i64, scratch_operands = 1 : i64, tpu.core_type = #tpu.core_type<tc>, window_params = [{transform_indices = @transform_0, window_bounds = array<i64: 1, 3, 64, 64>}, {transform_indices = @transform_1, window_bounds = array<i64: 81>}, {transform_indices = @transform_2, window_bounds = array<i64: 3>}, {transform_indices = @transform_3, window_bounds = array<i64: 1, 3, 64, 64>}]} {
    %cst = arith.constant 0.000000e+00 : f32
    %0 = vector.broadcast %cst : f32 to vector<3x66x128xf32>
    %c0 = arith.constant 0 : index
    %c0_0 = arith.constant 0 : index
    %c0_1 = arith.constant 0 : index
    %1 = vector.load %arg6[%c0, %c0_0, %c0_1] : memref<3x66x128xf32, #tpu.memory_space<vmem>>, vector<3x66x128xf32>
    tpu.vector_store %arg6[%c0, %c0_0, %c0_1], %0 {strides = array<i32>} : memref<3x66x128xf32, #tpu.memory_space<vmem>>, vector<3x66x128xf32>,
    %c0_2 = arith.constant 0 : index
    %c0_3 = arith.constant 0 : index
    %c0_4 = arith.constant 0 : index
    %c0_5 = arith.constant 0 : index
    %2 = vector.load %arg2[%c0_2, %c0_3, %c0_4, %c0_5] : memref<1x3x64x64xf32, #tpu.memory_space<vmem>>, vector<1x1x64x64xf32>
    %3 = vector.shape_cast %2 : vector<1x1x64x64xf32> to vector<64x64xf32>
    %c0_6 = arith.constant 0 : index
    %c1 = arith.constant 1 : index
    %c1_7 = arith.constant 1 : index
    %4 = vector.load %arg6[%c0_6, %c1, %c1_7] : memref<3x66x128xf32, #tpu.memory_space<vmem>>, vector<1x64x64xf32>
    %5 = vector.shape_cast %4 : vector<1x64x64xf32> to vector<64x64xf32>
    %6 = vector.shape_cast %3 : vector<64x64xf32> to vector<1x64x64xf32>
    tpu.vector_store %arg6[%c0_6, %c1, %c1_7], %6 {strides = array<i32>} : memref<3x66x128xf32, #tpu.memory_space<vmem>>, vector<1x64x64xf32>,
    %c0_8 = arith.constant 0 : index
    %c1_9 = arith.constant 1 : index
    %c0_10 = arith.constant 0 : index
    %c0_11 = arith.constant 0 : index
    %7 = vector.load %arg2[%c0_8, %c1_9, %c0_10, %c0_11] : memref<1x3x64x64xf32, #tpu.memory_space<vmem>>, vector<1x1x64x64xf32>
    %8 = vector.shape_cast %7 : vector<1x1x64x64xf32> to vector<64x64xf32>
    %c1_12 = arith.constant 1 : index
    %c1_13 = arith.constant 1 : index
    %c1_14 = arith.constant 1 : index
    %9 = vector.load %arg6[%c1_12, %c1_13, %c1_14] : memref<3x66x128xf32, #tpu.memory_space<vmem>>, vector<1x64x64xf32>
    %10 = vector.shape_cast %9 : vector<1x64x64xf32> to vector<64x64xf32>
    %11 = vector.shape_cast %8 : vector<64x64xf32> to vector<1x64x64xf32>
    tpu.vector_store %arg6[%c1_12, %c1_13, %c1_14], %11 {strides = array<i32>} : memref<3x66x128xf32, #tpu.memory_space<vmem>>, vector<1x64x64xf32>,
    %c0_15 = arith.constant 0 : index
    %c2 = arith.constant 2 : index
    %c0_16 = arith.constant 0 : index
    %c0_17 = arith.constant 0 : index
    %12 = vector.load %arg2[%c0_15, %c2, %c0_16, %c0_17] : memref<1x3x64x64xf32, #tpu.memory_space<vmem>>, vector<1x1x64x64xf32>
    %13 = vector.shape_cast %12 : vector<1x1x64x64xf32> to vector<64x64xf32>
    %c2_18 = arith.constant 2 : index
    %c1_19 = arith.constant 1 : index
    %c1_20 = arith.constant 1 : index
    %14 = vector.load %arg6[%c2_18, %c1_19, %c1_20] : memref<3x66x128xf32, #tpu.memory_space<vmem>>, vector<1x64x64xf32>
    %15 = vector.shape_cast %14 : vector<1x64x64xf32> to vector<64x64xf32>
    %16 = vector.shape_cast %13 : vector<64x64xf32> to vector<1x64x64xf32>
    tpu.vector_store %arg6[%c2_18, %c1_19, %c1_20], %16 {strides = array<i32>} : memref<3x66x128xf32, #tpu.memory_space<vmem>>, vector<1x64x64xf32>,
    %c64_i32 = arith.constant 64 : i32
    %17 = arith.muli %arg1, %c64_i32 : i32
    %18 = tpu.assume_multiple %17, 8 : i32
    %c0_21 = arith.constant 0 : index
    %19 = memref.load %arg4[%c0_21] : memref<3xf32, #tpu.memory_space<smem>>
    %20 = vector.broadcast %19 : f32 to vector<64x64xf32>
    %c1_22 = arith.constant 1 : index
    %21 = memref.load %arg4[%c1_22] : memref<3xf32, #tpu.memory_space<smem>>
    %22 = vector.broadcast %21 : f32 to vector<64x64xf32>
    %c2_23 = arith.constant 2 : index
    %23 = memref.load %arg4[%c2_23] : memref<3xf32, #tpu.memory_space<smem>>
    %24 = vector.broadcast %23 : f32 to vector<64x64xf32>
    %c0_i32 = arith.constant 0 : i32
    %25 = arith.addi %18, %c0_i32 : i32
    %c0_24 = arith.constant 0 : index
    %26 = arith.index_cast %25 : i32 to index
    %c0_25 = arith.constant 0 : index
    %27 = vector.load %arg6[%c0_24, %26, %c0_25] : memref<3x66x128xf32, #tpu.memory_space<vmem>>, vector<1x64x64xf32>
    %28 = vector.shape_cast %27 : vector<1x64x64xf32> to vector<64x64xf32>
    %c0_26 = arith.constant 0 : index
    %29 = memref.load %arg3[%c0_26] : memref<81xf32, #tpu.memory_space<smem>>
    %30 = vector.broadcast %29 : f32 to vector<64x64xf32>
    %31 = arith.mulf %28, %30 : vector<64x64xf32>
    %32 = arith.addf %20, %31 : vector<64x64xf32>
    %c27 = arith.constant 27 : index
    %33 = memref.load %arg3[%c27] : memref<81xf32, #tpu.memory_space<smem>>
    %34 = vector.broadcast %33 : f32 to vector<64x64xf32>
    %35 = arith.mulf %28, %34 : vector<64x64xf32>
    %36 = arith.addf %22, %35 : vector<64x64xf32>
    %c54 = arith.constant 54 : index
    %37 = memref.load %arg3[%c54] : memref<81xf32, #tpu.memory_space<smem>>
    %38 = vector.broadcast %37 : f32 to vector<64x64xf32>
    %39 = arith.mulf %28, %38 : vector<64x64xf32>
    %40 = arith.addf %24, %39 : vector<64x64xf32>
    %c0_i32_27 = arith.constant 0 : i32
    %41 = arith.addi %18, %c0_i32_27 : i32
    %c0_28 = arith.constant 0 : index
    %42 = arith.index_cast %41 : i32 to index
    %c1_29 = arith.constant 1 : index
    %43 = vector.load %arg6[%c0_28, %42, %c1_29] : memref<3x66x128xf32, #tpu.memory_space<vmem>>, vector<1x64x64xf32>
    %44 = vector.shape_cast %43 : vector<1x64x64xf32> to vector<64x64xf32>
    %c1_30 = arith.constant 1 : index
    %45 = memref.load %arg3[%c1_30] : memref<81xf32, #tpu.memory_space<smem>>
    %46 = vector.broadcast %45 : f32 to vector<64x64xf32>
    %47 = arith.mulf %44, %46 : vector<64x64xf32>
    %48 = arith.addf %32, %47 : vector<64x64xf32>
    %c28 = arith.constant 28 : index
    %49 = memref.load %arg3[%c28] : memref<81xf32, #tpu.memory_space<smem>>
    %50 = vector.broadcast %49 : f32 to vector<64x64xf32>
    %51 = arith.mulf %44, %50 : vector<64x64xf32>
    %52 = arith.addf %36, %51 : vector<64x64xf32>
    %c55 = arith.constant 55 : index
    %53 = memref.load %arg3[%c55] : memref<81xf32, #tpu.memory_space<smem>>
    %54 = vector.broadcast %53 : f32 to vector<64x64xf32>
    %55 = arith.mulf %44, %54 : vector<64x64xf32>
    %56 = arith.addf %40, %55 : vector<64x64xf32>
    %c0_i32_31 = arith.constant 0 : i32
    %57 = arith.addi %18, %c0_i32_31 : i32
    %c0_32 = arith.constant 0 : index
    %58 = arith.index_cast %57 : i32 to index
    %c2_33 = arith.constant 2 : index
    %59 = vector.load %arg6[%c0_32, %58, %c2_33] : memref<3x66x128xf32, #tpu.memory_space<vmem>>, vector<1x64x64xf32>
    %60 = vector.shape_cast %59 : vector<1x64x64xf32> to vector<64x64xf32>
    %c2_34 = arith.constant 2 : index
    %61 = memref.load %arg3[%c2_34] : memref<81xf32, #tpu.memory_space<smem>>
    %62 = vector.broadcast %61 : f32 to vector<64x64xf32>
    %63 = arith.mulf %60, %62 : vector<64x64xf32>
    %64 = arith.addf %48, %63 : vector<64x64xf32>
    %c29 = arith.constant 29 : index
    %65 = memref.load %arg3[%c29] : memref<81xf32, #tpu.memory_space<smem>>
    %66 = vector.broadcast %65 : f32 to vector<64x64xf32>
    %67 = arith.mulf %60, %66 : vector<64x64xf32>
    %68 = arith.addf %52, %67 : vector<64x64xf32>
    %c56 = arith.constant 56 : index
    %69 = memref.load %arg3[%c56] : memref<81xf32, #tpu.memory_space<smem>>
    %70 = vector.broadcast %69 : f32 to vector<64x64xf32>
    %71 = arith.mulf %60, %70 : vector<64x64xf32>
    %72 = arith.addf %56, %71 : vector<64x64xf32>
    %c1_i32 = arith.constant 1 : i32
    %73 = arith.addi %18, %c1_i32 : i32
    %c0_35 = arith.constant 0 : index
    %74 = arith.index_cast %73 : i32 to index
    %c0_36 = arith.constant 0 : index
    %75 = vector.load %arg6[%c0_35, %74, %c0_36] : memref<3x66x128xf32, #tpu.memory_space<vmem>>, vector<1x64x64xf32>
    %76 = vector.shape_cast %75 : vector<1x64x64xf32> to vector<64x64xf32>
    %c3 = arith.constant 3 : index
    %77 = memref.load %arg3[%c3] : memref<81xf32, #tpu.memory_space<smem>>
    %78 = vector.broadcast %77 : f32 to vector<64x64xf32>
    %79 = arith.mulf %76, %78 : vector<64x64xf32>
    %80 = arith.addf %64, %79 : vector<64x64xf32>
    %c30 = arith.constant 30 : index
    %81 = memref.load %arg3[%c30] : memref<81xf32, #tpu.memory_space<smem>>
    %82 = vector.broadcast %81 : f32 to vector<64x64xf32>
    %83 = arith.mulf %76, %82 : vector<64x64xf32>
    %84 = arith.addf %68, %83 : vector<64x64xf32>
    %c57 = arith.constant 57 : index
    %85 = memref.load %arg3[%c57] : memref<81xf32, #tpu.memory_space<smem>>
    %86 = vector.broadcast %85 : f32 to vector<64x64xf32>
    %87 = arith.mulf %76, %86 : vector<64x64xf32>
    %88 = arith.addf %72, %87 : vector<64x64xf32>
    %c1_i32_37 = arith.constant 1 : i32
    %89 = arith.addi %18, %c1_i32_37 : i32
    %c0_38 = arith.constant 0 : index
    %90 = arith.index_cast %89 : i32 to index
    %c1_39 = arith.constant 1 : index
    %91 = vector.load %arg6[%c0_38, %90, %c1_39] : memref<3x66x128xf32, #tpu.memory_space<vmem>>, vector<1x64x64xf32>
    %92 = vector.shape_cast %91 : vector<1x64x64xf32> to vector<64x64xf32>
    %c4 = arith.constant 4 : index
    %93 = memref.load %arg3[%c4] : memref<81xf32, #tpu.memory_space<smem>>
    %94 = vector.broadcast %93 : f32 to vector<64x64xf32>
    %95 = arith.mulf %92, %94 : vector<64x64xf32>
    %96 = arith.addf %80, %95 : vector<64x64xf32>
    %c31 = arith.constant 31 : index
    %97 = memref.load %arg3[%c31] : memref<81xf32, #tpu.memory_space<smem>>
    %98 = vector.broadcast %97 : f32 to vector<64x64xf32>
    %99 = arith.mulf %92, %98 : vector<64x64xf32>
    %100 = arith.addf %84, %99 : vector<64x64xf32>
    %c58 = arith.constant 58 : index
    %101 = memref.load %arg3[%c58] : memref<81xf32, #tpu.memory_space<smem>>
    %102 = vector.broadcast %101 : f32 to vector<64x64xf32>
    %103 = arith.mulf %92, %102 : vector<64x64xf32>
    %104 = arith.addf %88, %103 : vector<64x64xf32>
    %c1_i32_40 = arith.constant 1 : i32
    %105 = arith.addi %18, %c1_i32_40 : i32
    %c0_41 = arith.constant 0 : index
    %106 = arith.index_cast %105 : i32 to index
    %c2_42 = arith.constant 2 : index
    %107 = vector.load %arg6[%c0_41, %106, %c2_42] : memref<3x66x128xf32, #tpu.memory_space<vmem>>, vector<1x64x64xf32>
    %108 = vector.shape_cast %107 : vector<1x64x64xf32> to vector<64x64xf32>
    %c5 = arith.constant 5 : index
    %109 = memref.load %arg3[%c5] : memref<81xf32, #tpu.memory_space<smem>>
    %110 = vector.broadcast %109 : f32 to vector<64x64xf32>
    %111 = arith.mulf %108, %110 : vector<64x64xf32>
    %112 = arith.addf %96, %111 : vector<64x64xf32>
    %c32 = arith.constant 32 : index
    %113 = memref.load %arg3[%c32] : memref<81xf32, #tpu.memory_space<smem>>
    %114 = vector.broadcast %113 : f32 to vector<64x64xf32>
    %115 = arith.mulf %108, %114 : vector<64x64xf32>
    %116 = arith.addf %100, %115 : vector<64x64xf32>
    %c59 = arith.constant 59 : index
    %117 = memref.load %arg3[%c59] : memref<81xf32, #tpu.memory_space<smem>>
    %118 = vector.broadcast %117 : f32 to vector<64x64xf32>
    %119 = arith.mulf %108, %118 : vector<64x64xf32>
    %120 = arith.addf %104, %119 : vector<64x64xf32>
    %c2_i32 = arith.constant 2 : i32
    %121 = arith.addi %18, %c2_i32 : i32
    %c0_43 = arith.constant 0 : index
    %122 = arith.index_cast %121 : i32 to index
    %c0_44 = arith.constant 0 : index
    %123 = vector.load %arg6[%c0_43, %122, %c0_44] : memref<3x66x128xf32, #tpu.memory_space<vmem>>, vector<1x64x64xf32>
    %124 = vector.shape_cast %123 : vector<1x64x64xf32> to vector<64x64xf32>
    %c6 = arith.constant 6 : index
    %125 = memref.load %arg3[%c6] : memref<81xf32, #tpu.memory_space<smem>>
    %126 = vector.broadcast %125 : f32 to vector<64x64xf32>
    %127 = arith.mulf %124, %126 : vector<64x64xf32>
    %128 = arith.addf %112, %127 : vector<64x64xf32>
    %c33 = arith.constant 33 : index
    %129 = memref.load %arg3[%c33] : memref<81xf32, #tpu.memory_space<smem>>
    %130 = vector.broadcast %129 : f32 to vector<64x64xf32>
    %131 = arith.mulf %124, %130 : vector<64x64xf32>
    %132 = arith.addf %116, %131 : vector<64x64xf32>
    %c60 = arith.constant 60 : index
    %133 = memref.load %arg3[%c60] : memref<81xf32, #tpu.memory_space<smem>>
    %134 = vector.broadcast %133 : f32 to vector<64x64xf32>
    %135 = arith.mulf %124, %134 : vector<64x64xf32>
    %136 = arith.addf %120, %135 : vector<64x64xf32>
    %c2_i32_45 = arith.constant 2 : i32
    %137 = arith.addi %18, %c2_i32_45 : i32
    %c0_46 = arith.constant 0 : index
    %138 = arith.index_cast %137 : i32 to index
    %c1_47 = arith.constant 1 : index
    %139 = vector.load %arg6[%c0_46, %138, %c1_47] : memref<3x66x128xf32, #tpu.memory_space<vmem>>, vector<1x64x64xf32>
    %140 = vector.shape_cast %139 : vector<1x64x64xf32> to vector<64x64xf32>
    %c7 = arith.constant 7 : index
    %141 = memref.load %arg3[%c7] : memref<81xf32, #tpu.memory_space<smem>>
    %142 = vector.broadcast %141 : f32 to vector<64x64xf32>
    %143 = arith.mulf %140, %142 : vector<64x64xf32>
    %144 = arith.addf %128, %143 : vector<64x64xf32>
    %c34 = arith.constant 34 : index
    %145 = memref.load %arg3[%c34] : memref<81xf32, #tpu.memory_space<smem>>
    %146 = vector.broadcast %145 : f32 to vector<64x64xf32>
    %147 = arith.mulf %140, %146 : vector<64x64xf32>
    %148 = arith.addf %132, %147 : vector<64x64xf32>
    %c61 = arith.constant 61 : index
    %149 = memref.load %arg3[%c61] : memref<81xf32, #tpu.memory_space<smem>>
    %150 = vector.broadcast %149 : f32 to vector<64x64xf32>
    %151 = arith.mulf %140, %150 : vector<64x64xf32>
    %152 = arith.addf %136, %151 : vector<64x64xf32>
    %c2_i32_48 = arith.constant 2 : i32
    %153 = arith.addi %18, %c2_i32_48 : i32
    %c0_49 = arith.constant 0 : index
    %154 = arith.index_cast %153 : i32 to index
    %c2_50 = arith.constant 2 : index
    %155 = vector.load %arg6[%c0_49, %154, %c2_50] : memref<3x66x128xf32, #tpu.memory_space<vmem>>, vector<1x64x64xf32>
    %156 = vector.shape_cast %155 : vector<1x64x64xf32> to vector<64x64xf32>
    %c8 = arith.constant 8 : index
    %157 = memref.load %arg3[%c8] : memref<81xf32, #tpu.memory_space<smem>>
    %158 = vector.broadcast %157 : f32 to vector<64x64xf32>
    %159 = arith.mulf %156, %158 : vector<64x64xf32>
    %160 = arith.addf %144, %159 : vector<64x64xf32>
    %c35 = arith.constant 35 : index
    %161 = memref.load %arg3[%c35] : memref<81xf32, #tpu.memory_space<smem>>
    %162 = vector.broadcast %161 : f32 to vector<64x64xf32>
    %163 = arith.mulf %156, %162 : vector<64x64xf32>
    %164 = arith.addf %148, %163 : vector<64x64xf32>
    %c62 = arith.constant 62 : index
    %165 = memref.load %arg3[%c62] : memref<81xf32, #tpu.memory_space<smem>>
    %166 = vector.broadcast %165 : f32 to vector<64x64xf32>
    %167 = arith.mulf %156, %166 : vector<64x64xf32>
    %168 = arith.addf %152, %167 : vector<64x64xf32>
    %c0_i32_51 = arith.constant 0 : i32
    %169 = arith.addi %18, %c0_i32_51 : i32
    %c1_52 = arith.constant 1 : index
    %170 = arith.index_cast %169 : i32 to index
    %c0_53 = arith.constant 0 : index
    %171 = vector.load %arg6[%c1_52, %170, %c0_53] : memref<3x66x128xf32, #tpu.memory_space<vmem>>, vector<1x64x64xf32>
    %172 = vector.shape_cast %171 : vector<1x64x64xf32> to vector<64x64xf32>
    %c9 = arith.constant 9 : index
    %173 = memref.load %arg3[%c9] : memref<81xf32, #tpu.memory_space<smem>>
    %174 = vector.broadcast %173 : f32 to vector<64x64xf32>
    %175 = arith.mulf %172, %174 : vector<64x64xf32>
    %176 = arith.addf %160, %175 : vector<64x64xf32>
    %c36 = arith.constant 36 : index
    %177 = memref.load %arg3[%c36] : memref<81xf32, #tpu.memory_space<smem>>
    %178 = vector.broadcast %177 : f32 to vector<64x64xf32>
    %179 = arith.mulf %172, %178 : vector<64x64xf32>
    %180 = arith.addf %164, %179 : vector<64x64xf32>
    %c63 = arith.constant 63 : index
    %181 = memref.load %arg3[%c63] : memref<81xf32, #tpu.memory_space<smem>>
    %182 = vector.broadcast %181 : f32 to vector<64x64xf32>
    %183 = arith.mulf %172, %182 : vector<64x64xf32>
    %184 = arith.addf %168, %183 : vector<64x64xf32>
    %c0_i32_54 = arith.constant 0 : i32
    %185 = arith.addi %18, %c0_i32_54 : i32
    %c1_55 = arith.constant 1 : index
    %186 = arith.index_cast %185 : i32 to index
    %c1_56 = arith.constant 1 : index
    %187 = vector.load %arg6[%c1_55, %186, %c1_56] : memref<3x66x128xf32, #tpu.memory_space<vmem>>, vector<1x64x64xf32>
    %188 = vector.shape_cast %187 : vector<1x64x64xf32> to vector<64x64xf32>
    %c10 = arith.constant 10 : index
    %189 = memref.load %arg3[%c10] : memref<81xf32, #tpu.memory_space<smem>>
    %190 = vector.broadcast %189 : f32 to vector<64x64xf32>
    %191 = arith.mulf %188, %190 : vector<64x64xf32>
    %192 = arith.addf %176, %191 : vector<64x64xf32>
    %c37 = arith.constant 37 : index
    %193 = memref.load %arg3[%c37] : memref<81xf32, #tpu.memory_space<smem>>
    %194 = vector.broadcast %193 : f32 to vector<64x64xf32>
    %195 = arith.mulf %188, %194 : vector<64x64xf32>
    %196 = arith.addf %180, %195 : vector<64x64xf32>
    %c64 = arith.constant 64 : index
    %197 = memref.load %arg3[%c64] : memref<81xf32, #tpu.memory_space<smem>>
    %198 = vector.broadcast %197 : f32 to vector<64x64xf32>
    %199 = arith.mulf %188, %198 : vector<64x64xf32>
    %200 = arith.addf %184, %199 : vector<64x64xf32>
    %c0_i32_57 = arith.constant 0 : i32
    %201 = arith.addi %18, %c0_i32_57 : i32
    %c1_58 = arith.constant 1 : index
    %202 = arith.index_cast %201 : i32 to index
    %c2_59 = arith.constant 2 : index
    %203 = vector.load %arg6[%c1_58, %202, %c2_59] : memref<3x66x128xf32, #tpu.memory_space<vmem>>, vector<1x64x64xf32>
    %204 = vector.shape_cast %203 : vector<1x64x64xf32> to vector<64x64xf32>
    %c11 = arith.constant 11 : index
    %205 = memref.load %arg3[%c11] : memref<81xf32, #tpu.memory_space<smem>>
    %206 = vector.broadcast %205 : f32 to vector<64x64xf32>
    %207 = arith.mulf %204, %206 : vector<64x64xf32>
    %208 = arith.addf %192, %207 : vector<64x64xf32>
    %c38 = arith.constant 38 : index
    %209 = memref.load %arg3[%c38] : memref<81xf32, #tpu.memory_space<smem>>
    %210 = vector.broadcast %209 : f32 to vector<64x64xf32>
    %211 = arith.mulf %204, %210 : vector<64x64xf32>
    %212 = arith.addf %196, %211 : vector<64x64xf32>
    %c65 = arith.constant 65 : index
    %213 = memref.load %arg3[%c65] : memref<81xf32, #tpu.memory_space<smem>>
    %214 = vector.broadcast %213 : f32 to vector<64x64xf32>
    %215 = arith.mulf %204, %214 : vector<64x64xf32>
    %216 = arith.addf %200, %215 : vector<64x64xf32>
    %c1_i32_60 = arith.constant 1 : i32
    %217 = arith.addi %18, %c1_i32_60 : i32
    %c1_61 = arith.constant 1 : index
    %218 = arith.index_cast %217 : i32 to index
    %c0_62 = arith.constant 0 : index
    %219 = vector.load %arg6[%c1_61, %218, %c0_62] : memref<3x66x128xf32, #tpu.memory_space<vmem>>, vector<1x64x64xf32>
    %220 = vector.shape_cast %219 : vector<1x64x64xf32> to vector<64x64xf32>
    %c12 = arith.constant 12 : index
    %221 = memref.load %arg3[%c12] : memref<81xf32, #tpu.memory_space<smem>>
    %222 = vector.broadcast %221 : f32 to vector<64x64xf32>
    %223 = arith.mulf %220, %222 : vector<64x64xf32>
    %224 = arith.addf %208, %223 : vector<64x64xf32>
    %c39 = arith.constant 39 : index
    %225 = memref.load %arg3[%c39] : memref<81xf32, #tpu.memory_space<smem>>
    %226 = vector.broadcast %225 : f32 to vector<64x64xf32>
    %227 = arith.mulf %220, %226 : vector<64x64xf32>
    %228 = arith.addf %212, %227 : vector<64x64xf32>
    %c66 = arith.constant 66 : index
    %229 = memref.load %arg3[%c66] : memref<81xf32, #tpu.memory_space<smem>>
    %230 = vector.broadcast %229 : f32 to vector<64x64xf32>
    %231 = arith.mulf %220, %230 : vector<64x64xf32>
    %232 = arith.addf %216, %231 : vector<64x64xf32>
    %c1_i32_63 = arith.constant 1 : i32
    %233 = arith.addi %18, %c1_i32_63 : i32
    %c1_64 = arith.constant 1 : index
    %234 = arith.index_cast %233 : i32 to index
    %c1_65 = arith.constant 1 : index
    %235 = vector.load %arg6[%c1_64, %234, %c1_65] : memref<3x66x128xf32, #tpu.memory_space<vmem>>, vector<1x64x64xf32>
    %236 = vector.shape_cast %235 : vector<1x64x64xf32> to vector<64x64xf32>
    %c13 = arith.constant 13 : index
    %237 = memref.load %arg3[%c13] : memref<81xf32, #tpu.memory_space<smem>>
    %238 = vector.broadcast %237 : f32 to vector<64x64xf32>
    %239 = arith.mulf %236, %238 : vector<64x64xf32>
    %240 = arith.addf %224, %239 : vector<64x64xf32>
    %c40 = arith.constant 40 : index
    %241 = memref.load %arg3[%c40] : memref<81xf32, #tpu.memory_space<smem>>
    %242 = vector.broadcast %241 : f32 to vector<64x64xf32>
    %243 = arith.mulf %236, %242 : vector<64x64xf32>
    %244 = arith.addf %228, %243 : vector<64x64xf32>
    %c67 = arith.constant 67 : index
    %245 = memref.load %arg3[%c67] : memref<81xf32, #tpu.memory_space<smem>>
    %246 = vector.broadcast %245 : f32 to vector<64x64xf32>
    %247 = arith.mulf %236, %246 : vector<64x64xf32>
    %248 = arith.addf %232, %247 : vector<64x64xf32>
    %c1_i32_66 = arith.constant 1 : i32
    %249 = arith.addi %18, %c1_i32_66 : i32
    %c1_67 = arith.constant 1 : index
    %250 = arith.index_cast %249 : i32 to index
    %c2_68 = arith.constant 2 : index
    %251 = vector.load %arg6[%c1_67, %250, %c2_68] : memref<3x66x128xf32, #tpu.memory_space<vmem>>, vector<1x64x64xf32>
    %252 = vector.shape_cast %251 : vector<1x64x64xf32> to vector<64x64xf32>
    %c14 = arith.constant 14 : index
    %253 = memref.load %arg3[%c14] : memref<81xf32, #tpu.memory_space<smem>>
    %254 = vector.broadcast %253 : f32 to vector<64x64xf32>
    %255 = arith.mulf %252, %254 : vector<64x64xf32>
    %256 = arith.addf %240, %255 : vector<64x64xf32>
    %c41 = arith.constant 41 : index
    %257 = memref.load %arg3[%c41] : memref<81xf32, #tpu.memory_space<smem>>
    %258 = vector.broadcast %257 : f32 to vector<64x64xf32>
    %259 = arith.mulf %252, %258 : vector<64x64xf32>
    %260 = arith.addf %244, %259 : vector<64x64xf32>
    %c68 = arith.constant 68 : index
    %261 = memref.load %arg3[%c68] : memref<81xf32, #tpu.memory_space<smem>>
    %262 = vector.broadcast %261 : f32 to vector<64x64xf32>
    %263 = arith.mulf %252, %262 : vector<64x64xf32>
    %264 = arith.addf %248, %263 : vector<64x64xf32>
    %c2_i32_69 = arith.constant 2 : i32
    %265 = arith.addi %18, %c2_i32_69 : i32
    %c1_70 = arith.constant 1 : index
    %266 = arith.index_cast %265 : i32 to index
    %c0_71 = arith.constant 0 : index
    %267 = vector.load %arg6[%c1_70, %266, %c0_71] : memref<3x66x128xf32, #tpu.memory_space<vmem>>, vector<1x64x64xf32>
    %268 = vector.shape_cast %267 : vector<1x64x64xf32> to vector<64x64xf32>
    %c15 = arith.constant 15 : index
    %269 = memref.load %arg3[%c15] : memref<81xf32, #tpu.memory_space<smem>>
    %270 = vector.broadcast %269 : f32 to vector<64x64xf32>
    %271 = arith.mulf %268, %270 : vector<64x64xf32>
    %272 = arith.addf %256, %271 : vector<64x64xf32>
    %c42 = arith.constant 42 : index
    %273 = memref.load %arg3[%c42] : memref<81xf32, #tpu.memory_space<smem>>
    %274 = vector.broadcast %273 : f32 to vector<64x64xf32>
    %275 = arith.mulf %268, %274 : vector<64x64xf32>
    %276 = arith.addf %260, %275 : vector<64x64xf32>
    %c69 = arith.constant 69 : index
    %277 = memref.load %arg3[%c69] : memref<81xf32, #tpu.memory_space<smem>>
    %278 = vector.broadcast %277 : f32 to vector<64x64xf32>
    %279 = arith.mulf %268, %278 : vector<64x64xf32>
    %280 = arith.addf %264, %279 : vector<64x64xf32>
    %c2_i32_72 = arith.constant 2 : i32
    %281 = arith.addi %18, %c2_i32_72 : i32
    %c1_73 = arith.constant 1 : index
    %282 = arith.index_cast %281 : i32 to index
    %c1_74 = arith.constant 1 : index
    %283 = vector.load %arg6[%c1_73, %282, %c1_74] : memref<3x66x128xf32, #tpu.memory_space<vmem>>, vector<1x64x64xf32>
    %284 = vector.shape_cast %283 : vector<1x64x64xf32> to vector<64x64xf32>
    %c16 = arith.constant 16 : index
    %285 = memref.load %arg3[%c16] : memref<81xf32, #tpu.memory_space<smem>>
    %286 = vector.broadcast %285 : f32 to vector<64x64xf32>
    %287 = arith.mulf %284, %286 : vector<64x64xf32>
    %288 = arith.addf %272, %287 : vector<64x64xf32>
    %c43 = arith.constant 43 : index
    %289 = memref.load %arg3[%c43] : memref<81xf32, #tpu.memory_space<smem>>
    %290 = vector.broadcast %289 : f32 to vector<64x64xf32>
    %291 = arith.mulf %284, %290 : vector<64x64xf32>
    %292 = arith.addf %276, %291 : vector<64x64xf32>
    %c70 = arith.constant 70 : index
    %293 = memref.load %arg3[%c70] : memref<81xf32, #tpu.memory_space<smem>>
    %294 = vector.broadcast %293 : f32 to vector<64x64xf32>
    %295 = arith.mulf %284, %294 : vector<64x64xf32>
    %296 = arith.addf %280, %295 : vector<64x64xf32>
    %c2_i32_75 = arith.constant 2 : i32
    %297 = arith.addi %18, %c2_i32_75 : i32
    %c1_76 = arith.constant 1 : index
    %298 = arith.index_cast %297 : i32 to index
    %c2_77 = arith.constant 2 : index
    %299 = vector.load %arg6[%c1_76, %298, %c2_77] : memref<3x66x128xf32, #tpu.memory_space<vmem>>, vector<1x64x64xf32>
    %300 = vector.shape_cast %299 : vector<1x64x64xf32> to vector<64x64xf32>
    %c17 = arith.constant 17 : index
    %301 = memref.load %arg3[%c17] : memref<81xf32, #tpu.memory_space<smem>>
    %302 = vector.broadcast %301 : f32 to vector<64x64xf32>
    %303 = arith.mulf %300, %302 : vector<64x64xf32>
    %304 = arith.addf %288, %303 : vector<64x64xf32>
    %c44 = arith.constant 44 : index
    %305 = memref.load %arg3[%c44] : memref<81xf32, #tpu.memory_space<smem>>
    %306 = vector.broadcast %305 : f32 to vector<64x64xf32>
    %307 = arith.mulf %300, %306 : vector<64x64xf32>
    %308 = arith.addf %292, %307 : vector<64x64xf32>
    %c71 = arith.constant 71 : index
    %309 = memref.load %arg3[%c71] : memref<81xf32, #tpu.memory_space<smem>>
    %310 = vector.broadcast %309 : f32 to vector<64x64xf32>
    %311 = arith.mulf %300, %310 : vector<64x64xf32>
    %312 = arith.addf %296, %311 : vector<64x64xf32>
    %c0_i32_78 = arith.constant 0 : i32
    %313 = arith.addi %18, %c0_i32_78 : i32
    %c2_79 = arith.constant 2 : index
    %314 = arith.index_cast %313 : i32 to index
    %c0_80 = arith.constant 0 : index
    %315 = vector.load %arg6[%c2_79, %314, %c0_80] : memref<3x66x128xf32, #tpu.memory_space<vmem>>, vector<1x64x64xf32>
    %316 = vector.shape_cast %315 : vector<1x64x64xf32> to vector<64x64xf32>
    %c18 = arith.constant 18 : index
    %317 = memref.load %arg3[%c18] : memref<81xf32, #tpu.memory_space<smem>>
    %318 = vector.broadcast %317 : f32 to vector<64x64xf32>
    %319 = arith.mulf %316, %318 : vector<64x64xf32>
    %320 = arith.addf %304, %319 : vector<64x64xf32>
    %c45 = arith.constant 45 : index
    %321 = memref.load %arg3[%c45] : memref<81xf32, #tpu.memory_space<smem>>
    %322 = vector.broadcast %321 : f32 to vector<64x64xf32>
    %323 = arith.mulf %316, %322 : vector<64x64xf32>
    %324 = arith.addf %308, %323 : vector<64x64xf32>
    %c72 = arith.constant 72 : index
    %325 = memref.load %arg3[%c72] : memref<81xf32, #tpu.memory_space<smem>>
    %326 = vector.broadcast %325 : f32 to vector<64x64xf32>
    %327 = arith.mulf %316, %326 : vector<64x64xf32>
    %328 = arith.addf %312, %327 : vector<64x64xf32>
    %c0_i32_81 = arith.constant 0 : i32
    %329 = arith.addi %18, %c0_i32_81 : i32
    %c2_82 = arith.constant 2 : index
    %330 = arith.index_cast %329 : i32 to index
    %c1_83 = arith.constant 1 : index
    %331 = vector.load %arg6[%c2_82, %330, %c1_83] : memref<3x66x128xf32, #tpu.memory_space<vmem>>, vector<1x64x64xf32>
    %332 = vector.shape_cast %331 : vector<1x64x64xf32> to vector<64x64xf32>
    %c19 = arith.constant 19 : index
    %333 = memref.load %arg3[%c19] : memref<81xf32, #tpu.memory_space<smem>>
    %334 = vector.broadcast %333 : f32 to vector<64x64xf32>
    %335 = arith.mulf %332, %334 : vector<64x64xf32>
    %336 = arith.addf %320, %335 : vector<64x64xf32>
    %c46 = arith.constant 46 : index
    %337 = memref.load %arg3[%c46] : memref<81xf32, #tpu.memory_space<smem>>
    %338 = vector.broadcast %337 : f32 to vector<64x64xf32>
    %339 = arith.mulf %332, %338 : vector<64x64xf32>
    %340 = arith.addf %324, %339 : vector<64x64xf32>
    %c73 = arith.constant 73 : index
    %341 = memref.load %arg3[%c73] : memref<81xf32, #tpu.memory_space<smem>>
    %342 = vector.broadcast %341 : f32 to vector<64x64xf32>
    %343 = arith.mulf %332, %342 : vector<64x64xf32>
    %344 = arith.addf %328, %343 : vector<64x64xf32>
    %c0_i32_84 = arith.constant 0 : i32
    %345 = arith.addi %18, %c0_i32_84 : i32
    %c2_85 = arith.constant 2 : index
    %346 = arith.index_cast %345 : i32 to index
    %c2_86 = arith.constant 2 : index
    %347 = vector.load %arg6[%c2_85, %346, %c2_86] : memref<3x66x128xf32, #tpu.memory_space<vmem>>, vector<1x64x64xf32>
    %348 = vector.shape_cast %347 : vector<1x64x64xf32> to vector<64x64xf32>
    %c20 = arith.constant 20 : index
    %349 = memref.load %arg3[%c20] : memref<81xf32, #tpu.memory_space<smem>>
    %350 = vector.broadcast %349 : f32 to vector<64x64xf32>
    %351 = arith.mulf %348, %350 : vector<64x64xf32>
    %352 = arith.addf %336, %351 : vector<64x64xf32>
    %c47 = arith.constant 47 : index
    %353 = memref.load %arg3[%c47] : memref<81xf32, #tpu.memory_space<smem>>
    %354 = vector.broadcast %353 : f32 to vector<64x64xf32>
    %355 = arith.mulf %348, %354 : vector<64x64xf32>
    %356 = arith.addf %340, %355 : vector<64x64xf32>
    %c74 = arith.constant 74 : index
    %357 = memref.load %arg3[%c74] : memref<81xf32, #tpu.memory_space<smem>>
    %358 = vector.broadcast %357 : f32 to vector<64x64xf32>
    %359 = arith.mulf %348, %358 : vector<64x64xf32>
    %360 = arith.addf %344, %359 : vector<64x64xf32>
    %c1_i32_87 = arith.constant 1 : i32
    %361 = arith.addi %18, %c1_i32_87 : i32
    %c2_88 = arith.constant 2 : index
    %362 = arith.index_cast %361 : i32 to index
    %c0_89 = arith.constant 0 : index
    %363 = vector.load %arg6[%c2_88, %362, %c0_89] : memref<3x66x128xf32, #tpu.memory_space<vmem>>, vector<1x64x64xf32>
    %364 = vector.shape_cast %363 : vector<1x64x64xf32> to vector<64x64xf32>
    %c21 = arith.constant 21 : index
    %365 = memref.load %arg3[%c21] : memref<81xf32, #tpu.memory_space<smem>>
    %366 = vector.broadcast %365 : f32 to vector<64x64xf32>
    %367 = arith.mulf %364, %366 : vector<64x64xf32>
    %368 = arith.addf %352, %367 : vector<64x64xf32>
    %c48 = arith.constant 48 : index
    %369 = memref.load %arg3[%c48] : memref<81xf32, #tpu.memory_space<smem>>
    %370 = vector.broadcast %369 : f32 to vector<64x64xf32>
    %371 = arith.mulf %364, %370 : vector<64x64xf32>
    %372 = arith.addf %356, %371 : vector<64x64xf32>
    %c75 = arith.constant 75 : index
    %373 = memref.load %arg3[%c75] : memref<81xf32, #tpu.memory_space<smem>>
    %374 = vector.broadcast %373 : f32 to vector<64x64xf32>
    %375 = arith.mulf %364, %374 : vector<64x64xf32>
    %376 = arith.addf %360, %375 : vector<64x64xf32>
    %c1_i32_90 = arith.constant 1 : i32
    %377 = arith.addi %18, %c1_i32_90 : i32
    %c2_91 = arith.constant 2 : index
    %378 = arith.index_cast %377 : i32 to index
    %c1_92 = arith.constant 1 : index
    %379 = vector.load %arg6[%c2_91, %378, %c1_92] : memref<3x66x128xf32, #tpu.memory_space<vmem>>, vector<1x64x64xf32>
    %380 = vector.shape_cast %379 : vector<1x64x64xf32> to vector<64x64xf32>
    %c22 = arith.constant 22 : index
    %381 = memref.load %arg3[%c22] : memref<81xf32, #tpu.memory_space<smem>>
    %382 = vector.broadcast %381 : f32 to vector<64x64xf32>
    %383 = arith.mulf %380, %382 : vector<64x64xf32>
    %384 = arith.addf %368, %383 : vector<64x64xf32>
    %c49 = arith.constant 49 : index
    %385 = memref.load %arg3[%c49] : memref<81xf32, #tpu.memory_space<smem>>
    %386 = vector.broadcast %385 : f32 to vector<64x64xf32>
    %387 = arith.mulf %380, %386 : vector<64x64xf32>
    %388 = arith.addf %372, %387 : vector<64x64xf32>
    %c76 = arith.constant 76 : index
    %389 = memref.load %arg3[%c76] : memref<81xf32, #tpu.memory_space<smem>>
    %390 = vector.broadcast %389 : f32 to vector<64x64xf32>
    %391 = arith.mulf %380, %390 : vector<64x64xf32>
    %392 = arith.addf %376, %391 : vector<64x64xf32>
    %c1_i32_93 = arith.constant 1 : i32
    %393 = arith.addi %18, %c1_i32_93 : i32
    %c2_94 = arith.constant 2 : index
    %394 = arith.index_cast %393 : i32 to index
    %c2_95 = arith.constant 2 : index
    %395 = vector.load %arg6[%c2_94, %394, %c2_95] : memref<3x66x128xf32, #tpu.memory_space<vmem>>, vector<1x64x64xf32>
    %396 = vector.shape_cast %395 : vector<1x64x64xf32> to vector<64x64xf32>
    %c23 = arith.constant 23 : index
    %397 = memref.load %arg3[%c23] : memref<81xf32, #tpu.memory_space<smem>>
    %398 = vector.broadcast %397 : f32 to vector<64x64xf32>
    %399 = arith.mulf %396, %398 : vector<64x64xf32>
    %400 = arith.addf %384, %399 : vector<64x64xf32>
    %c50 = arith.constant 50 : index
    %401 = memref.load %arg3[%c50] : memref<81xf32, #tpu.memory_space<smem>>
    %402 = vector.broadcast %401 : f32 to vector<64x64xf32>
    %403 = arith.mulf %396, %402 : vector<64x64xf32>
    %404 = arith.addf %388, %403 : vector<64x64xf32>
    %c77 = arith.constant 77 : index
    %405 = memref.load %arg3[%c77] : memref<81xf32, #tpu.memory_space<smem>>
    %406 = vector.broadcast %405 : f32 to vector<64x64xf32>
    %407 = arith.mulf %396, %406 : vector<64x64xf32>
    %408 = arith.addf %392, %407 : vector<64x64xf32>
    %c2_i32_96 = arith.constant 2 : i32
    %409 = arith.addi %18, %c2_i32_96 : i32
    %c2_97 = arith.constant 2 : index
    %410 = arith.index_cast %409 : i32 to index
    %c0_98 = arith.constant 0 : index
    %411 = vector.load %arg6[%c2_97, %410, %c0_98] : memref<3x66x128xf32, #tpu.memory_space<vmem>>, vector<1x64x64xf32>
    %412 = vector.shape_cast %411 : vector<1x64x64xf32> to vector<64x64xf32>
    %c24 = arith.constant 24 : index
    %413 = memref.load %arg3[%c24] : memref<81xf32, #tpu.memory_space<smem>>
    %414 = vector.broadcast %413 : f32 to vector<64x64xf32>
    %415 = arith.mulf %412, %414 : vector<64x64xf32>
    %416 = arith.addf %400, %415 : vector<64x64xf32>
    %c51 = arith.constant 51 : index
    %417 = memref.load %arg3[%c51] : memref<81xf32, #tpu.memory_space<smem>>
    %418 = vector.broadcast %417 : f32 to vector<64x64xf32>
    %419 = arith.mulf %412, %418 : vector<64x64xf32>
    %420 = arith.addf %404, %419 : vector<64x64xf32>
    %c78 = arith.constant 78 : index
    %421 = memref.load %arg3[%c78] : memref<81xf32, #tpu.memory_space<smem>>
    %422 = vector.broadcast %421 : f32 to vector<64x64xf32>
    %423 = arith.mulf %412, %422 : vector<64x64xf32>
    %424 = arith.addf %408, %423 : vector<64x64xf32>
    %c2_i32_99 = arith.constant 2 : i32
    %425 = arith.addi %18, %c2_i32_99 : i32
    %c2_100 = arith.constant 2 : index
    %426 = arith.index_cast %425 : i32 to index
    %c1_101 = arith.constant 1 : index
    %427 = vector.load %arg6[%c2_100, %426, %c1_101] : memref<3x66x128xf32, #tpu.memory_space<vmem>>, vector<1x64x64xf32>
    %428 = vector.shape_cast %427 : vector<1x64x64xf32> to vector<64x64xf32>
    %c25 = arith.constant 25 : index
    %429 = memref.load %arg3[%c25] : memref<81xf32, #tpu.memory_space<smem>>
    %430 = vector.broadcast %429 : f32 to vector<64x64xf32>
    %431 = arith.mulf %428, %430 : vector<64x64xf32>
    %432 = arith.addf %416, %431 : vector<64x64xf32>
    %c52 = arith.constant 52 : index
    %433 = memref.load %arg3[%c52] : memref<81xf32, #tpu.memory_space<smem>>
    %434 = vector.broadcast %433 : f32 to vector<64x64xf32>
    %435 = arith.mulf %428, %434 : vector<64x64xf32>
    %436 = arith.addf %420, %435 : vector<64x64xf32>
    %c79 = arith.constant 79 : index
    %437 = memref.load %arg3[%c79] : memref<81xf32, #tpu.memory_space<smem>>
    %438 = vector.broadcast %437 : f32 to vector<64x64xf32>
    %439 = arith.mulf %428, %438 : vector<64x64xf32>
    %440 = arith.addf %424, %439 : vector<64x64xf32>
    %c2_i32_102 = arith.constant 2 : i32
    %441 = arith.addi %18, %c2_i32_102 : i32
    %c2_103 = arith.constant 2 : index
    %442 = arith.index_cast %441 : i32 to index
    %c2_104 = arith.constant 2 : index
    %443 = vector.load %arg6[%c2_103, %442, %c2_104] : memref<3x66x128xf32, #tpu.memory_space<vmem>>, vector<1x64x64xf32>
    %444 = vector.shape_cast %443 : vector<1x64x64xf32> to vector<64x64xf32>
    %c26 = arith.constant 26 : index
    %445 = memref.load %arg3[%c26] : memref<81xf32, #tpu.memory_space<smem>>
    %446 = vector.broadcast %445 : f32 to vector<64x64xf32>
    %447 = arith.mulf %444, %446 : vector<64x64xf32>
    %448 = arith.addf %432, %447 : vector<64x64xf32>
    %c53 = arith.constant 53 : index
    %449 = memref.load %arg3[%c53] : memref<81xf32, #tpu.memory_space<smem>>
    %450 = vector.broadcast %449 : f32 to vector<64x64xf32>
    %451 = arith.mulf %444, %450 : vector<64x64xf32>
    %452 = arith.addf %436, %451 : vector<64x64xf32>
    %c80 = arith.constant 80 : index
    %453 = memref.load %arg3[%c80] : memref<81xf32, #tpu.memory_space<smem>>
    %454 = vector.broadcast %453 : f32 to vector<64x64xf32>
    %455 = arith.mulf %444, %454 : vector<64x64xf32>
    %456 = arith.addf %440, %455 : vector<64x64xf32>
    %457 = math.tanh %448 : vector<64x64xf32>
    %c0_105 = arith.constant 0 : index
    %c0_106 = arith.constant 0 : index
    %c0_107 = arith.constant 0 : index
    %c0_108 = arith.constant 0 : index
    %458 = vector.load %arg5[%c0_105, %c0_106, %c0_107, %c0_108] : memref<1x3x64x64xf32, #tpu.memory_space<vmem>>, vector<1x1x64x64xf32>
    %459 = vector.shape_cast %458 : vector<1x1x64x64xf32> to vector<64x64xf32>
    %460 = vector.shape_cast %457 : vector<64x64xf32> to vector<1x1x64x64xf32>
    tpu.vector_store %arg5[%c0_105, %c0_106, %c0_107, %c0_108], %460 {strides = array<i32>} : memref<1x3x64x64xf32, #tpu.memory_space<vmem>>, vector<1x1x64x64xf32>,
    %461 = math.tanh %452 : vector<64x64xf32>
    %c0_109 = arith.constant 0 : index
    %c1_110 = arith.constant 1 : index
    %c0_111 = arith.constant 0 : index
    %c0_112 = arith.constant 0 : index
    %462 = vector.load %arg5[%c0_109, %c1_110, %c0_111, %c0_112] : memref<1x3x64x64xf32, #tpu.memory_space<vmem>>, vector<1x1x64x64xf32>
    %463 = vector.shape_cast %462 : vector<1x1x64x64xf32> to vector<64x64xf32>
    %464 = vector.shape_cast %461 : vector<64x64xf32> to vector<1x1x64x64xf32>
    tpu.vector_store %arg5[%c0_109, %c1_110, %c0_111, %c0_112], %464 {strides = array<i32>} : memref<1x3x64x64xf32, #tpu.memory_space<vmem>>, vector<1x1x64x64xf32>,
    %465 = math.tanh %456 : vector<64x64xf32>
    %c0_113 = arith.constant 0 : index
    %c2_114 = arith.constant 2 : index
    %c0_115 = arith.constant 0 : index
    %c0_116 = arith.constant 0 : index
    %466 = vector.load %arg5[%c0_113, %c2_114, %c0_115, %c0_116] : memref<1x3x64x64xf32, #tpu.memory_space<vmem>>, vector<1x1x64x64xf32>
    %467 = vector.shape_cast %466 : vector<1x1x64x64xf32> to vector<64x64xf32>
    %468 = vector.shape_cast %465 : vector<64x64xf32> to vector<1x1x64x64xf32>
    tpu.vector_store %arg5[%c0_113, %c2_114, %c0_115, %c0_116], %468 {strides = array<i32>} : memref<1x3x64x64xf32, #tpu.memory_space<vmem>>, vector<1x1x64x64xf32>,
    return
  }
  func.func @transform_0(%arg0: i32, %arg1: i32) -> (i32, i32, i32, i32) {
    %c0_i32 = arith.constant 0 : i32
    %c0_i32_0 = arith.constant 0 : i32
    %c0_i32_1 = arith.constant 0 : i32
    %c0_i32_2 = arith.constant 0 : i32
    return %arg0, %c0_i32, %c0_i32_0, %c0_i32_1 : i32, i32, i32, i32
  }
  func.func @transform_1(%arg0: i32, %arg1: i32) -> i32 {
    %c0_i32 = arith.constant 0 : i32
    %c0_i32_0 = arith.constant 0 : i32
    return %c0_i32 : i32
  }
  func.func @transform_2(%arg0: i32, %arg1: i32) -> i32 {
    %c0_i32 = arith.constant 0 : i32
    %c0_i32_0 = arith.constant 0 : i32
    return %c0_i32 : i32
  }
  func.func @transform_3(%arg0: i32, %arg1: i32) -> (i32, i32, i32, i32) {
    %c0_i32 = arith.constant 0 : i32
    %c0_i32_0 = arith.constant 0 : i32
    %c0_i32_1 = arith.constant 0 : i32
    return %arg0, %c0_i32, %arg1, %c0_i32_0 : i32, i32, i32, i32
  }
}

</mosaic_0001>

<llo_original>
// kernel: tpu_custom_call.1
$region0: #{tpu_custom_call.1}
  #allocation0 [shape = 'u32[]', space=smem, size = 0x4, offset = 0x4, fixed_abs, tag = 'smem constant byte address 0x4 - core index']
  #allocation1 [shape = 'u32[144,128]{1,0:T(1,128)}', space=vmem, size = 0x12000, scoped, tag = 'internal scratch']
  #allocation2 [shape = 'f32[3,66,128]{2,1,0:T(8,128)}', space=vmem, size = 0x1b000, scoped, tag = 'scratch operand']
  %s0 = inlined_call_operand.hbm [shape: f32[1,3,64,64], index: 0, kind: input, shape index: {}]
  %s1 = inlined_call_operand.vmem [shape: f32[81], index: 1, kind: input, shape index: {}]
  %s2 = inlined_call_operand.vmem [shape: f32[3], index: 2, kind: input, shape index: {}]
  %s3 = inlined_call_operand.hbm [shape: f32[1,3,64,64], index: 3, kind: output, shape index: {}]
  %s4 = sld [smem:[#allocation0]]
  $region34: #{tpu_custom_call.1} parent=0
    _
  %s6 = ssub.s32 1, %s4
  %s7 = scalar_select 0, %s6, %s4
  $region1: #{tpu_custom_call.1} parent=0
    #allocation3 [shape = 'u8[98304]{0}', space=vmem, size = 0x18000, scoped, tag = 'input window, operand 0, single buffered']
    #allocation4 [shape = 's32[1]{0}', space=sflag, size = 0x4, scoped, tag = 'scoped memory for tpu_custom_call.1']
    #allocation5 [shape = 's32[1]{0}', space=sflag, size = 0x4, scoped, tag = 'scoped memory for tpu_custom_call.1']
    #allocation6 [shape = 's32[1]{0}', space=sflag, size = 0x4, scoped, tag = 'scoped memory for tpu_custom_call.1']
    #allocation7 [shape = 'u8[512]{0}', space=smem, size = 0x200, scoped, tag = 'input window, operand 1, single buffered']
    #allocation8 [shape = 'u8[512]{0}', space=smem, size = 0x200, scoped, tag = 'input window, operand 2, single buffered']
    #allocation9 [shape = 's32[1]{0}', space=sflag, size = 0x4, scoped, tag = 'scoped memory for tpu_custom_call.1']
    #allocation10 [shape = 'u8[98304]{0}', space=vmem, size = 0x18000, scoped, tag = 'output window, operand 0, single buffered']
    %8 = vsyncpa [#allocation4], 0
    %9 = vsyncpa [#allocation6], 0
    %10 = vsyncpa [#allocation9], 0
    %11 = vsyncpa [#allocation5], 0
    // Predicated region
    $region2: #{tpu_custom_call.1} parent=1 // pred_check
      _
    $region3: #{tpu_custom_call.1} parent=1 // pred_check_branch
      %13 = sbr.rel (0) target = $region5
    $region4: #{tpu_custom_call.1} parent=1 // pred_region
      %s15 = ssub.s32 3072, 3072
      %16 = vsyncadd [#allocation4], %s15
      %s17 = sshll.u32 [#allocation3], 4
      %s18 = int_to_ptr.vmem [resolvable:$true] %s17
      %23 = dma.hbm_to_vmem [thread:$0]  %s0, 3072, %s18, [#allocation4], 128, 128, 8
    $region5: #{tpu_custom_call.1} parent=1 // pred_fallthru
      _
    // Predicated region
    $region6: #{tpu_custom_call.1} parent=1 // pred_check
      _
    $region7: #{tpu_custom_call.1} parent=1 // pred_check_branch
      %25 = sbr.rel (0) target = $region9
    $region8: #{tpu_custom_call.1} parent=1 // pred_region
      %s27 = ssub.s32 16, 16
      %28 = vsyncadd [#allocation6], %s27
      %s30 = sshll.u32 %s1, 4
      %s31 = int_to_ptr.vmem [resolvable:$true] %s30
      %33 = dma.vmem_to_smem %s31, 16, [#allocation7], [#allocation6]
    $region9: #{tpu_custom_call.1} parent=1 // pred_fallthru
      _
    // Predicated region
    $region10: #{tpu_custom_call.1} parent=1 // pred_check
      _
    $region11: #{tpu_custom_call.1} parent=1 // pred_check_branch
      %35 = sbr.rel (0) target = $region13
    $region12: #{tpu_custom_call.1} parent=1 // pred_region
      %s37 = ssub.s32 16, 16
      %38 = vsyncadd [#allocation9], %s37
      %s40 = sshll.u32 %s2, 4
      %s41 = int_to_ptr.vmem [resolvable:$true] %s40
      %43 = dma.vmem_to_smem %s41, 16, [#allocation8], [#allocation9]
    $region13: #{tpu_custom_call.1} parent=1 // pred_fallthru
      _
    // Predicated region
    $region14: #{tpu_custom_call.1} parent=1 // pred_check
      _
    $region15: #{tpu_custom_call.1} parent=1 // pred_check_branch
      %45 = sbr.rel (0) target = $region17
    $region16: #{tpu_custom_call.1} parent=1 // pred_region
      %46 = dma.done [#allocation4], 3072
    $region17: #{tpu_custom_call.1} parent=1 // pred_fallthru
      _
    // Predicated region
    $region18: #{tpu_custom_call.1} parent=1 // pred_check
      _
    $region19: #{tpu_custom_call.1} parent=1 // pred_check_branch
      %48 = sbr.rel (0) target = $region21
    $region20: #{tpu_custom_call.1} parent=1 // pred_region
      %49 = dma.done [#allocation6], 16
    $region21: #{tpu_custom_call.1} parent=1 // pred_fallthru
      _
    // Predicated region
    $region22: #{tpu_custom_call.1} parent=1 // pred_check
      _
    $region23: #{tpu_custom_call.1} parent=1 // pred_check_branch
      %51 = sbr.rel (0) target = $region25
    $region24: #{tpu_custom_call.1} parent=1 // pred_region
      %52 = dma.done [#allocation9], 16
    $region25: #{tpu_custom_call.1} parent=1 // pred_fallthru
      _
    %53 = sfence
    %54 = vst [vmem:[#allocation2] sm:$0xff] 0.0
    %55 = vst [vmem:[#allocation2 + $0x8] sm:$0xff] 0.0
    %56 = vst [vmem:[#allocation2 + $0x10] sm:$0xff] 0.0
    %57 = vst [vmem:[#allocation2 + $0x18] sm:$0xff] 0.0
    %58 = vst [vmem:[#allocation2 + $0x20] sm:$0xff] 0.0
    %59 = vst [vmem:[#allocation2 + $0x28] sm:$0xff] 0.0
    %60 = vst [vmem:[#allocation2 + $0x30] sm:$0xff] 0.0
    %61 = vst [vmem:[#allocation2 + $0x38] sm:$0xff] 0.0
    %62 = vst [vmem:[#allocation2 + $0x40] sm:$0x3] 0.0
    %63 = vst [vmem:[#allocation2 + $0x48] sm:$0xff] 0.0
    %64 = vst [vmem:[#allocation2 + $0x50] sm:$0xff] 0.0
    %65 = vst [vmem:[#allocation2 + $0x58] sm:$0xff] 0.0
    %66 = vst [vmem:[#allocation2 + $0x60] sm:$0xff] 0.0
    %67 = vst [vmem:[#allocation2 + $0x68] sm:$0xff] 0.0
    %68 = vst [vmem:[#allocation2 + $0x70] sm:$0xff] 0.0
    %69 = vst [vmem:[#allocation2 + $0x78] sm:$0xff] 0.0
    %70 = vst [vmem:[#allocation2 + $0x80] sm:$0xff] 0.0
    %71 = vst [vmem:[#allocation2 + $0x88] sm:$0x3] 0.0
    %72 = vst [vmem:[#allocation2 + $0x90] sm:$0xff] 0.0
    %73 = vst [vmem:[#allocation2 + $0x98] sm:$0xff] 0.0
    %74 = vst [vmem:[#allocation2 + $0xa0] sm:$0xff] 0.0
    %75 = vst [vmem:[#allocation2 + $0xa8] sm:$0xff] 0.0
    %76 = vst [vmem:[#allocation2 + $0xb0] sm:$0xff] 0.0
    %77 = vst [vmem:[#allocation2 + $0xb8] sm:$0xff] 0.0
    %78 = vst [vmem:[#allocation2 + $0xc0] sm:$0xff] 0.0
    %79 = vst [vmem:[#allocation2 + $0xc8] sm:$0xff] 0.0
    %80 = vst [vmem:[#allocation2 + $0xd0] sm:$0x3] 0.0
    %v81 = vld [vmem:[#allocation3] sm:$0xff]
    %v82 = vld [vmem:[#allocation3 + $0x8] sm:$0xff]
    %v83 = vld [vmem:[#allocation3 + $0x10] sm:$0xff]
    %v84 = vld [vmem:[#allocation3 + $0x18] sm:$0xff]
    %v85 = vld [vmem:[#allocation3 + $0x20] sm:$0xff]
    %v86 = vld [vmem:[#allocation3 + $0x28] sm:$0xff]
    %v87 = vld [vmem:[#allocation3 + $0x30] sm:$0xff]
    %v88 = vld [vmem:[#allocation3 + $0x38] sm:$0xff]
    %97 = vrot.lane.b32.xlu0 %v81, 1
    %v98 = vpop.permute.xlu0 %97
    %99 = vrot.lane.b32.xlu0 %v82, 1
    %v100 = vpop.permute.xlu0 %99
    %101 = vrot.lane.b32.xlu0 %v83, 1
    %v102 = vpop.permute.xlu0 %101
    %103 = vrot.lane.b32.xlu0 %v84, 1
    %v104 = vpop.permute.xlu0 %103
    %105 = vrot.lane.b32.xlu0 %v85, 1
    %v106 = vpop.permute.xlu0 %105
    %107 = vrot.lane.b32.xlu0 %v86, 1
    %v108 = vpop.permute.xlu0 %107
    %109 = vrot.lane.b32.xlu0 %v87, 1
    %v110 = vpop.permute.xlu0 %109
    %111 = vrot.lane.b32.xlu0 %v88, 1
    %v112 = vpop.permute.xlu0 %111
    %vm121 = vcmask 531464
    %122 = vst.msk [vmem:[#allocation2 + $0x1] sm:$0xff] %vm121, %v98
    %123 = vst.msk [vmem:[#allocation2 + $0x9] sm:$0xff] %vm121, %v100
    %124 = vst.msk [vmem:[#allocation2 + $0x11] sm:$0xff] %vm121, %v102
    %125 = vst.msk [vmem:[#allocation2 + $0x19] sm:$0xff] %vm121, %v104
    %126 = vst.msk [vmem:[#allocation2 + $0x21] sm:$0xff] %vm121, %v106
    %127 = vst.msk [vmem:[#allocation2 + $0x29] sm:$0xff] %vm121, %v108
    %128 = vst.msk [vmem:[#allocation2 + $0x31] sm:$0xff] %vm121, %v110
    %129 = vst.msk [vmem:[#allocation2 + $0x39] sm:$0xff] %vm121, %v112
    %s130 = scalar_lea.vmem [#allocation3], 64
    %v131 = vld [vmem:[%s130] sm:$0xff]
    %v132 = vld [vmem:[%s130 + $0x8] sm:$0xff]
    %v133 = vld [vmem:[%s130 + $0x10] sm:$0xff]
    %v134 = vld [vmem:[%s130 + $0x18] sm:$0xff]
    %v135 = vld [vmem:[%s130 + $0x20] sm:$0xff]
    %v136 = vld [vmem:[%s130 + $0x28] sm:$0xff]
    %v137 = vld [vmem:[%s130 + $0x30] sm:$0xff]
    %v138 = vld [vmem:[%s130 + $0x38] sm:$0xff]
    %147 = vrot.lane.b32.xlu0 %v131, 1
    %v148 = vpop.permute.xlu0 %147
    %149 = vrot.lane.b32.xlu0 %v132, 1
    %v150 = vpop.permute.xlu0 %149
    %151 = vrot.lane.b32.xlu0 %v133, 1
    %v152 = vpop.permute.xlu0 %151
    %153 = vrot.lane.b32.xlu0 %v134, 1
    %v154 = vpop.permute.xlu0 %153
    %155 = vrot.lane.b32.xlu0 %v135, 1
    %v156 = vpop.permute.xlu0 %155
    %157 = vrot.lane.b32.xlu0 %v136, 1
    %v158 = vpop.permute.xlu0 %157
    %159 = vrot.lane.b32.xlu0 %v137, 1
    %v160 = vpop.permute.xlu0 %159
    %161 = vrot.lane.b32.xlu0 %v138, 1
    %v162 = vpop.permute.xlu0 %161
    %s171 = scalar_lea.vmem [#allocation2], 72
    %172 = vst.msk [vmem:[%s171 + $0x1] sm:$0xff] %vm121, %v148
    %173 = vst.msk [vmem:[%s171 + $0x9] sm:$0xff] %vm121, %v150
    %174 = vst.msk [vmem:[%s171 + $0x11] sm:$0xff] %vm121, %v152
    %175 = vst.msk [vmem:[%s171 + $0x19] sm:$0xff] %vm121, %v154
    %176 = vst.msk [vmem:[%s171 + $0x21] sm:$0xff] %vm121, %v156
    %177 = vst.msk [vmem:[%s171 + $0x29] sm:$0xff] %vm121, %v158
    %178 = vst.msk [vmem:[%s171 + $0x31] sm:$0xff] %vm121, %v160
    %179 = vst.msk [vmem:[%s171 + $0x39] sm:$0xff] %vm121, %v162
    %s180 = scalar_lea.vmem [#allocation3], 128
    %v181 = vld [vmem:[%s180] sm:$0xff]
    %v182 = vld [vmem:[%s180 + $0x8] sm:$0xff]
    %v183 = vld [vmem:[%s180 + $0x10] sm:$0xff]
    %v184 = vld [vmem:[%s180 + $0x18] sm:$0xff]
    %v185 = vld [vmem:[%s180 + $0x20] sm:$0xff]
    %v186 = vld [vmem:[%s180 + $0x28] sm:$0xff]
    %v187 = vld [vmem:[%s180 + $0x30] sm:$0xff]
    %v188 = vld [vmem:[%s180 + $0x38] sm:$0xff]
    %197 = vrot.lane.b32.xlu0 %v181, 1
    %v198 = vpop.permute.xlu0 %197
    %199 = vrot.lane.b32.xlu0 %v182, 1
    %v200 = vpop.permute.xlu0 %199
    %201 = vrot.lane.b32.xlu0 %v183, 1
    %v202 = vpop.permute.xlu0 %201
    %203 = vrot.lane.b32.xlu0 %v184, 1
    %v204 = vpop.permute.xlu0 %203
    %205 = vrot.lane.b32.xlu0 %v185, 1
    %v206 = vpop.permute.xlu0 %205
    %207 = vrot.lane.b32.xlu0 %v186, 1
    %v208 = vpop.permute.xlu0 %207
    %209 = vrot.lane.b32.xlu0 %v187, 1
    %v210 = vpop.permute.xlu0 %209
    %211 = vrot.lane.b32.xlu0 %v188, 1
    %v212 = vpop.permute.xlu0 %211
    %s221 = scalar_lea.vmem [#allocation2], 144
    %222 = vst.msk [vmem:[%s221 + $0x1] sm:$0xff] %vm121, %v198
    %223 = vst.msk [vmem:[%s221 + $0x9] sm:$0xff] %vm121, %v200
    %224 = vst.msk [vmem:[%s221 + $0x11] sm:$0xff] %vm121, %v202
    %225 = vst.msk [vmem:[%s221 + $0x19] sm:$0xff] %vm121, %v204
    %226 = vst.msk [vmem:[%s221 + $0x21] sm:$0xff] %vm121, %v206
    %227 = vst.msk [vmem:[%s221 + $0x29] sm:$0xff] %vm121, %v208
    %228 = vst.msk [vmem:[%s221 + $0x31] sm:$0xff] %vm121, %v210
    %229 = vst.msk [vmem:[%s221 + $0x39] sm:$0xff] %vm121, %v212
    %s230 = smul.u32 0, 64
    %s231 = sld [smem:[#allocation8]]
    %v232 = vstv %s231
    %s233 = sld [smem:[#allocation8 + $0x1]]
    %v234 = vstv %s233
    %s235 = sld [smem:[#allocation8 + $0x2]]
    %v236 = vstv %s235
    %s237 = scalar_lea.vmem [#allocation2], %s230
    %v238 = vld [vmem:[%s237] sm:$0xff]
    %v239 = vld [vmem:[%s237 + $0x8] sm:$0xff]
    %v240 = vld [vmem:[%s237 + $0x10] sm:$0xff]
    %v241 = vld [vmem:[%s237 + $0x18] sm:$0xff]
    %v242 = vld [vmem:[%s237 + $0x20] sm:$0xff]
    %v243 = vld [vmem:[%s237 + $0x28] sm:$0xff]
    %v244 = vld [vmem:[%s237 + $0x30] sm:$0xff]
    %v245 = vld [vmem:[%s237 + $0x38] sm:$0xff]
    %s246 = sld [smem:[#allocation7]]
    %v247 = vstv %s246
    %v248 = vmul.f32 %v238, %v247
    %v249 = vmul.f32 %v239, %v247
    %v250 = vmul.f32 %v240, %v247
    %v251 = vmul.f32 %v241, %v247
    %v252 = vmul.f32 %v242, %v247
    %v253 = vmul.f32 %v243, %v247
    %v254 = vmul.f32 %v244, %v247
    %v255 = vmul.f32 %v245, %v247
    %v256 = vadd.f32 %v232, %v248
    %v257 = vadd.f32 %v232, %v249
    %v258 = vadd.f32 %v232, %v250
    %v259 = vadd.f32 %v232, %v251
    %v260 = vadd.f32 %v232, %v252
    %v261 = vadd.f32 %v232, %v253
    %v262 = vadd.f32 %v232, %v254
    %v263 = vadd.f32 %v232, %v255
    %s264 = sld [smem:[#allocation7 + $0x1b]]
    %v265 = vstv %s264
    %v266 = vmul.f32 %v238, %v265
    %v267 = vmul.f32 %v239, %v265
    %v268 = vmul.f32 %v240, %v265
    %v269 = vmul.f32 %v241, %v265
    %v270 = vmul.f32 %v242, %v265
    %v271 = vmul.f32 %v243, %v265
    %v272 = vmul.f32 %v244, %v265
    %v273 = vmul.f32 %v245, %v265
    %v274 = vadd.f32 %v234, %v266
    %v275 = vadd.f32 %v234, %v267
    %v276 = vadd.f32 %v234, %v268
    %v277 = vadd.f32 %v234, %v269
    %v278 = vadd.f32 %v234, %v270
    %v279 = vadd.f32 %v234, %v271
    %v280 = vadd.f32 %v234, %v272
    %v281 = vadd.f32 %v234, %v273
    %s282 = sld [smem:[#allocation7 + $0x36]]
    %v283 = vstv %s282
    %v284 = vmul.f32 %v238, %v283
    %v285 = vmul.f32 %v239, %v283
    %v286 = vmul.f32 %v240, %v283
    %v287 = vmul.f32 %v241, %v283
    %v288 = vmul.f32 %v242, %v283
    %v289 = vmul.f32 %v243, %v283
    %v290 = vmul.f32 %v244, %v283
    %v291 = vmul.f32 %v245, %v283
    %v292 = vadd.f32 %v236, %v284
    %v293 = vadd.f32 %v236, %v285
    %v294 = vadd.f32 %v236, %v286
    %v295 = vadd.f32 %v236, %v287
    %v296 = vadd.f32 %v236, %v288
    %v297 = vadd.f32 %v236, %v289
    %v298 = vadd.f32 %v236, %v290
    %v299 = vadd.f32 %v236, %v291
    %s300 = sld [smem:[#allocation7 + $0x1]]
    %v301 = vstv %s300
    %v302 = vmul.f32 %v238, %v301
    %v303 = vmul.f32 %v239, %v301
    %v304 = vmul.f32 %v240, %v301
    %v305 = vmul.f32 %v241, %v301
    %v306 = vmul.f32 %v242, %v301
    %v307 = vmul.f32 %v243, %v301
    %v308 = vmul.f32 %v244, %v301
    %v309 = vmul.f32 %v245, %v301
    %318 = vrot.lane.b32.xlu0 %v302, 127
    %v319 = vpop.permute.xlu0 %318
    %320 = vrot.lane.b32.xlu0 %v303, 127
    %v321 = vpop.permute.xlu0 %320
    %322 = vrot.lane.b32.xlu0 %v304, 127
    %v323 = vpop.permute.xlu0 %322
    %324 = vrot.lane.b32.xlu0 %v305, 127
    %v325 = vpop.permute.xlu0 %324
    %326 = vrot.lane.b32.xlu0 %v306, 127
    %v327 = vpop.permute.xlu0 %326
    %328 = vrot.lane.b32.xlu0 %v307, 127
    %v329 = vpop.permute.xlu0 %328
    %330 = vrot.lane.b32.xlu0 %v308, 127
    %v331 = vpop.permute.xlu0 %330
    %332 = vrot.lane.b32.xlu0 %v309, 127
    %v333 = vpop.permute.xlu0 %332
    %v342 = vadd.f32 %v256, %v319
    %v343 = vadd.f32 %v257, %v321
    %v344 = vadd.f32 %v258, %v323
    %v345 = vadd.f32 %v259, %v325
    %v346 = vadd.f32 %v260, %v327
    %v347 = vadd.f32 %v261, %v329
    %v348 = vadd.f32 %v262, %v331
    %v349 = vadd.f32 %v263, %v333
    %s350 = sld [smem:[#allocation7 + $0x1c]]
    %v351 = vstv %s350
    %v352 = vmul.f32 %v238, %v351
    %v353 = vmul.f32 %v239, %v351
    %v354 = vmul.f32 %v240, %v351
    %v355 = vmul.f32 %v241, %v351
    %v356 = vmul.f32 %v242, %v351
    %v357 = vmul.f32 %v243, %v351
    %v358 = vmul.f32 %v244, %v351
    %v359 = vmul.f32 %v245, %v351
    %368 = vrot.lane.b32.xlu0 %v352, 127
    %v369 = vpop.permute.xlu0 %368
    %370 = vrot.lane.b32.xlu0 %v353, 127
    %v371 = vpop.permute.xlu0 %370
    %372 = vrot.lane.b32.xlu0 %v354, 127
    %v373 = vpop.permute.xlu0 %372
    %374 = vrot.lane.b32.xlu0 %v355, 127
    %v375 = vpop.permute.xlu0 %374
    %376 = vrot.lane.b32.xlu0 %v356, 127
    %v377 = vpop.permute.xlu0 %376
    %378 = vrot.lane.b32.xlu0 %v357, 127
    %v379 = vpop.permute.xlu0 %378
    %380 = vrot.lane.b32.xlu0 %v358, 127
    %v381 = vpop.permute.xlu0 %380
    %382 = vrot.lane.b32.xlu0 %v359, 127
    %v383 = vpop.permute.xlu0 %382
    %v392 = vadd.f32 %v274, %v369
    %v393 = vadd.f32 %v275, %v371
    %v394 = vadd.f32 %v276, %v373
    %v395 = vadd.f32 %v277, %v375
    %v396 = vadd.f32 %v278, %v377
    %v397 = vadd.f32 %v279, %v379
    %v398 = vadd.f32 %v280, %v381
    %v399 = vadd.f32 %v281, %v383
    %s400 = sld [smem:[#allocation7 + $0x37]]
    %v401 = vstv %s400
    %v402 = vmul.f32 %v238, %v401
    %v403 = vmul.f32 %v239, %v401
    %v404 = vmul.f32 %v240, %v401
    %v405 = vmul.f32 %v241, %v401
    %v406 = vmul.f32 %v242, %v401
    %v407 = vmul.f32 %v243, %v401
    %v408 = vmul.f32 %v244, %v401
    %v409 = vmul.f32 %v245, %v401
    %418 = vrot.lane.b32.xlu0 %v402, 127
    %v419 = vpop.permute.xlu0 %418
    %420 = vrot.lane.b32.xlu0 %v403, 127
    %v421 = vpop.permute.xlu0 %420
    %422 = vrot.lane.b32.xlu0 %v404, 127
    %v423 = vpop.permute.xlu0 %422
    %424 = vrot.lane.b32.xlu0 %v405, 127
    %v425 = vpop.permute.xlu0 %424
    %426 = vrot.lane.b32.xlu0 %v406, 127
    %v427 = vpop.permute.xlu0 %426
    %428 = vrot.lane.b32.xlu0 %v407, 127
    %v429 = vpop.permute.xlu0 %428
    %430 = vrot.lane.b32.xlu0 %v408, 127
    %v431 = vpop.permute.xlu0 %430
    %432 = vrot.lane.b32.xlu0 %v409, 127
    %v433 = vpop.permute.xlu0 %432
    %v442 = vadd.f32 %v292, %v419
    %v443 = vadd.f32 %v293, %v421
    %v444 = vadd.f32 %v294, %v423
    %v445 = vadd.f32 %v295, %v425
    %v446 = vadd.f32 %v296, %v427
    %v447 = vadd.f32 %v297, %v429
    %v448 = vadd.f32 %v298, %v431
    %v449 = vadd.f32 %v299, %v433
    %s450 = sld [smem:[#allocation7 + $0x2]]
    %v451 = vstv %s450
    %v452 = vmul.f32 %v238, %v451
    %v453 = vmul.f32 %v239, %v451
    %v454 = vmul.f32 %v240, %v451
    %v455 = vmul.f32 %v241, %v451
    %v456 = vmul.f32 %v242, %v451
    %v457 = vmul.f32 %v243, %v451
    %v458 = vmul.f32 %v244, %v451
    %v459 = vmul.f32 %v245, %v451
    %468 = vrot.lane.b32.xlu0 %v452, 126
    %v469 = vpop.permute.xlu0 %468
    %470 = vrot.lane.b32.xlu0 %v453, 126
    %v471 = vpop.permute.xlu0 %470
    %472 = vrot.lane.b32.xlu0 %v454, 126
    %v473 = vpop.permute.xlu0 %472
    %474 = vrot.lane.b32.xlu0 %v455, 126
    %v475 = vpop.permute.xlu0 %474
    %476 = vrot.lane.b32.xlu0 %v456, 126
    %v477 = vpop.permute.xlu0 %476
    %478 = vrot.lane.b32.xlu0 %v457, 126
    %v479 = vpop.permute.xlu0 %478
    %480 = vrot.lane.b32.xlu0 %v458, 126
    %v481 = vpop.permute.xlu0 %480
    %482 = vrot.lane.b32.xlu0 %v459, 126
    %v483 = vpop.permute.xlu0 %482
    %v492 = vadd.f32 %v342, %v469
    %v493 = vadd.f32 %v343, %v471
    %v494 = vadd.f32 %v344, %v473
    %v495 = vadd.f32 %v345, %v475
    %v496 = vadd.f32 %v346, %v477
    %v497 = vadd.f32 %v347, %v479
    %v498 = vadd.f32 %v348, %v481
    %v499 = vadd.f32 %v349, %v483
    %s500 = sld [smem:[#allocation7 + $0x1d]]
    %v501 = vstv %s500
    %v502 = vmul.f32 %v238, %v501
    %v503 = vmul.f32 %v239, %v501
    %v504 = vmul.f32 %v240, %v501
    %v505 = vmul.f32 %v241, %v501
    %v506 = vmul.f32 %v242, %v501
    %v507 = vmul.f32 %v243, %v501
    %v508 = vmul.f32 %v244, %v501
    %v509 = vmul.f32 %v245, %v501
    %518 = vrot.lane.b32.xlu0 %v502, 126
    %v519 = vpop.permute.xlu0 %518
    %520 = vrot.lane.b32.xlu0 %v503, 126
    %v521 = vpop.permute.xlu0 %520
    %522 = vrot.lane.b32.xlu0 %v504, 126
    %v523 = vpop.permute.xlu0 %522
    %524 = vrot.lane.b32.xlu0 %v505, 126
    %v525 = vpop.permute.xlu0 %524
    %526 = vrot.lane.b32.xlu0 %v506, 126
    %v527 = vpop.permute.xlu0 %526
    %528 = vrot.lane.b32.xlu0 %v507, 126
    %v529 = vpop.permute.xlu0 %528
    %530 = vrot.lane.b32.xlu0 %v508, 126
    %v531 = vpop.permute.xlu0 %530
    %532 = vrot.lane.b32.xlu0 %v509, 126
    %v533 = vpop.permute.xlu0 %532
    %v542 = vadd.f32 %v392, %v519
    %v543 = vadd.f32 %v393, %v521
    %v544 = vadd.f32 %v394, %v523
    %v545 = vadd.f32 %v395, %v525
    %v546 = vadd.f32 %v396, %v527
    %v547 = vadd.f32 %v397, %v529
    %v548 = vadd.f32 %v398, %v531
    %v549 = vadd.f32 %v399, %v533
    %s550 = sld [smem:[#allocation7 + $0x38]]
    %v551 = vstv %s550
    %v552 = vmul.f32 %v238, %v551
    %v553 = vmul.f32 %v239, %v551
    %v554 = vmul.f32 %v240, %v551
    %v555 = vmul.f32 %v241, %v551
    %v556 = vmul.f32 %v242, %v551
    %v557 = vmul.f32 %v243, %v551
    %v558 = vmul.f32 %v244, %v551
    %v559 = vmul.f32 %v245, %v551
    %568 = vrot.lane.b32.xlu0 %v552, 126
    %v569 = vpop.permute.xlu0 %568
    %570 = vrot.lane.b32.xlu0 %v553, 126
    %v571 = vpop.permute.xlu0 %570
    %572 = vrot.lane.b32.xlu0 %v554, 126
    %v573 = vpop.permute.xlu0 %572
    %574 = vrot.lane.b32.xlu0 %v555, 126
    %v575 = vpop.permute.xlu0 %574
    %576 = vrot.lane.b32.xlu0 %v556, 126
    %v577 = vpop.permute.xlu0 %576
    %578 = vrot.lane.b32.xlu0 %v557, 126
    %v579 = vpop.permute.xlu0 %578
    %580 = vrot.lane.b32.xlu0 %v558, 126
    %v581 = vpop.permute.xlu0 %580
    %582 = vrot.lane.b32.xlu0 %v559, 126
    %v583 = vpop.permute.xlu0 %582
    %v592 = vadd.f32 %v442, %v569
    %v593 = vadd.f32 %v443, %v571
    %v594 = vadd.f32 %v444, %v573
    %v595 = vadd.f32 %v445, %v575
    %v596 = vadd.f32 %v446, %v577
    %v597 = vadd.f32 %v447, %v579
    %v598 = vadd.f32 %v448, %v581
    %v599 = vadd.f32 %v449, %v583
    %s600 = sadd.s32 %s230, 1
    %s601 = scalar_lea.vmem [#allocation2], %s600
    %v602 = vld [vmem:[%s601] sm:$0xff]
    %v603 = vld [vmem:[%s601 + $0x8] sm:$0xff]
    %v604 = vld [vmem:[%s601 + $0x10] sm:$0xff]
    %v605 = vld [vmem:[%s601 + $0x18] sm:$0xff]
    %v606 = vld [vmem:[%s601 + $0x20] sm:$0xff]
    %v607 = vld [vmem:[%s601 + $0x28] sm:$0xff]
    %v608 = vld [vmem:[%s601 + $0x30] sm:$0xff]
    %v609 = vld [vmem:[%s601 + $0x38] sm:$0xff]
    %s610 = sld [smem:[#allocation7 + $0x3]]
    %v611 = vstv %s610
    %v612 = vmul.f32 %v602, %v611
    %v613 = vmul.f32 %v603, %v611
    %v614 = vmul.f32 %v604, %v611
    %v615 = vmul.f32 %v605, %v611
    %v616 = vmul.f32 %v606, %v611
    %v617 = vmul.f32 %v607, %v611
    %v618 = vmul.f32 %v608, %v611
    %v619 = vmul.f32 %v609, %v611
    %v620 = vadd.f32 %v492, %v612
    %v621 = vadd.f32 %v493, %v613
    %v622 = vadd.f32 %v494, %v614
    %v623 = vadd.f32 %v495, %v615
    %v624 = vadd.f32 %v496, %v616
    %v625 = vadd.f32 %v497, %v617
    %v626 = vadd.f32 %v498, %v618
    %v627 = vadd.f32 %v499, %v619
    %s628 = sld [smem:[#allocation7 + $0x1e]]
    %v629 = vstv %s628
    %v630 = vmul.f32 %v602, %v629
    %v631 = vmul.f32 %v603, %v629
    %v632 = vmul.f32 %v604, %v629
    %v633 = vmul.f32 %v605, %v629
    %v634 = vmul.f32 %v606, %v629
    %v635 = vmul.f32 %v607, %v629
    %v636 = vmul.f32 %v608, %v629
    %v637 = vmul.f32 %v609, %v629
    %v638 = vadd.f32 %v542, %v630
    %v639 = vadd.f32 %v543, %v631
    %v640 = vadd.f32 %v544, %v632
    %v641 = vadd.f32 %v545, %v633
    %v642 = vadd.f32 %v546, %v634
    %v643 = vadd.f32 %v547, %v635
    %v644 = vadd.f32 %v548, %v636
    %v645 = vadd.f32 %v549, %v637
    %s646 = sld [smem:[#allocation7 + $0x39]]
    %v647 = vstv %s646
    %v648 = vmul.f32 %v602, %v647
    %v649 = vmul.f32 %v603, %v647
    %v650 = vmul.f32 %v604, %v647
    %v651 = vmul.f32 %v605, %v647
    %v652 = vmul.f32 %v606, %v647
    %v653 = vmul.f32 %v607, %v647
    %v654 = vmul.f32 %v608, %v647
    %v655 = vmul.f32 %v609, %v647
    %v656 = vadd.f32 %v592, %v648
    %v657 = vadd.f32 %v593, %v649
    %v658 = vadd.f32 %v594, %v650
    %v659 = vadd.f32 %v595, %v651
    %v660 = vadd.f32 %v596, %v652
    %v661 = vadd.f32 %v597, %v653
    %v662 = vadd.f32 %v598, %v654
    %v663 = vadd.f32 %v599, %v655
    %s664 = sld [smem:[#allocation7 + $0x4]]
    %v665 = vstv %s664
    %v666 = vmul.f32 %v602, %v665
    %v667 = vmul.f32 %v603, %v665
    %v668 = vmul.f32 %v604, %v665
    %v669 = vmul.f32 %v605, %v665
    %v670 = vmul.f32 %v606, %v665
    %v671 = vmul.f32 %v607, %v665
    %v672 = vmul.f32 %v608, %v665
    %v673 = vmul.f32 %v609, %v665
    %682 = vrot.lane.b32.xlu0 %v666, 127
    %v683 = vpop.permute.xlu0 %682
    %684 = vrot.lane.b32.xlu0 %v667, 127
    %v685 = vpop.permute.xlu0 %684
    %686 = vrot.lane.b32.xlu0 %v668, 127
    %v687 = vpop.permute.xlu0 %686
    %688 = vrot.lane.b32.xlu0 %v669, 127
    %v689 = vpop.permute.xlu0 %688
    %690 = vrot.lane.b32.xlu0 %v670, 127
    %v691 = vpop.permute.xlu0 %690
    %692 = vrot.lane.b32.xlu0 %v671, 127
    %v693 = vpop.permute.xlu0 %692
    %694 = vrot.lane.b32.xlu0 %v672, 127
    %v695 = vpop.permute.xlu0 %694
    %696 = vrot.lane.b32.xlu0 %v673, 127
    %v697 = vpop.permute.xlu0 %696
    %v706 = vadd.f32 %v620, %v683
    %v707 = vadd.f32 %v621, %v685
    %v708 = vadd.f32 %v622, %v687
    %v709 = vadd.f32 %v623, %v689
    %v710 = vadd.f32 %v624, %v691
    %v711 = vadd.f32 %v625, %v693
    %v712 = vadd.f32 %v626, %v695
    %v713 = vadd.f32 %v627, %v697
    %s714 = sld [smem:[#allocation7 + $0x1f]]
    %v715 = vstv %s714
    %v716 = vmul.f32 %v602, %v715
    %v717 = vmul.f32 %v603, %v715
    %v718 = vmul.f32 %v604, %v715
    %v719 = vmul.f32 %v605, %v715
    %v720 = vmul.f32 %v606, %v715
    %v721 = vmul.f32 %v607, %v715
    %v722 = vmul.f32 %v608, %v715
    %v723 = vmul.f32 %v609, %v715
    %732 = vrot.lane.b32.xlu0 %v716, 127
    %v733 = vpop.permute.xlu0 %732
    %734 = vrot.lane.b32.xlu0 %v717, 127
    %v735 = vpop.permute.xlu0 %734
    %736 = vrot.lane.b32.xlu0 %v718, 127
    %v737 = vpop.permute.xlu0 %736
    %738 = vrot.lane.b32.xlu0 %v719, 127
    %v739 = vpop.permute.xlu0 %738
    %740 = vrot.lane.b32.xlu0 %v720, 127
    %v741 = vpop.permute.xlu0 %740
    %742 = vrot.lane.b32.xlu0 %v721, 127
    %v743 = vpop.permute.xlu0 %742
    %744 = vrot.lane.b32.xlu0 %v722, 127
    %v745 = vpop.permute.xlu0 %744
    %746 = vrot.lane.b32.xlu0 %v723, 127
    %v747 = vpop.permute.xlu0 %746
    %v756 = vadd.f32 %v638, %v733
    %v757 = vadd.f32 %v639, %v735
    %v758 = vadd.f32 %v640, %v737
    %v759 = vadd.f32 %v641, %v739
    %v760 = vadd.f32 %v642, %v741
    %v761 = vadd.f32 %v643, %v743
    %v762 = vadd.f32 %v644, %v745
    %v763 = vadd.f32 %v645, %v747
    %s764 = sld [smem:[#allocation7 + $0x3a]]
    %v765 = vstv %s764
    %v766 = vmul.f32 %v602, %v765
    %v767 = vmul.f32 %v603, %v765
    %v768 = vmul.f32 %v604, %v765
    %v769 = vmul.f32 %v605, %v765
    %v770 = vmul.f32 %v606, %v765
    %v771 = vmul.f32 %v607, %v765
    %v772 = vmul.f32 %v608, %v765
    %v773 = vmul.f32 %v609, %v765
    %782 = vrot.lane.b32.xlu0 %v766, 127
    %v783 = vpop.permute.xlu0 %782
    %784 = vrot.lane.b32.xlu0 %v767, 127
    %v785 = vpop.permute.xlu0 %784
    %786 = vrot.lane.b32.xlu0 %v768, 127
    %v787 = vpop.permute.xlu0 %786
    %788 = vrot.lane.b32.xlu0 %v769, 127
    %v789 = vpop.permute.xlu0 %788
    %790 = vrot.lane.b32.xlu0 %v770, 127
    %v791 = vpop.permute.xlu0 %790
    %792 = vrot.lane.b32.xlu0 %v771, 127
    %v793 = vpop.permute.xlu0 %792
    %794 = vrot.lane.b32.xlu0 %v772, 127
    %v795 = vpop.permute.xlu0 %794
    %796 = vrot.lane.b32.xlu0 %v773, 127
    %v797 = vpop.permute.xlu0 %796
    %v806 = vadd.f32 %v656, %v783
    %v807 = vadd.f32 %v657, %v785
    %v808 = vadd.f32 %v658, %v787
    %v809 = vadd.f32 %v659, %v789
    %v810 = vadd.f32 %v660, %v791
    %v811 = vadd.f32 %v661, %v793
    %v812 = vadd.f32 %v662, %v795
    %v813 = vadd.f32 %v663, %v797
    %s814 = sld [smem:[#allocation7 + $0x5]]
    %v815 = vstv %s814
    %v816 = vmul.f32 %v602, %v815
    %v817 = vmul.f32 %v603, %v815
    %v818 = vmul.f32 %v604, %v815
    %v819 = vmul.f32 %v605, %v815
    %v820 = vmul.f32 %v606, %v815
    %v821 = vmul.f32 %v607, %v815
    %v822 = vmul.f32 %v608, %v815
    %v823 = vmul.f32 %v609, %v815
    %832 = vrot.lane.b32.xlu0 %v816, 126
    %v833 = vpop.permute.xlu0 %832
    %834 = vrot.lane.b32.xlu0 %v817, 126
    %v835 = vpop.permute.xlu0 %834
    %836 = vrot.lane.b32.xlu0 %v818, 126
    %v837 = vpop.permute.xlu0 %836
    %838 = vrot.lane.b32.xlu0 %v819, 126
    %v839 = vpop.permute.xlu0 %838
    %840 = vrot.lane.b32.xlu0 %v820, 126
    %v841 = vpop.permute.xlu0 %840
    %842 = vrot.lane.b32.xlu0 %v821, 126
    %v843 = vpop.permute.xlu0 %842
    %844 = vrot.lane.b32.xlu0 %v822, 126
    %v845 = vpop.permute.xlu0 %844
    %846 = vrot.lane.b32.xlu0 %v823, 126
    %v847 = vpop.permute.xlu0 %846
    %v856 = vadd.f32 %v706, %v833
    %v857 = vadd.f32 %v707, %v835
    %v858 = vadd.f32 %v708, %v837
    %v859 = vadd.f32 %v709, %v839
    %v860 = vadd.f32 %v710, %v841
    %v861 = vadd.f32 %v711, %v843
    %v862 = vadd.f32 %v712, %v845
    %v863 = vadd.f32 %v713, %v847
    %s864 = sld [smem:[#allocation7 + $0x20]]
    %v865 = vstv %s864
    %v866 = vmul.f32 %v602, %v865
    %v867 = vmul.f32 %v603, %v865
    %v868 = vmul.f32 %v604, %v865
    %v869 = vmul.f32 %v605, %v865
    %v870 = vmul.f32 %v606, %v865
    %v871 = vmul.f32 %v607, %v865
    %v872 = vmul.f32 %v608, %v865
    %v873 = vmul.f32 %v609, %v865
    %882 = vrot.lane.b32.xlu0 %v866, 126
    %v883 = vpop.permute.xlu0 %882
    %884 = vrot.lane.b32.xlu0 %v867, 126
    %v885 = vpop.permute.xlu0 %884
    %886 = vrot.lane.b32.xlu0 %v868, 126
    %v887 = vpop.permute.xlu0 %886
    %888 = vrot.lane.b32.xlu0 %v869, 126
    %v889 = vpop.permute.xlu0 %888
    %890 = vrot.lane.b32.xlu0 %v870, 126
    %v891 = vpop.permute.xlu0 %890
    %892 = vrot.lane.b32.xlu0 %v871, 126
    %v893 = vpop.permute.xlu0 %892
    %894 = vrot.lane.b32.xlu0 %v872, 126
    %v895 = vpop.permute.xlu0 %894
    %896 = vrot.lane.b32.xlu0 %v873, 126
    %v897 = vpop.permute.xlu0 %896
    %v906 = vadd.f32 %v756, %v883
    %v907 = vadd.f32 %v757, %v885
    %v908 = vadd.f32 %v758, %v887
    %v909 = vadd.f32 %v759, %v889
    %v910 = vadd.f32 %v760, %v891
    %v911 = vadd.f32 %v761, %v893
    %v912 = vadd.f32 %v762, %v895
    %v913 = vadd.f32 %v763, %v897
    %s914 = sld [smem:[#allocation7 + $0x3b]]
    %v915 = vstv %s914
    %v916 = vmul.f32 %v602, %v915
    %v917 = vmul.f32 %v603, %v915
    %v918 = vmul.f32 %v604, %v915
    %v919 = vmul.f32 %v605, %v915
    %v920 = vmul.f32 %v606, %v915
    %v921 = vmul.f32 %v607, %v915
    %v922 = vmul.f32 %v608, %v915
    %v923 = vmul.f32 %v609, %v915
    %932 = vrot.lane.b32.xlu0 %v916, 126
    %v933 = vpop.permute.xlu0 %932
    %934 = vrot.lane.b32.xlu0 %v917, 126
    %v935 = vpop.permute.xlu0 %934
    %936 = vrot.lane.b32.xlu0 %v918, 126
    %v937 = vpop.permute.xlu0 %936
    %938 = vrot.lane.b32.xlu0 %v919, 126
    %v939 = vpop.permute.xlu0 %938
    %940 = vrot.lane.b32.xlu0 %v920, 126
    %v941 = vpop.permute.xlu0 %940
    %942 = vrot.lane.b32.xlu0 %v921, 126
    %v943 = vpop.permute.xlu0 %942
    %944 = vrot.lane.b32.xlu0 %v922, 126
    %v945 = vpop.permute.xlu0 %944
    %946 = vrot.lane.b32.xlu0 %v923, 126
    %v947 = vpop.permute.xlu0 %946
    %v956 = vadd.f32 %v806, %v933
    %v957 = vadd.f32 %v807, %v935
    %v958 = vadd.f32 %v808, %v937
    %v959 = vadd.f32 %v809, %v939
    %v960 = vadd.f32 %v810, %v941
    %v961 = vadd.f32 %v811, %v943
    %v962 = vadd.f32 %v812, %v945
    %v963 = vadd.f32 %v813, %v947
    %s964 = sadd.s32 %s230, 2
    %s965 = scalar_lea.vmem [#allocation2], %s964
    %v966 = vld [vmem:[%s965] sm:$0xff]
    %v967 = vld [vmem:[%s965 + $0x8] sm:$0xff]
    %v968 = vld [vmem:[%s965 + $0x10] sm:$0xff]
    %v969 = vld [vmem:[%s965 + $0x18] sm:$0xff]
    %v970 = vld [vmem:[%s965 + $0x20] sm:$0xff]
    %v971 = vld [vmem:[%s965 + $0x28] sm:$0xff]
    %v972 = vld [vmem:[%s965 + $0x30] sm:$0xff]
    %v973 = vld [vmem:[%s965 + $0x38] sm:$0xff]
    %s974 = sld [smem:[#allocation7 + $0x6]]
    %v975 = vstv %s974
    %v976 = vmul.f32 %v966, %v975
    %v977 = vmul.f32 %v967, %v975
    %v978 = vmul.f32 %v968, %v975
    %v979 = vmul.f32 %v969, %v975
    %v980 = vmul.f32 %v970, %v975
    %v981 = vmul.f32 %v971, %v975
    %v982 = vmul.f32 %v972, %v975
    %v983 = vmul.f32 %v973, %v975
    %v984 = vadd.f32 %v856, %v976
    %v985 = vadd.f32 %v857, %v977
    %v986 = vadd.f32 %v858, %v978
    %v987 = vadd.f32 %v859, %v979
    %v988 = vadd.f32 %v860, %v980
    %v989 = vadd.f32 %v861, %v981
    %v990 = vadd.f32 %v862, %v982
    %v991 = vadd.f32 %v863, %v983
    %s992 = sld [smem:[#allocation7 + $0x21]]
    %v993 = vstv %s992
    %v994 = vmul.f32 %v966, %v993
    %v995 = vmul.f32 %v967, %v993
    %v996 = vmul.f32 %v968, %v993
    %v997 = vmul.f32 %v969, %v993
    %v998 = vmul.f32 %v970, %v993
    %v999 = vmul.f32 %v971, %v993
    %v1000 = vmul.f32 %v972, %v993
    %v1001 = vmul.f32 %v973, %v993
    %v1002 = vadd.f32 %v906, %v994
    %v1003 = vadd.f32 %v907, %v995
    %v1004 = vadd.f32 %v908, %v996
    %v1005 = vadd.f32 %v909, %v997
    %v1006 = vadd.f32 %v910, %v998
    %v1007 = vadd.f32 %v911, %v999
    %v1008 = vadd.f32 %v912, %v1000
    %v1009 = vadd.f32 %v913, %v1001
    %s1010 = sld [smem:[#allocation7 + $0x3c]]
    %v1011 = vstv %s1010
    %v1012 = vmul.f32 %v966, %v1011
    %v1013 = vmul.f32 %v967, %v1011
    %v1014 = vmul.f32 %v968, %v1011
    %v1015 = vmul.f32 %v969, %v1011
    %v1016 = vmul.f32 %v970, %v1011
    %v1017 = vmul.f32 %v971, %v1011
    %v1018 = vmul.f32 %v972, %v1011
    %v1019 = vmul.f32 %v973, %v1011
    %v1020 = vadd.f32 %v956, %v1012
    %v1021 = vadd.f32 %v957, %v1013
    %v1022 = vadd.f32 %v958, %v1014
    %v1023 = vadd.f32 %v959, %v1015
    %v1024 = vadd.f32 %v960, %v1016
    %v1025 = vadd.f32 %v961, %v1017
    %v1026 = vadd.f32 %v962, %v1018
    %v1027 = vadd.f32 %v963, %v1019
    %s1028 = sld [smem:[#allocation7 + $0x7]]
    %v1029 = vstv %s1028
    %v1030 = vmul.f32 %v966, %v1029
    %v1031 = vmul.f32 %v967, %v1029
    %v1032 = vmul.f32 %v968, %v1029
    %v1033 = vmul.f32 %v969, %v1029
    %v1034 = vmul.f32 %v970, %v1029
    %v1035 = vmul.f32 %v971, %v1029
    %v1036 = vmul.f32 %v972, %v1029
    %v1037 = vmul.f32 %v973, %v1029
    %1046 = vrot.lane.b32.xlu0 %v1030, 127
    %v1047 = vpop.permute.xlu0 %1046
    %1048 = vrot.lane.b32.xlu0 %v1031, 127
    %v1049 = vpop.permute.xlu0 %1048
    %1050 = vrot.lane.b32.xlu0 %v1032, 127
    %v1051 = vpop.permute.xlu0 %1050
    %1052 = vrot.lane.b32.xlu0 %v1033, 127
    %v1053 = vpop.permute.xlu0 %1052
    %1054 = vrot.lane.b32.xlu0 %v1034, 127
    %v1055 = vpop.permute.xlu0 %1054
    %1056 = vrot.lane.b32.xlu0 %v1035, 127
    %v1057 = vpop.permute.xlu0 %1056
    %1058 = vrot.lane.b32.xlu0 %v1036, 127
    %v1059 = vpop.permute.xlu0 %1058
    %1060 = vrot.lane.b32.xlu0 %v1037, 127
    %v1061 = vpop.permute.xlu0 %1060
    %v1070 = vadd.f32 %v984, %v1047
    %v1071 = vadd.f32 %v985, %v1049
    %v1072 = vadd.f32 %v986, %v1051
    %v1073 = vadd.f32 %v987, %v1053
    %v1074 = vadd.f32 %v988, %v1055
    %v1075 = vadd.f32 %v989, %v1057
    %v1076 = vadd.f32 %v990, %v1059
    %v1077 = vadd.f32 %v991, %v1061
    %s1078 = sld [smem:[#allocation7 + $0x22]]
    %v1079 = vstv %s1078
    %v1080 = vmul.f32 %v966, %v1079
    %v1081 = vmul.f32 %v967, %v1079
    %v1082 = vmul.f32 %v968, %v1079
    %v1083 = vmul.f32 %v969, %v1079
    %v1084 = vmul.f32 %v970, %v1079
    %v1085 = vmul.f32 %v971, %v1079
    %v1086 = vmul.f32 %v972, %v1079
    %v1087 = vmul.f32 %v973, %v1079
    %1096 = vrot.lane.b32.xlu0 %v1080, 127
    %v1097 = vpop.permute.xlu0 %1096
    %1098 = vrot.lane.b32.xlu0 %v1081, 127
    %v1099 = vpop.permute.xlu0 %1098
    %1100 = vrot.lane.b32.xlu0 %v1082, 127
    %v1101 = vpop.permute.xlu0 %1100
    %1102 = vrot.lane.b32.xlu0 %v1083, 127
    %v1103 = vpop.permute.xlu0 %1102
    %1104 = vrot.lane.b32.xlu0 %v1084, 127
    %v1105 = vpop.permute.xlu0 %1104
    %1106 = vrot.lane.b32.xlu0 %v1085, 127
    %v1107 = vpop.permute.xlu0 %1106
    %1108 = vrot.lane.b32.xlu0 %v1086, 127
    %v1109 = vpop.permute.xlu0 %1108
    %1110 = vrot.lane.b32.xlu0 %v1087, 127
    %v1111 = vpop.permute.xlu0 %1110
    %v1120 = vadd.f32 %v1002, %v1097
    %v1121 = vadd.f32 %v1003, %v1099
    %v1122 = vadd.f32 %v1004, %v1101
    %v1123 = vadd.f32 %v1005, %v1103
    %v1124 = vadd.f32 %v1006, %v1105
    %v1125 = vadd.f32 %v1007, %v1107
    %v1126 = vadd.f32 %v1008, %v1109
    %v1127 = vadd.f32 %v1009, %v1111
    %s1128 = sld [smem:[#allocation7 + $0x3d]]
    %v1129 = vstv %s1128
    %v1130 = vmul.f32 %v966, %v1129
    %v1131 = vmul.f32 %v967, %v1129
    %v1132 = vmul.f32 %v968, %v1129
    %v1133 = vmul.f32 %v969, %v1129
    %v1134 = vmul.f32 %v970, %v1129
    %v1135 = vmul.f32 %v971, %v1129
    %v1136 = vmul.f32 %v972, %v1129
    %v1137 = vmul.f32 %v973, %v1129
    %1146 = vrot.lane.b32.xlu0 %v1130, 127
    %v1147 = vpop.permute.xlu0 %1146
    %1148 = vrot.lane.b32.xlu0 %v1131, 127
    %v1149 = vpop.permute.xlu0 %1148
    %1150 = vrot.lane.b32.xlu0 %v1132, 127
    %v1151 = vpop.permute.xlu0 %1150
    %1152 = vrot.lane.b32.xlu0 %v1133, 127
    %v1153 = vpop.permute.xlu0 %1152
    %1154 = vrot.lane.b32.xlu0 %v1134, 127
    %v1155 = vpop.permute.xlu0 %1154
    %1156 = vrot.lane.b32.xlu0 %v1135, 127
    %v1157 = vpop.permute.xlu0 %1156
    %1158 = vrot.lane.b32.xlu0 %v1136, 127
    %v1159 = vpop.permute.xlu0 %1158
    %1160 = vrot.lane.b32.xlu0 %v1137, 127
    %v1161 = vpop.permute.xlu0 %1160
    %v1170 = vadd.f32 %v1020, %v1147
    %v1171 = vadd.f32 %v1021, %v1149
    %v1172 = vadd.f32 %v1022, %v1151
    %v1173 = vadd.f32 %v1023, %v1153
    %v1174 = vadd.f32 %v1024, %v1155
    %v1175 = vadd.f32 %v1025, %v1157
    %v1176 = vadd.f32 %v1026, %v1159
    %v1177 = vadd.f32 %v1027, %v1161
    %s1178 = sld [smem:[#allocation7 + $0x8]]
    %v1179 = vstv %s1178
    %v1180 = vmul.f32 %v966, %v1179
    %v1181 = vmul.f32 %v967, %v1179
    %v1182 = vmul.f32 %v968, %v1179
    %v1183 = vmul.f32 %v969, %v1179
    %v1184 = vmul.f32 %v970, %v1179
    %v1185 = vmul.f32 %v971, %v1179
    %v1186 = vmul.f32 %v972, %v1179
    %v1187 = vmul.f32 %v973, %v1179
    %1196 = vrot.lane.b32.xlu0 %v1180, 126
    %v1197 = vpop.permute.xlu0 %1196
    %1198 = vrot.lane.b32.xlu0 %v1181, 126
    %v1199 = vpop.permute.xlu0 %1198
    %1200 = vrot.lane.b32.xlu0 %v1182, 126
    %v1201 = vpop.permute.xlu0 %1200
    %1202 = vrot.lane.b32.xlu0 %v1183, 126
    %v1203 = vpop.permute.xlu0 %1202
    %1204 = vrot.lane.b32.xlu0 %v1184, 126
    %v1205 = vpop.permute.xlu0 %1204
    %1206 = vrot.lane.b32.xlu0 %v1185, 126
    %v1207 = vpop.permute.xlu0 %1206
    %1208 = vrot.lane.b32.xlu0 %v1186, 126
    %v1209 = vpop.permute.xlu0 %1208
    %1210 = vrot.lane.b32.xlu0 %v1187, 126
    %v1211 = vpop.permute.xlu0 %1210
    %v1220 = vadd.f32 %v1070, %v1197
    %v1221 = vadd.f32 %v1071, %v1199
    %v1222 = vadd.f32 %v1072, %v1201
    %v1223 = vadd.f32 %v1073, %v1203
    %v1224 = vadd.f32 %v1074, %v1205
    %v1225 = vadd.f32 %v1075, %v1207
    %v1226 = vadd.f32 %v1076, %v1209
    %v1227 = vadd.f32 %v1077, %v1211
    %s1228 = sld [smem:[#allocation7 + $0x23]]
    %v1229 = vstv %s1228
    %v1230 = vmul.f32 %v966, %v1229
    %v1231 = vmul.f32 %v967, %v1229
    %v1232 = vmul.f32 %v968, %v1229
    %v1233 = vmul.f32 %v969, %v1229
    %v1234 = vmul.f32 %v970, %v1229
    %v1235 = vmul.f32 %v971, %v1229
    %v1236 = vmul.f32 %v972, %v1229
    %v1237 = vmul.f32 %v973, %v1229
    %1246 = vrot.lane.b32.xlu0 %v1230, 126
    %v1247 = vpop.permute.xlu0 %1246
    %1248 = vrot.lane.b32.xlu0 %v1231, 126
    %v1249 = vpop.permute.xlu0 %1248
    %1250 = vrot.lane.b32.xlu0 %v1232, 126
    %v1251 = vpop.permute.xlu0 %1250
    %1252 = vrot.lane.b32.xlu0 %v1233, 126
    %v1253 = vpop.permute.xlu0 %1252
    %1254 = vrot.lane.b32.xlu0 %v1234, 126
    %v1255 = vpop.permute.xlu0 %1254
    %1256 = vrot.lane.b32.xlu0 %v1235, 126
    %v1257 = vpop.permute.xlu0 %1256
    %1258 = vrot.lane.b32.xlu0 %v1236, 126
    %v1259 = vpop.permute.xlu0 %1258
    %1260 = vrot.lane.b32.xlu0 %v1237, 126
    %v1261 = vpop.permute.xlu0 %1260
    %v1270 = vadd.f32 %v1120, %v1247
    %v1271 = vadd.f32 %v1121, %v1249
    %v1272 = vadd.f32 %v1122, %v1251
    %v1273 = vadd.f32 %v1123, %v1253
    %v1274 = vadd.f32 %v1124, %v1255
    %v1275 = vadd.f32 %v1125, %v1257
    %v1276 = vadd.f32 %v1126, %v1259
    %v1277 = vadd.f32 %v1127, %v1261
    %s1278 = sld [smem:[#allocation7 + $0x3e]]
    %v1279 = vstv %s1278
    %v1280 = vmul.f32 %v966, %v1279
    %v1281 = vmul.f32 %v967, %v1279
    %v1282 = vmul.f32 %v968, %v1279
    %v1283 = vmul.f32 %v969, %v1279
    %v1284 = vmul.f32 %v970, %v1279
    %v1285 = vmul.f32 %v971, %v1279
    %v1286 = vmul.f32 %v972, %v1279
    %v1287 = vmul.f32 %v973, %v1279
    %1296 = vrot.lane.b32.xlu0 %v1280, 126
    %v1297 = vpop.permute.xlu0 %1296
    %1298 = vrot.lane.b32.xlu0 %v1281, 126
    %v1299 = vpop.permute.xlu0 %1298
    %1300 = vrot.lane.b32.xlu0 %v1282, 126
    %v1301 = vpop.permute.xlu0 %1300
    %1302 = vrot.lane.b32.xlu0 %v1283, 126
    %v1303 = vpop.permute.xlu0 %1302
    %1304 = vrot.lane.b32.xlu0 %v1284, 126
    %v1305 = vpop.permute.xlu0 %1304
    %1306 = vrot.lane.b32.xlu0 %v1285, 126
    %v1307 = vpop.permute.xlu0 %1306
    %1308 = vrot.lane.b32.xlu0 %v1286, 126
    %v1309 = vpop.permute.xlu0 %1308
    %1310 = vrot.lane.b32.xlu0 %v1287, 126
    %v1311 = vpop.permute.xlu0 %1310
    %v1320 = vadd.f32 %v1170, %v1297
    %v1321 = vadd.f32 %v1171, %v1299
    %v1322 = vadd.f32 %v1172, %v1301
    %v1323 = vadd.f32 %v1173, %v1303
    %v1324 = vadd.f32 %v1174, %v1305
    %v1325 = vadd.f32 %v1175, %v1307
    %v1326 = vadd.f32 %v1176, %v1309
    %v1327 = vadd.f32 %v1177, %v1311
    %s1328 = sadd.s32 %s230, 72
    %s1329 = scalar_lea.vmem [#allocation2], %s1328
    %v1330 = vld [vmem:[%s1329] sm:$0xff]
    %v1331 = vld [vmem:[%s1329 + $0x8] sm:$0xff]
    %v1332 = vld [vmem:[%s1329 + $0x10] sm:$0xff]
    %v1333 = vld [vmem:[%s1329 + $0x18] sm:$0xff]
    %v1334 = vld [vmem:[%s1329 + $0x20] sm:$0xff]
    %v1335 = vld [vmem:[%s1329 + $0x28] sm:$0xff]
    %v1336 = vld [vmem:[%s1329 + $0x30] sm:$0xff]
    %v1337 = vld [vmem:[%s1329 + $0x38] sm:$0xff]
    %s1338 = sld [smem:[#allocation7 + $0x9]]
    %v1339 = vstv %s1338
    %v1340 = vmul.f32 %v1330, %v1339
    %v1341 = vmul.f32 %v1331, %v1339
    %v1342 = vmul.f32 %v1332, %v1339
    %v1343 = vmul.f32 %v1333, %v1339
    %v1344 = vmul.f32 %v1334, %v1339
    %v1345 = vmul.f32 %v1335, %v1339
    %v1346 = vmul.f32 %v1336, %v1339
    %v1347 = vmul.f32 %v1337, %v1339
    %v1348 = vadd.f32 %v1220, %v1340
    %v1349 = vadd.f32 %v1221, %v1341
    %v1350 = vadd.f32 %v1222, %v1342
    %v1351 = vadd.f32 %v1223, %v1343
    %v1352 = vadd.f32 %v1224, %v1344
    %v1353 = vadd.f32 %v1225, %v1345
    %v1354 = vadd.f32 %v1226, %v1346
    %v1355 = vadd.f32 %v1227, %v1347
    %s1356 = sld [smem:[#allocation7 + $0x24]]
    %v1357 = vstv %s1356
    %v1358 = vmul.f32 %v1330, %v1357
    %v1359 = vmul.f32 %v1331, %v1357
    %v1360 = vmul.f32 %v1332, %v1357
    %v1361 = vmul.f32 %v1333, %v1357
    %v1362 = vmul.f32 %v1334, %v1357
    %v1363 = vmul.f32 %v1335, %v1357
    %v1364 = vmul.f32 %v1336, %v1357
    %v1365 = vmul.f32 %v1337, %v1357
    %v1366 = vadd.f32 %v1270, %v1358
    %v1367 = vadd.f32 %v1271, %v1359
    %v1368 = vadd.f32 %v1272, %v1360
    %v1369 = vadd.f32 %v1273, %v1361
    %v1370 = vadd.f32 %v1274, %v1362
    %v1371 = vadd.f32 %v1275, %v1363
    %v1372 = vadd.f32 %v1276, %v1364
    %v1373 = vadd.f32 %v1277, %v1365
    %s1374 = sld [smem:[#allocation7 + $0x3f]]
    %v1375 = vstv %s1374
    %v1376 = vmul.f32 %v1330, %v1375
    %v1377 = vmul.f32 %v1331, %v1375
    %v1378 = vmul.f32 %v1332, %v1375
    %v1379 = vmul.f32 %v1333, %v1375
    %v1380 = vmul.f32 %v1334, %v1375
    %v1381 = vmul.f32 %v1335, %v1375
    %v1382 = vmul.f32 %v1336, %v1375
    %v1383 = vmul.f32 %v1337, %v1375
    %v1384 = vadd.f32 %v1320, %v1376
    %v1385 = vadd.f32 %v1321, %v1377
    %v1386 = vadd.f32 %v1322, %v1378
    %v1387 = vadd.f32 %v1323, %v1379
    %v1388 = vadd.f32 %v1324, %v1380
    %v1389 = vadd.f32 %v1325, %v1381
    %v1390 = vadd.f32 %v1326, %v1382
    %v1391 = vadd.f32 %v1327, %v1383
    %s1392 = sld [smem:[#allocation7 + $0xa]]
    %v1393 = vstv %s1392
    %v1394 = vmul.f32 %v1330, %v1393
    %v1395 = vmul.f32 %v1331, %v1393
    %v1396 = vmul.f32 %v1332, %v1393
    %v1397 = vmul.f32 %v1333, %v1393
    %v1398 = vmul.f32 %v1334, %v1393
    %v1399 = vmul.f32 %v1335, %v1393
    %v1400 = vmul.f32 %v1336, %v1393
    %v1401 = vmul.f32 %v1337, %v1393
    %1410 = vrot.lane.b32.xlu0 %v1394, 127
    %v1411 = vpop.permute.xlu0 %1410
    %1412 = vrot.lane.b32.xlu0 %v1395, 127
    %v1413 = vpop.permute.xlu0 %1412
    %1414 = vrot.lane.b32.xlu0 %v1396, 127
    %v1415 = vpop.permute.xlu0 %1414
    %1416 = vrot.lane.b32.xlu0 %v1397, 127
    %v1417 = vpop.permute.xlu0 %1416
    %1418 = vrot.lane.b32.xlu0 %v1398, 127
    %v1419 = vpop.permute.xlu0 %1418
    %1420 = vrot.lane.b32.xlu0 %v1399, 127
    %v1421 = vpop.permute.xlu0 %1420
    %1422 = vrot.lane.b32.xlu0 %v1400, 127
    %v1423 = vpop.permute.xlu0 %1422
    %1424 = vrot.lane.b32.xlu0 %v1401, 127
    %v1425 = vpop.permute.xlu0 %1424
    %v1434 = vadd.f32 %v1348, %v1411
    %v1435 = vadd.f32 %v1349, %v1413
    %v1436 = vadd.f32 %v1350, %v1415
    %v1437 = vadd.f32 %v1351, %v1417
    %v1438 = vadd.f32 %v1352, %v1419
    %v1439 = vadd.f32 %v1353, %v1421
    %v1440 = vadd.f32 %v1354, %v1423
    %v1441 = vadd.f32 %v1355, %v1425
    %s1442 = sld [smem:[#allocation7 + $0x25]]
    %v1443 = vstv %s1442
    %v1444 = vmul.f32 %v1330, %v1443
    %v1445 = vmul.f32 %v1331, %v1443
    %v1446 = vmul.f32 %v1332, %v1443
    %v1447 = vmul.f32 %v1333, %v1443
    %v1448 = vmul.f32 %v1334, %v1443
    %v1449 = vmul.f32 %v1335, %v1443
    %v1450 = vmul.f32 %v1336, %v1443
    %v1451 = vmul.f32 %v1337, %v1443
    %1460 = vrot.lane.b32.xlu0 %v1444, 127
    %v1461 = vpop.permute.xlu0 %1460
    %1462 = vrot.lane.b32.xlu0 %v1445, 127
    %v1463 = vpop.permute.xlu0 %1462
    %1464 = vrot.lane.b32.xlu0 %v1446, 127
    %v1465 = vpop.permute.xlu0 %1464
    %1466 = vrot.lane.b32.xlu0 %v1447, 127
    %v1467 = vpop.permute.xlu0 %1466
    %1468 = vrot.lane.b32.xlu0 %v1448, 127
    %v1469 = vpop.permute.xlu0 %1468
    %1470 = vrot.lane.b32.xlu0 %v1449, 127
    %v1471 = vpop.permute.xlu0 %1470
    %1472 = vrot.lane.b32.xlu0 %v1450, 127
    %v1473 = vpop.permute.xlu0 %1472
    %1474 = vrot.lane.b32.xlu0 %v1451, 127
    %v1475 = vpop.permute.xlu0 %1474
    %v1484 = vadd.f32 %v1366, %v1461
    %v1485 = vadd.f32 %v1367, %v1463
    %v1486 = vadd.f32 %v1368, %v1465
    %v1487 = vadd.f32 %v1369, %v1467
    %v1488 = vadd.f32 %v1370, %v1469
    %v1489 = vadd.f32 %v1371, %v1471
    %v1490 = vadd.f32 %v1372, %v1473
    %v1491 = vadd.f32 %v1373, %v1475
    %s1492 = sld [smem:[#allocation7 + $0x40]]
    %v1493 = vstv %s1492
    %v1494 = vmul.f32 %v1330, %v1493
    %v1495 = vmul.f32 %v1331, %v1493
    %v1496 = vmul.f32 %v1332, %v1493
    %v1497 = vmul.f32 %v1333, %v1493
    %v1498 = vmul.f32 %v1334, %v1493
    %v1499 = vmul.f32 %v1335, %v1493
    %v1500 = vmul.f32 %v1336, %v1493
    %v1501 = vmul.f32 %v1337, %v1493
    %1510 = vrot.lane.b32.xlu0 %v1494, 127
    %v1511 = vpop.permute.xlu0 %1510
    %1512 = vrot.lane.b32.xlu0 %v1495, 127
    %v1513 = vpop.permute.xlu0 %1512
    %1514 = vrot.lane.b32.xlu0 %v1496, 127
    %v1515 = vpop.permute.xlu0 %1514
    %1516 = vrot.lane.b32.xlu0 %v1497, 127
    %v1517 = vpop.permute.xlu0 %1516
    %1518 = vrot.lane.b32.xlu0 %v1498, 127
    %v1519 = vpop.permute.xlu0 %1518
    %1520 = vrot.lane.b32.xlu0 %v1499, 127
    %v1521 = vpop.permute.xlu0 %1520
    %1522 = vrot.lane.b32.xlu0 %v1500, 127
    %v1523 = vpop.permute.xlu0 %1522
    %1524 = vrot.lane.b32.xlu0 %v1501, 127
    %v1525 = vpop.permute.xlu0 %1524
    %v1534 = vadd.f32 %v1384, %v1511
    %v1535 = vadd.f32 %v1385, %v1513
    %v1536 = vadd.f32 %v1386, %v1515
    %v1537 = vadd.f32 %v1387, %v1517
    %v1538 = vadd.f32 %v1388, %v1519
    %v1539 = vadd.f32 %v1389, %v1521
    %v1540 = vadd.f32 %v1390, %v1523
    %v1541 = vadd.f32 %v1391, %v1525
    %s1542 = sld [smem:[#allocation7 + $0xb]]
    %v1543 = vstv %s1542
    %v1544 = vmul.f32 %v1330, %v1543
    %v1545 = vmul.f32 %v1331, %v1543
    %v1546 = vmul.f32 %v1332, %v1543
    %v1547 = vmul.f32 %v1333, %v1543
    %v1548 = vmul.f32 %v1334, %v1543
    %v1549 = vmul.f32 %v1335, %v1543
    %v1550 = vmul.f32 %v1336, %v1543
    %v1551 = vmul.f32 %v1337, %v1543
    %1560 = vrot.lane.b32.xlu0 %v1544, 126
    %v1561 = vpop.permute.xlu0 %1560
    %1562 = vrot.lane.b32.xlu0 %v1545, 126
    %v1563 = vpop.permute.xlu0 %1562
    %1564 = vrot.lane.b32.xlu0 %v1546, 126
    %v1565 = vpop.permute.xlu0 %1564
    %1566 = vrot.lane.b32.xlu0 %v1547, 126
    %v1567 = vpop.permute.xlu0 %1566
    %1568 = vrot.lane.b32.xlu0 %v1548, 126
    %v1569 = vpop.permute.xlu0 %1568
    %1570 = vrot.lane.b32.xlu0 %v1549, 126
    %v1571 = vpop.permute.xlu0 %1570
    %1572 = vrot.lane.b32.xlu0 %v1550, 126
    %v1573 = vpop.permute.xlu0 %1572
    %1574 = vrot.lane.b32.xlu0 %v1551, 126
    %v1575 = vpop.permute.xlu0 %1574
    %v1584 = vadd.f32 %v1434, %v1561
    %v1585 = vadd.f32 %v1435, %v1563
    %v1586 = vadd.f32 %v1436, %v1565
    %v1587 = vadd.f32 %v1437, %v1567
    %v1588 = vadd.f32 %v1438, %v1569
    %v1589 = vadd.f32 %v1439, %v1571
    %v1590 = vadd.f32 %v1440, %v1573
    %v1591 = vadd.f32 %v1441, %v1575
    %s1592 = sld [smem:[#allocation7 + $0x26]]
    %v1593 = vstv %s1592
    %v1594 = vmul.f32 %v1330, %v1593
    %v1595 = vmul.f32 %v1331, %v1593
    %v1596 = vmul.f32 %v1332, %v1593
    %v1597 = vmul.f32 %v1333, %v1593
    %v1598 = vmul.f32 %v1334, %v1593
    %v1599 = vmul.f32 %v1335, %v1593
    %v1600 = vmul.f32 %v1336, %v1593
    %v1601 = vmul.f32 %v1337, %v1593
    %1610 = vrot.lane.b32.xlu0 %v1594, 126
    %v1611 = vpop.permute.xlu0 %1610
    %1612 = vrot.lane.b32.xlu0 %v1595, 126
    %v1613 = vpop.permute.xlu0 %1612
    %1614 = vrot.lane.b32.xlu0 %v1596, 126
    %v1615 = vpop.permute.xlu0 %1614
    %1616 = vrot.lane.b32.xlu0 %v1597, 126
    %v1617 = vpop.permute.xlu0 %1616
    %1618 = vrot.lane.b32.xlu0 %v1598, 126
    %v1619 = vpop.permute.xlu0 %1618
    %1620 = vrot.lane.b32.xlu0 %v1599, 126
    %v1621 = vpop.permute.xlu0 %1620
    %1622 = vrot.lane.b32.xlu0 %v1600, 126
    %v1623 = vpop.permute.xlu0 %1622
    %1624 = vrot.lane.b32.xlu0 %v1601, 126
    %v1625 = vpop.permute.xlu0 %1624
    %v1634 = vadd.f32 %v1484, %v1611
    %v1635 = vadd.f32 %v1485, %v1613
    %v1636 = vadd.f32 %v1486, %v1615
    %v1637 = vadd.f32 %v1487, %v1617
    %v1638 = vadd.f32 %v1488, %v1619
    %v1639 = vadd.f32 %v1489, %v1621
    %v1640 = vadd.f32 %v1490, %v1623
    %v1641 = vadd.f32 %v1491, %v1625
    %s1642 = sld [smem:[#allocation7 + $0x41]]
    %v1643 = vstv %s1642
    %v1644 = vmul.f32 %v1330, %v1643
    %v1645 = vmul.f32 %v1331, %v1643
    %v1646 = vmul.f32 %v1332, %v1643
    %v1647 = vmul.f32 %v1333, %v1643
    %v1648 = vmul.f32 %v1334, %v1643
    %v1649 = vmul.f32 %v1335, %v1643
    %v1650 = vmul.f32 %v1336, %v1643
    %v1651 = vmul.f32 %v1337, %v1643
    %1660 = vrot.lane.b32.xlu0 %v1644, 126
    %v1661 = vpop.permute.xlu0 %1660
    %1662 = vrot.lane.b32.xlu0 %v1645, 126
    %v1663 = vpop.permute.xlu0 %1662
    %1664 = vrot.lane.b32.xlu0 %v1646, 126
    %v1665 = vpop.permute.xlu0 %1664
    %1666 = vrot.lane.b32.xlu0 %v1647, 126
    %v1667 = vpop.permute.xlu0 %1666
    %1668 = vrot.lane.b32.xlu0 %v1648, 126
    %v1669 = vpop.permute.xlu0 %1668
    %1670 = vrot.lane.b32.xlu0 %v1649, 126
    %v1671 = vpop.permute.xlu0 %1670
    %1672 = vrot.lane.b32.xlu0 %v1650, 126
    %v1673 = vpop.permute.xlu0 %1672
    %1674 = vrot.lane.b32.xlu0 %v1651, 126
    %v1675 = vpop.permute.xlu0 %1674
    %v1684 = vadd.f32 %v1534, %v1661
    %v1685 = vadd.f32 %v1535, %v1663
    %v1686 = vadd.f32 %v1536, %v1665
    %v1687 = vadd.f32 %v1537, %v1667
    %v1688 = vadd.f32 %v1538, %v1669
    %v1689 = vadd.f32 %v1539, %v1671
    %v1690 = vadd.f32 %v1540, %v1673
    %v1691 = vadd.f32 %v1541, %v1675
    %s1692 = sadd.s32 %s600, 72
    %s1693 = scalar_lea.vmem [#allocation2], %s1692
    %v1694 = vld [vmem:[%s1693] sm:$0xff]
    %v1695 = vld [vmem:[%s1693 + $0x8] sm:$0xff]
    %v1696 = vld [vmem:[%s1693 + $0x10] sm:$0xff]
    %v1697 = vld [vmem:[%s1693 + $0x18] sm:$0xff]
    %v1698 = vld [vmem:[%s1693 + $0x20] sm:$0xff]
    %v1699 = vld [vmem:[%s1693 + $0x28] sm:$0xff]
    %v1700 = vld [vmem:[%s1693 + $0x30] sm:$0xff]
    %v1701 = vld [vmem:[%s1693 + $0x38] sm:$0xff]
    %s1702 = sld [smem:[#allocation7 + $0xc]]
    %v1703 = vstv %s1702
    %v1704 = vmul.f32 %v1694, %v1703
    %v1705 = vmul.f32 %v1695, %v1703
    %v1706 = vmul.f32 %v1696, %v1703
    %v1707 = vmul.f32 %v1697, %v1703
    %v1708 = vmul.f32 %v1698, %v1703
    %v1709 = vmul.f32 %v1699, %v1703
    %v1710 = vmul.f32 %v1700, %v1703
    %v1711 = vmul.f32 %v1701, %v1703
    %v1712 = vadd.f32 %v1584, %v1704
    %v1713 = vadd.f32 %v1585, %v1705
    %v1714 = vadd.f32 %v1586, %v1706
    %v1715 = vadd.f32 %v1587, %v1707
    %v1716 = vadd.f32 %v1588, %v1708
    %v1717 = vadd.f32 %v1589, %v1709
    %v1718 = vadd.f32 %v1590, %v1710
    %v1719 = vadd.f32 %v1591, %v1711
    %s1720 = sld [smem:[#allocation7 + $0x27]]
    %v1721 = vstv %s1720
    %v1722 = vmul.f32 %v1694, %v1721
    %v1723 = vmul.f32 %v1695, %v1721
    %v1724 = vmul.f32 %v1696, %v1721
    %v1725 = vmul.f32 %v1697, %v1721
    %v1726 = vmul.f32 %v1698, %v1721
    %v1727 = vmul.f32 %v1699, %v1721
    %v1728 = vmul.f32 %v1700, %v1721
    %v1729 = vmul.f32 %v1701, %v1721
    %v1730 = vadd.f32 %v1634, %v1722
    %v1731 = vadd.f32 %v1635, %v1723
    %v1732 = vadd.f32 %v1636, %v1724
    %v1733 = vadd.f32 %v1637, %v1725
    %v1734 = vadd.f32 %v1638, %v1726
    %v1735 = vadd.f32 %v1639, %v1727
    %v1736 = vadd.f32 %v1640, %v1728
    %v1737 = vadd.f32 %v1641, %v1729
    %s1738 = sld [smem:[#allocation7 + $0x42]]
    %v1739 = vstv %s1738
    %v1740 = vmul.f32 %v1694, %v1739
    %v1741 = vmul.f32 %v1695, %v1739
    %v1742 = vmul.f32 %v1696, %v1739
    %v1743 = vmul.f32 %v1697, %v1739
    %v1744 = vmul.f32 %v1698, %v1739
    %v1745 = vmul.f32 %v1699, %v1739
    %v1746 = vmul.f32 %v1700, %v1739
    %v1747 = vmul.f32 %v1701, %v1739
    %v1748 = vadd.f32 %v1684, %v1740
    %v1749 = vadd.f32 %v1685, %v1741
    %v1750 = vadd.f32 %v1686, %v1742
    %v1751 = vadd.f32 %v1687, %v1743
    %v1752 = vadd.f32 %v1688, %v1744
    %v1753 = vadd.f32 %v1689, %v1745
    %v1754 = vadd.f32 %v1690, %v1746
    %v1755 = vadd.f32 %v1691, %v1747
    %s1756 = sld [smem:[#allocation7 + $0xd]]
    %v1757 = vstv %s1756
    %v1758 = vmul.f32 %v1694, %v1757
    %v1759 = vmul.f32 %v1695, %v1757
    %v1760 = vmul.f32 %v1696, %v1757
    %v1761 = vmul.f32 %v1697, %v1757
    %v1762 = vmul.f32 %v1698, %v1757
    %v1763 = vmul.f32 %v1699, %v1757
    %v1764 = vmul.f32 %v1700, %v1757
    %v1765 = vmul.f32 %v1701, %v1757
    %1774 = vrot.lane.b32.xlu0 %v1758, 127
    %v1775 = vpop.permute.xlu0 %1774
    %1776 = vrot.lane.b32.xlu0 %v1759, 127
    %v1777 = vpop.permute.xlu0 %1776
    %1778 = vrot.lane.b32.xlu0 %v1760, 127
    %v1779 = vpop.permute.xlu0 %1778
    %1780 = vrot.lane.b32.xlu0 %v1761, 127
    %v1781 = vpop.permute.xlu0 %1780
    %1782 = vrot.lane.b32.xlu0 %v1762, 127
    %v1783 = vpop.permute.xlu0 %1782
    %1784 = vrot.lane.b32.xlu0 %v1763, 127
    %v1785 = vpop.permute.xlu0 %1784
    %1786 = vrot.lane.b32.xlu0 %v1764, 127
    %v1787 = vpop.permute.xlu0 %1786
    %1788 = vrot.lane.b32.xlu0 %v1765, 127
    %v1789 = vpop.permute.xlu0 %1788
    %v1798 = vadd.f32 %v1712, %v1775
    %v1799 = vadd.f32 %v1713, %v1777
    %v1800 = vadd.f32 %v1714, %v1779
    %v1801 = vadd.f32 %v1715, %v1781
    %v1802 = vadd.f32 %v1716, %v1783
    %v1803 = vadd.f32 %v1717, %v1785
    %v1804 = vadd.f32 %v1718, %v1787
    %v1805 = vadd.f32 %v1719, %v1789
    %s1806 = sld [smem:[#allocation7 + $0x28]]
    %v1807 = vstv %s1806
    %v1808 = vmul.f32 %v1694, %v1807
    %v1809 = vmul.f32 %v1695, %v1807
    %v1810 = vmul.f32 %v1696, %v1807
    %v1811 = vmul.f32 %v1697, %v1807
    %v1812 = vmul.f32 %v1698, %v1807
    %v1813 = vmul.f32 %v1699, %v1807
    %v1814 = vmul.f32 %v1700, %v1807
    %v1815 = vmul.f32 %v1701, %v1807
    %1824 = vrot.lane.b32.xlu0 %v1808, 127
    %v1825 = vpop.permute.xlu0 %1824
    %1826 = vrot.lane.b32.xlu0 %v1809, 127
    %v1827 = vpop.permute.xlu0 %1826
    %1828 = vrot.lane.b32.xlu0 %v1810, 127
    %v1829 = vpop.permute.xlu0 %1828
    %1830 = vrot.lane.b32.xlu0 %v1811, 127
    %v1831 = vpop.permute.xlu0 %1830
    %1832 = vrot.lane.b32.xlu0 %v1812, 127
    %v1833 = vpop.permute.xlu0 %1832
    %1834 = vrot.lane.b32.xlu0 %v1813, 127
    %v1835 = vpop.permute.xlu0 %1834
    %1836 = vrot.lane.b32.xlu0 %v1814, 127
    %v1837 = vpop.permute.xlu0 %1836
    %1838 = vrot.lane.b32.xlu0 %v1815, 127
    %v1839 = vpop.permute.xlu0 %1838
    %v1848 = vadd.f32 %v1730, %v1825
    %v1849 = vadd.f32 %v1731, %v1827
    %v1850 = vadd.f32 %v1732, %v1829
    %v1851 = vadd.f32 %v1733, %v1831
    %v1852 = vadd.f32 %v1734, %v1833
    %v1853 = vadd.f32 %v1735, %v1835
    %v1854 = vadd.f32 %v1736, %v1837
    %v1855 = vadd.f32 %v1737, %v1839
    %s1856 = sld [smem:[#allocation7 + $0x43]]
    %v1857 = vstv %s1856
    %v1858 = vmul.f32 %v1694, %v1857
    %v1859 = vmul.f32 %v1695, %v1857
    %v1860 = vmul.f32 %v1696, %v1857
    %v1861 = vmul.f32 %v1697, %v1857
    %v1862 = vmul.f32 %v1698, %v1857
    %v1863 = vmul.f32 %v1699, %v1857
    %v1864 = vmul.f32 %v1700, %v1857
    %v1865 = vmul.f32 %v1701, %v1857
    %1874 = vrot.lane.b32.xlu0 %v1858, 127
    %v1875 = vpop.permute.xlu0 %1874
    %1876 = vrot.lane.b32.xlu0 %v1859, 127
    %v1877 = vpop.permute.xlu0 %1876
    %1878 = vrot.lane.b32.xlu0 %v1860, 127
    %v1879 = vpop.permute.xlu0 %1878
    %1880 = vrot.lane.b32.xlu0 %v1861, 127
    %v1881 = vpop.permute.xlu0 %1880
    %1882 = vrot.lane.b32.xlu0 %v1862, 127
    %v1883 = vpop.permute.xlu0 %1882
    %1884 = vrot.lane.b32.xlu0 %v1863, 127
    %v1885 = vpop.permute.xlu0 %1884
    %1886 = vrot.lane.b32.xlu0 %v1864, 127
    %v1887 = vpop.permute.xlu0 %1886
    %1888 = vrot.lane.b32.xlu0 %v1865, 127
    %v1889 = vpop.permute.xlu0 %1888
    %v1898 = vadd.f32 %v1748, %v1875
    %v1899 = vadd.f32 %v1749, %v1877
    %v1900 = vadd.f32 %v1750, %v1879
    %v1901 = vadd.f32 %v1751, %v1881
    %v1902 = vadd.f32 %v1752, %v1883
    %v1903 = vadd.f32 %v1753, %v1885
    %v1904 = vadd.f32 %v1754, %v1887
    %v1905 = vadd.f32 %v1755, %v1889
    %s1906 = sld [smem:[#allocation7 + $0xe]]
    %v1907 = vstv %s1906
    %v1908 = vmul.f32 %v1694, %v1907
    %v1909 = vmul.f32 %v1695, %v1907
    %v1910 = vmul.f32 %v1696, %v1907
    %v1911 = vmul.f32 %v1697, %v1907
    %v1912 = vmul.f32 %v1698, %v1907
    %v1913 = vmul.f32 %v1699, %v1907
    %v1914 = vmul.f32 %v1700, %v1907
    %v1915 = vmul.f32 %v1701, %v1907
    %1924 = vrot.lane.b32.xlu0 %v1908, 126
    %v1925 = vpop.permute.xlu0 %1924
    %1926 = vrot.lane.b32.xlu0 %v1909, 126
    %v1927 = vpop.permute.xlu0 %1926
    %1928 = vrot.lane.b32.xlu0 %v1910, 126
    %v1929 = vpop.permute.xlu0 %1928
    %1930 = vrot.lane.b32.xlu0 %v1911, 126
    %v1931 = vpop.permute.xlu0 %1930
    %1932 = vrot.lane.b32.xlu0 %v1912, 126
    %v1933 = vpop.permute.xlu0 %1932
    %1934 = vrot.lane.b32.xlu0 %v1913, 126
    %v1935 = vpop.permute.xlu0 %1934
    %1936 = vrot.lane.b32.xlu0 %v1914, 126
    %v1937 = vpop.permute.xlu0 %1936
    %1938 = vrot.lane.b32.xlu0 %v1915, 126
    %v1939 = vpop.permute.xlu0 %1938
    %v1948 = vadd.f32 %v1798, %v1925
    %v1949 = vadd.f32 %v1799, %v1927
    %v1950 = vadd.f32 %v1800, %v1929
    %v1951 = vadd.f32 %v1801, %v1931
    %v1952 = vadd.f32 %v1802, %v1933
    %v1953 = vadd.f32 %v1803, %v1935
    %v1954 = vadd.f32 %v1804, %v1937
    %v1955 = vadd.f32 %v1805, %v1939
    %s1956 = sld [smem:[#allocation7 + $0x29]]
    %v1957 = vstv %s1956
    %v1958 = vmul.f32 %v1694, %v1957
    %v1959 = vmul.f32 %v1695, %v1957
    %v1960 = vmul.f32 %v1696, %v1957
    %v1961 = vmul.f32 %v1697, %v1957
    %v1962 = vmul.f32 %v1698, %v1957
    %v1963 = vmul.f32 %v1699, %v1957
    %v1964 = vmul.f32 %v1700, %v1957
    %v1965 = vmul.f32 %v1701, %v1957
    %1974 = vrot.lane.b32.xlu0 %v1958, 126
    %v1975 = vpop.permute.xlu0 %1974
    %1976 = vrot.lane.b32.xlu0 %v1959, 126
    %v1977 = vpop.permute.xlu0 %1976
    %1978 = vrot.lane.b32.xlu0 %v1960, 126
    %v1979 = vpop.permute.xlu0 %1978
    %1980 = vrot.lane.b32.xlu0 %v1961, 126
    %v1981 = vpop.permute.xlu0 %1980
    %1982 = vrot.lane.b32.xlu0 %v1962, 126
    %v1983 = vpop.permute.xlu0 %1982
    %1984 = vrot.lane.b32.xlu0 %v1963, 126
    %v1985 = vpop.permute.xlu0 %1984
    %1986 = vrot.lane.b32.xlu0 %v1964, 126
    %v1987 = vpop.permute.xlu0 %1986
    %1988 = vrot.lane.b32.xlu0 %v1965, 126
    %v1989 = vpop.permute.xlu0 %1988
    %v1998 = vadd.f32 %v1848, %v1975
    %v1999 = vadd.f32 %v1849, %v1977
    %v2000 = vadd.f32 %v1850, %v1979
    %v2001 = vadd.f32 %v1851, %v1981
    %v2002 = vadd.f32 %v1852, %v1983
    %v2003 = vadd.f32 %v1853, %v1985
    %v2004 = vadd.f32 %v1854, %v1987
    %v2005 = vadd.f32 %v1855, %v1989
    %s2006 = sld [smem:[#allocation7 + $0x44]]
    %v2007 = vstv %s2006
    %v2008 = vmul.f32 %v1694, %v2007
    %v2009 = vmul.f32 %v1695, %v2007
    %v2010 = vmul.f32 %v1696, %v2007
    %v2011 = vmul.f32 %v1697, %v2007
    %v2012 = vmul.f32 %v1698, %v2007
    %v2013 = vmul.f32 %v1699, %v2007
    %v2014 = vmul.f32 %v1700, %v2007
    %v2015 = vmul.f32 %v1701, %v2007
    %2024 = vrot.lane.b32.xlu0 %v2008, 126
    %v2025 = vpop.permute.xlu0 %2024
    %2026 = vrot.lane.b32.xlu0 %v2009, 126
    %v2027 = vpop.permute.xlu0 %2026
    %2028 = vrot.lane.b32.xlu0 %v2010, 126
    %v2029 = vpop.permute.xlu0 %2028
    %2030 = vrot.lane.b32.xlu0 %v2011, 126
    %v2031 = vpop.permute.xlu0 %2030
    %2032 = vrot.lane.b32.xlu0 %v2012, 126
    %v2033 = vpop.permute.xlu0 %2032
    %2034 = vrot.lane.b32.xlu0 %v2013, 126
    %v2035 = vpop.permute.xlu0 %2034
    %2036 = vrot.lane.b32.xlu0 %v2014, 126
    %v2037 = vpop.permute.xlu0 %2036
    %2038 = vrot.lane.b32.xlu0 %v2015, 126
    %v2039 = vpop.permute.xlu0 %2038
    %v2048 = vadd.f32 %v1898, %v2025
    %v2049 = vadd.f32 %v1899, %v2027
    %v2050 = vadd.f32 %v1900, %v2029
    %v2051 = vadd.f32 %v1901, %v2031
    %v2052 = vadd.f32 %v1902, %v2033
    %v2053 = vadd.f32 %v1903, %v2035
    %v2054 = vadd.f32 %v1904, %v2037
    %v2055 = vadd.f32 %v1905, %v2039
    %s2056 = sadd.s32 %s964, 72
    %s2057 = scalar_lea.vmem [#allocation2], %s2056
    %v2058 = vld [vmem:[%s2057] sm:$0xff]
    %v2059 = vld [vmem:[%s2057 + $0x8] sm:$0xff]
    %v2060 = vld [vmem:[%s2057 + $0x10] sm:$0xff]
    %v2061 = vld [vmem:[%s2057 + $0x18] sm:$0xff]
    %v2062 = vld [vmem:[%s2057 + $0x20] sm:$0xff]
    %v2063 = vld [vmem:[%s2057 + $0x28] sm:$0xff]
    %v2064 = vld [vmem:[%s2057 + $0x30] sm:$0xff]
    %v2065 = vld [vmem:[%s2057 + $0x38] sm:$0xff]
    %s2066 = sld [smem:[#allocation7 + $0xf]]
    %v2067 = vstv %s2066
    %v2068 = vmul.f32 %v2058, %v2067
    %v2069 = vmul.f32 %v2059, %v2067
    %v2070 = vmul.f32 %v2060, %v2067
    %v2071 = vmul.f32 %v2061, %v2067
    %v2072 = vmul.f32 %v2062, %v2067
    %v2073 = vmul.f32 %v2063, %v2067
    %v2074 = vmul.f32 %v2064, %v2067
    %v2075 = vmul.f32 %v2065, %v2067
    %v2076 = vadd.f32 %v1948, %v2068
    %v2077 = vadd.f32 %v1949, %v2069
    %v2078 = vadd.f32 %v1950, %v2070
    %v2079 = vadd.f32 %v1951, %v2071
    %v2080 = vadd.f32 %v1952, %v2072
    %v2081 = vadd.f32 %v1953, %v2073
    %v2082 = vadd.f32 %v1954, %v2074
    %v2083 = vadd.f32 %v1955, %v2075
    %s2084 = sld [smem:[#allocation7 + $0x2a]]
    %v2085 = vstv %s2084
    %v2086 = vmul.f32 %v2058, %v2085
    %v2087 = vmul.f32 %v2059, %v2085
    %v2088 = vmul.f32 %v2060, %v2085
    %v2089 = vmul.f32 %v2061, %v2085
    %v2090 = vmul.f32 %v2062, %v2085
    %v2091 = vmul.f32 %v2063, %v2085
    %v2092 = vmul.f32 %v2064, %v2085
    %v2093 = vmul.f32 %v2065, %v2085
    %v2094 = vadd.f32 %v1998, %v2086
    %v2095 = vadd.f32 %v1999, %v2087
    %v2096 = vadd.f32 %v2000, %v2088
    %v2097 = vadd.f32 %v2001, %v2089
    %v2098 = vadd.f32 %v2002, %v2090
    %v2099 = vadd.f32 %v2003, %v2091
    %v2100 = vadd.f32 %v2004, %v2092
    %v2101 = vadd.f32 %v2005, %v2093
    %s2102 = sld [smem:[#allocation7 + $0x45]]
    %v2103 = vstv %s2102
    %v2104 = vmul.f32 %v2058, %v2103
    %v2105 = vmul.f32 %v2059, %v2103
    %v2106 = vmul.f32 %v2060, %v2103
    %v2107 = vmul.f32 %v2061, %v2103
    %v2108 = vmul.f32 %v2062, %v2103
    %v2109 = vmul.f32 %v2063, %v2103
    %v2110 = vmul.f32 %v2064, %v2103
    %v2111 = vmul.f32 %v2065, %v2103
    %v2112 = vadd.f32 %v2048, %v2104
    %v2113 = vadd.f32 %v2049, %v2105
    %v2114 = vadd.f32 %v2050, %v2106
    %v2115 = vadd.f32 %v2051, %v2107
    %v2116 = vadd.f32 %v2052, %v2108
    %v2117 = vadd.f32 %v2053, %v2109
    %v2118 = vadd.f32 %v2054, %v2110
    %v2119 = vadd.f32 %v2055, %v2111
    %s2120 = sld [smem:[#allocation7 + $0x10]]
    %v2121 = vstv %s2120
    %v2122 = vmul.f32 %v2058, %v2121
    %v2123 = vmul.f32 %v2059, %v2121
    %v2124 = vmul.f32 %v2060, %v2121
    %v2125 = vmul.f32 %v2061, %v2121
    %v2126 = vmul.f32 %v2062, %v2121
    %v2127 = vmul.f32 %v2063, %v2121
    %v2128 = vmul.f32 %v2064, %v2121
    %v2129 = vmul.f32 %v2065, %v2121
    %2138 = vrot.lane.b32.xlu0 %v2122, 127
    %v2139 = vpop.permute.xlu0 %2138
    %2140 = vrot.lane.b32.xlu0 %v2123, 127
    %v2141 = vpop.permute.xlu0 %2140
    %2142 = vrot.lane.b32.xlu0 %v2124, 127
    %v2143 = vpop.permute.xlu0 %2142
    %2144 = vrot.lane.b32.xlu0 %v2125, 127
    %v2145 = vpop.permute.xlu0 %2144
    %2146 = vrot.lane.b32.xlu0 %v2126, 127
    %v2147 = vpop.permute.xlu0 %2146
    %2148 = vrot.lane.b32.xlu0 %v2127, 127
    %v2149 = vpop.permute.xlu0 %2148
    %2150 = vrot.lane.b32.xlu0 %v2128, 127
    %v2151 = vpop.permute.xlu0 %2150
    %2152 = vrot.lane.b32.xlu0 %v2129, 127
    %v2153 = vpop.permute.xlu0 %2152
    %v2162 = vadd.f32 %v2076, %v2139
    %v2163 = vadd.f32 %v2077, %v2141
    %v2164 = vadd.f32 %v2078, %v2143
    %v2165 = vadd.f32 %v2079, %v2145
    %v2166 = vadd.f32 %v2080, %v2147
    %v2167 = vadd.f32 %v2081, %v2149
    %v2168 = vadd.f32 %v2082, %v2151
    %v2169 = vadd.f32 %v2083, %v2153
    %s2170 = sld [smem:[#allocation7 + $0x2b]]
    %v2171 = vstv %s2170
    %v2172 = vmul.f32 %v2058, %v2171
    %v2173 = vmul.f32 %v2059, %v2171
    %v2174 = vmul.f32 %v2060, %v2171
    %v2175 = vmul.f32 %v2061, %v2171
    %v2176 = vmul.f32 %v2062, %v2171
    %v2177 = vmul.f32 %v2063, %v2171
    %v2178 = vmul.f32 %v2064, %v2171
    %v2179 = vmul.f32 %v2065, %v2171
    %2188 = vrot.lane.b32.xlu0 %v2172, 127
    %v2189 = vpop.permute.xlu0 %2188
    %2190 = vrot.lane.b32.xlu0 %v2173, 127
    %v2191 = vpop.permute.xlu0 %2190
    %2192 = vrot.lane.b32.xlu0 %v2174, 127
    %v2193 = vpop.permute.xlu0 %2192
    %2194 = vrot.lane.b32.xlu0 %v2175, 127
    %v2195 = vpop.permute.xlu0 %2194
    %2196 = vrot.lane.b32.xlu0 %v2176, 127
    %v2197 = vpop.permute.xlu0 %2196
    %2198 = vrot.lane.b32.xlu0 %v2177, 127
    %v2199 = vpop.permute.xlu0 %2198
    %2200 = vrot.lane.b32.xlu0 %v2178, 127
    %v2201 = vpop.permute.xlu0 %2200
    %2202 = vrot.lane.b32.xlu0 %v2179, 127
    %v2203 = vpop.permute.xlu0 %2202
    %v2212 = vadd.f32 %v2094, %v2189
    %v2213 = vadd.f32 %v2095, %v2191
    %v2214 = vadd.f32 %v2096, %v2193
    %v2215 = vadd.f32 %v2097, %v2195
    %v2216 = vadd.f32 %v2098, %v2197
    %v2217 = vadd.f32 %v2099, %v2199
    %v2218 = vadd.f32 %v2100, %v2201
    %v2219 = vadd.f32 %v2101, %v2203
    %s2220 = sld [smem:[#allocation7 + $0x46]]
    %v2221 = vstv %s2220
    %v2222 = vmul.f32 %v2058, %v2221
    %v2223 = vmul.f32 %v2059, %v2221
    %v2224 = vmul.f32 %v2060, %v2221
    %v2225 = vmul.f32 %v2061, %v2221
    %v2226 = vmul.f32 %v2062, %v2221
    %v2227 = vmul.f32 %v2063, %v2221
    %v2228 = vmul.f32 %v2064, %v2221
    %v2229 = vmul.f32 %v2065, %v2221
    %2238 = vrot.lane.b32.xlu0 %v2222, 127
    %v2239 = vpop.permute.xlu0 %2238
    %2240 = vrot.lane.b32.xlu0 %v2223, 127
    %v2241 = vpop.permute.xlu0 %2240
    %2242 = vrot.lane.b32.xlu0 %v2224, 127
    %v2243 = vpop.permute.xlu0 %2242
    %2244 = vrot.lane.b32.xlu0 %v2225, 127
    %v2245 = vpop.permute.xlu0 %2244
    %2246 = vrot.lane.b32.xlu0 %v2226, 127
    %v2247 = vpop.permute.xlu0 %2246
    %2248 = vrot.lane.b32.xlu0 %v2227, 127
    %v2249 = vpop.permute.xlu0 %2248
    %2250 = vrot.lane.b32.xlu0 %v2228, 127
    %v2251 = vpop.permute.xlu0 %2250
    %2252 = vrot.lane.b32.xlu0 %v2229, 127
    %v2253 = vpop.permute.xlu0 %2252
    %v2262 = vadd.f32 %v2112, %v2239
    %v2263 = vadd.f32 %v2113, %v2241
    %v2264 = vadd.f32 %v2114, %v2243
    %v2265 = vadd.f32 %v2115, %v2245
    %v2266 = vadd.f32 %v2116, %v2247
    %v2267 = vadd.f32 %v2117, %v2249
    %v2268 = vadd.f32 %v2118, %v2251
    %v2269 = vadd.f32 %v2119, %v2253
    %s2270 = sld [smem:[#allocation7 + $0x11]]
    %v2271 = vstv %s2270
    %v2272 = vmul.f32 %v2058, %v2271
    %v2273 = vmul.f32 %v2059, %v2271
    %v2274 = vmul.f32 %v2060, %v2271
    %v2275 = vmul.f32 %v2061, %v2271
    %v2276 = vmul.f32 %v2062, %v2271
    %v2277 = vmul.f32 %v2063, %v2271
    %v2278 = vmul.f32 %v2064, %v2271
    %v2279 = vmul.f32 %v2065, %v2271
    %2288 = vrot.lane.b32.xlu0 %v2272, 126
    %v2289 = vpop.permute.xlu0 %2288
    %2290 = vrot.lane.b32.xlu0 %v2273, 126
    %v2291 = vpop.permute.xlu0 %2290
    %2292 = vrot.lane.b32.xlu0 %v2274, 126
    %v2293 = vpop.permute.xlu0 %2292
    %2294 = vrot.lane.b32.xlu0 %v2275, 126
    %v2295 = vpop.permute.xlu0 %2294
    %2296 = vrot.lane.b32.xlu0 %v2276, 126
    %v2297 = vpop.permute.xlu0 %2296
    %2298 = vrot.lane.b32.xlu0 %v2277, 126
    %v2299 = vpop.permute.xlu0 %2298
    %2300 = vrot.lane.b32.xlu0 %v2278, 126
    %v2301 = vpop.permute.xlu0 %2300
    %2302 = vrot.lane.b32.xlu0 %v2279, 126
    %v2303 = vpop.permute.xlu0 %2302
    %v2312 = vadd.f32 %v2162, %v2289
    %v2313 = vadd.f32 %v2163, %v2291
    %v2314 = vadd.f32 %v2164, %v2293
    %v2315 = vadd.f32 %v2165, %v2295
    %v2316 = vadd.f32 %v2166, %v2297
    %v2317 = vadd.f32 %v2167, %v2299
    %v2318 = vadd.f32 %v2168, %v2301
    %v2319 = vadd.f32 %v2169, %v2303
    %s2320 = sld [smem:[#allocation7 + $0x2c]]
    %v2321 = vstv %s2320
    %v2322 = vmul.f32 %v2058, %v2321
    %v2323 = vmul.f32 %v2059, %v2321
    %v2324 = vmul.f32 %v2060, %v2321
    %v2325 = vmul.f32 %v2061, %v2321
    %v2326 = vmul.f32 %v2062, %v2321
    %v2327 = vmul.f32 %v2063, %v2321
    %v2328 = vmul.f32 %v2064, %v2321
    %v2329 = vmul.f32 %v2065, %v2321
    %2338 = vrot.lane.b32.xlu0 %v2322, 126
    %v2339 = vpop.permute.xlu0 %2338
    %2340 = vrot.lane.b32.xlu0 %v2323, 126
    %v2341 = vpop.permute.xlu0 %2340
    %2342 = vrot.lane.b32.xlu0 %v2324, 126
    %v2343 = vpop.permute.xlu0 %2342
    %2344 = vrot.lane.b32.xlu0 %v2325, 126
    %v2345 = vpop.permute.xlu0 %2344
    %2346 = vrot.lane.b32.xlu0 %v2326, 126
    %v2347 = vpop.permute.xlu0 %2346
    %2348 = vrot.lane.b32.xlu0 %v2327, 126
    %v2349 = vpop.permute.xlu0 %2348
    %2350 = vrot.lane.b32.xlu0 %v2328, 126
    %v2351 = vpop.permute.xlu0 %2350
    %2352 = vrot.lane.b32.xlu0 %v2329, 126
    %v2353 = vpop.permute.xlu0 %2352
    %v2362 = vadd.f32 %v2212, %v2339
    %v2363 = vadd.f32 %v2213, %v2341
    %v2364 = vadd.f32 %v2214, %v2343
    %v2365 = vadd.f32 %v2215, %v2345
    %v2366 = vadd.f32 %v2216, %v2347
    %v2367 = vadd.f32 %v2217, %v2349
    %v2368 = vadd.f32 %v2218, %v2351
    %v2369 = vadd.f32 %v2219, %v2353
    %s2370 = sld [smem:[#allocation7 + $0x47]]
    %v2371 = vstv %s2370
    %v2372 = vmul.f32 %v2058, %v2371
    %v2373 = vmul.f32 %v2059, %v2371
    %v2374 = vmul.f32 %v2060, %v2371
    %v2375 = vmul.f32 %v2061, %v2371
    %v2376 = vmul.f32 %v2062, %v2371
    %v2377 = vmul.f32 %v2063, %v2371
    %v2378 = vmul.f32 %v2064, %v2371
    %v2379 = vmul.f32 %v2065, %v2371
    %2388 = vrot.lane.b32.xlu0 %v2372, 126
    %v2389 = vpop.permute.xlu0 %2388
    %2390 = vrot.lane.b32.xlu0 %v2373, 126
    %v2391 = vpop.permute.xlu0 %2390
    %2392 = vrot.lane.b32.xlu0 %v2374, 126
    %v2393 = vpop.permute.xlu0 %2392
    %2394 = vrot.lane.b32.xlu0 %v2375, 126
    %v2395 = vpop.permute.xlu0 %2394
    %2396 = vrot.lane.b32.xlu0 %v2376, 126
    %v2397 = vpop.permute.xlu0 %2396
    %2398 = vrot.lane.b32.xlu0 %v2377, 126
    %v2399 = vpop.permute.xlu0 %2398
    %2400 = vrot.lane.b32.xlu0 %v2378, 126
    %v2401 = vpop.permute.xlu0 %2400
    %2402 = vrot.lane.b32.xlu0 %v2379, 126
    %v2403 = vpop.permute.xlu0 %2402
    %v2412 = vadd.f32 %v2262, %v2389
    %v2413 = vadd.f32 %v2263, %v2391
    %v2414 = vadd.f32 %v2264, %v2393
    %v2415 = vadd.f32 %v2265, %v2395
    %v2416 = vadd.f32 %v2266, %v2397
    %v2417 = vadd.f32 %v2267, %v2399
    %v2418 = vadd.f32 %v2268, %v2401
    %v2419 = vadd.f32 %v2269, %v2403
    %s2420 = sadd.s32 %s230, 144
    %s2421 = scalar_lea.vmem [#allocation2], %s2420
    %v2422 = vld [vmem:[%s2421] sm:$0xff]
    %v2423 = vld [vmem:[%s2421 + $0x8] sm:$0xff]
    %v2424 = vld [vmem:[%s2421 + $0x10] sm:$0xff]
    %v2425 = vld [vmem:[%s2421 + $0x18] sm:$0xff]
    %v2426 = vld [vmem:[%s2421 + $0x20] sm:$0xff]
    %v2427 = vld [vmem:[%s2421 + $0x28] sm:$0xff]
    %v2428 = vld [vmem:[%s2421 + $0x30] sm:$0xff]
    %v2429 = vld [vmem:[%s2421 + $0x38] sm:$0xff]
    %s2430 = sld [smem:[#allocation7 + $0x12]]
    %v2431 = vstv %s2430
    %v2432 = vmul.f32 %v2422, %v2431
    %v2433 = vmul.f32 %v2423, %v2431
    %v2434 = vmul.f32 %v2424, %v2431
    %v2435 = vmul.f32 %v2425, %v2431
    %v2436 = vmul.f32 %v2426, %v2431
    %v2437 = vmul.f32 %v2427, %v2431
    %v2438 = vmul.f32 %v2428, %v2431
    %v2439 = vmul.f32 %v2429, %v2431
    %v2440 = vadd.f32 %v2312, %v2432
    %v2441 = vadd.f32 %v2313, %v2433
    %v2442 = vadd.f32 %v2314, %v2434
    %v2443 = vadd.f32 %v2315, %v2435
    %v2444 = vadd.f32 %v2316, %v2436
    %v2445 = vadd.f32 %v2317, %v2437
    %v2446 = vadd.f32 %v2318, %v2438
    %v2447 = vadd.f32 %v2319, %v2439
    %s2448 = sld [smem:[#allocation7 + $0x2d]]
    %v2449 = vstv %s2448
    %v2450 = vmul.f32 %v2422, %v2449
    %v2451 = vmul.f32 %v2423, %v2449
    %v2452 = vmul.f32 %v2424, %v2449
    %v2453 = vmul.f32 %v2425, %v2449
    %v2454 = vmul.f32 %v2426, %v2449
    %v2455 = vmul.f32 %v2427, %v2449
    %v2456 = vmul.f32 %v2428, %v2449
    %v2457 = vmul.f32 %v2429, %v2449
    %v2458 = vadd.f32 %v2362, %v2450
    %v2459 = vadd.f32 %v2363, %v2451
    %v2460 = vadd.f32 %v2364, %v2452
    %v2461 = vadd.f32 %v2365, %v2453
    %v2462 = vadd.f32 %v2366, %v2454
    %v2463 = vadd.f32 %v2367, %v2455
    %v2464 = vadd.f32 %v2368, %v2456
    %v2465 = vadd.f32 %v2369, %v2457
    %s2466 = sld [smem:[#allocation7 + $0x48]]
    %v2467 = vstv %s2466
    %v2468 = vmul.f32 %v2422, %v2467
    %v2469 = vmul.f32 %v2423, %v2467
    %v2470 = vmul.f32 %v2424, %v2467
    %v2471 = vmul.f32 %v2425, %v2467
    %v2472 = vmul.f32 %v2426, %v2467
    %v2473 = vmul.f32 %v2427, %v2467
    %v2474 = vmul.f32 %v2428, %v2467
    %v2475 = vmul.f32 %v2429, %v2467
    %v2476 = vadd.f32 %v2412, %v2468
    %v2477 = vadd.f32 %v2413, %v2469
    %v2478 = vadd.f32 %v2414, %v2470
    %v2479 = vadd.f32 %v2415, %v2471
    %v2480 = vadd.f32 %v2416, %v2472
    %v2481 = vadd.f32 %v2417, %v2473
    %v2482 = vadd.f32 %v2418, %v2474
    %v2483 = vadd.f32 %v2419, %v2475
    %s2484 = sld [smem:[#allocation7 + $0x13]]
    %v2485 = vstv %s2484
    %v2486 = vmul.f32 %v2422, %v2485
    %v2487 = vmul.f32 %v2423, %v2485
    %v2488 = vmul.f32 %v2424, %v2485
    %v2489 = vmul.f32 %v2425, %v2485
    %v2490 = vmul.f32 %v2426, %v2485
    %v2491 = vmul.f32 %v2427, %v2485
    %v2492 = vmul.f32 %v2428, %v2485
    %v2493 = vmul.f32 %v2429, %v2485
    %2502 = vrot.lane.b32.xlu0 %v2486, 127
    %v2503 = vpop.permute.xlu0 %2502
    %2504 = vrot.lane.b32.xlu0 %v2487, 127
    %v2505 = vpop.permute.xlu0 %2504
    %2506 = vrot.lane.b32.xlu0 %v2488, 127
    %v2507 = vpop.permute.xlu0 %2506
    %2508 = vrot.lane.b32.xlu0 %v2489, 127
    %v2509 = vpop.permute.xlu0 %2508
    %2510 = vrot.lane.b32.xlu0 %v2490, 127
    %v2511 = vpop.permute.xlu0 %2510
    %2512 = vrot.lane.b32.xlu0 %v2491, 127
    %v2513 = vpop.permute.xlu0 %2512
    %2514 = vrot.lane.b32.xlu0 %v2492, 127
    %v2515 = vpop.permute.xlu0 %2514
    %2516 = vrot.lane.b32.xlu0 %v2493, 127
    %v2517 = vpop.permute.xlu0 %2516
    %v2526 = vadd.f32 %v2440, %v2503
    %v2527 = vadd.f32 %v2441, %v2505
    %v2528 = vadd.f32 %v2442, %v2507
    %v2529 = vadd.f32 %v2443, %v2509
    %v2530 = vadd.f32 %v2444, %v2511
    %v2531 = vadd.f32 %v2445, %v2513
    %v2532 = vadd.f32 %v2446, %v2515
    %v2533 = vadd.f32 %v2447, %v2517
    %s2534 = sld [smem:[#allocation7 + $0x2e]]
    %v2535 = vstv %s2534
    %v2536 = vmul.f32 %v2422, %v2535
    %v2537 = vmul.f32 %v2423, %v2535
    %v2538 = vmul.f32 %v2424, %v2535
    %v2539 = vmul.f32 %v2425, %v2535
    %v2540 = vmul.f32 %v2426, %v2535
    %v2541 = vmul.f32 %v2427, %v2535
    %v2542 = vmul.f32 %v2428, %v2535
    %v2543 = vmul.f32 %v2429, %v2535
    %2552 = vrot.lane.b32.xlu0 %v2536, 127
    %v2553 = vpop.permute.xlu0 %2552
    %2554 = vrot.lane.b32.xlu0 %v2537, 127
    %v2555 = vpop.permute.xlu0 %2554
    %2556 = vrot.lane.b32.xlu0 %v2538, 127
    %v2557 = vpop.permute.xlu0 %2556
    %2558 = vrot.lane.b32.xlu0 %v2539, 127
    %v2559 = vpop.permute.xlu0 %2558
    %2560 = vrot.lane.b32.xlu0 %v2540, 127
    %v2561 = vpop.permute.xlu0 %2560
    %2562 = vrot.lane.b32.xlu0 %v2541, 127
    %v2563 = vpop.permute.xlu0 %2562
    %2564 = vrot.lane.b32.xlu0 %v2542, 127
    %v2565 = vpop.permute.xlu0 %2564
    %2566 = vrot.lane.b32.xlu0 %v2543, 127
    %v2567 = vpop.permute.xlu0 %2566
    %v2576 = vadd.f32 %v2458, %v2553
    %v2577 = vadd.f32 %v2459, %v2555
    %v2578 = vadd.f32 %v2460, %v2557
    %v2579 = vadd.f32 %v2461, %v2559
    %v2580 = vadd.f32 %v2462, %v2561
    %v2581 = vadd.f32 %v2463, %v2563
    %v2582 = vadd.f32 %v2464, %v2565
    %v2583 = vadd.f32 %v2465, %v2567
    %s2584 = sld [smem:[#allocation7 + $0x49]]
    %v2585 = vstv %s2584
    %v2586 = vmul.f32 %v2422, %v2585
    %v2587 = vmul.f32 %v2423, %v2585
    %v2588 = vmul.f32 %v2424, %v2585
    %v2589 = vmul.f32 %v2425, %v2585
    %v2590 = vmul.f32 %v2426, %v2585
    %v2591 = vmul.f32 %v2427, %v2585
    %v2592 = vmul.f32 %v2428, %v2585
    %v2593 = vmul.f32 %v2429, %v2585
    %2602 = vrot.lane.b32.xlu0 %v2586, 127
    %v2603 = vpop.permute.xlu0 %2602
    %2604 = vrot.lane.b32.xlu0 %v2587, 127
    %v2605 = vpop.permute.xlu0 %2604
    %2606 = vrot.lane.b32.xlu0 %v2588, 127
    %v2607 = vpop.permute.xlu0 %2606
    %2608 = vrot.lane.b32.xlu0 %v2589, 127
    %v2609 = vpop.permute.xlu0 %2608
    %2610 = vrot.lane.b32.xlu0 %v2590, 127
    %v2611 = vpop.permute.xlu0 %2610
    %2612 = vrot.lane.b32.xlu0 %v2591, 127
    %v2613 = vpop.permute.xlu0 %2612
    %2614 = vrot.lane.b32.xlu0 %v2592, 127
    %v2615 = vpop.permute.xlu0 %2614
    %2616 = vrot.lane.b32.xlu0 %v2593, 127
    %v2617 = vpop.permute.xlu0 %2616
    %v2626 = vadd.f32 %v2476, %v2603
    %v2627 = vadd.f32 %v2477, %v2605
    %v2628 = vadd.f32 %v2478, %v2607
    %v2629 = vadd.f32 %v2479, %v2609
    %v2630 = vadd.f32 %v2480, %v2611
    %v2631 = vadd.f32 %v2481, %v2613
    %v2632 = vadd.f32 %v2482, %v2615
    %v2633 = vadd.f32 %v2483, %v2617
    %s2634 = sld [smem:[#allocation7 + $0x14]]
    %v2635 = vstv %s2634
    %v2636 = vmul.f32 %v2422, %v2635
    %v2637 = vmul.f32 %v2423, %v2635
    %v2638 = vmul.f32 %v2424, %v2635
    %v2639 = vmul.f32 %v2425, %v2635
    %v2640 = vmul.f32 %v2426, %v2635
    %v2641 = vmul.f32 %v2427, %v2635
    %v2642 = vmul.f32 %v2428, %v2635
    %v2643 = vmul.f32 %v2429, %v2635
    %2652 = vrot.lane.b32.xlu0 %v2636, 126
    %v2653 = vpop.permute.xlu0 %2652
    %2654 = vrot.lane.b32.xlu0 %v2637, 126
    %v2655 = vpop.permute.xlu0 %2654
    %2656 = vrot.lane.b32.xlu0 %v2638, 126
    %v2657 = vpop.permute.xlu0 %2656
    %2658 = vrot.lane.b32.xlu0 %v2639, 126
    %v2659 = vpop.permute.xlu0 %2658
    %2660 = vrot.lane.b32.xlu0 %v2640, 126
    %v2661 = vpop.permute.xlu0 %2660
    %2662 = vrot.lane.b32.xlu0 %v2641, 126
    %v2663 = vpop.permute.xlu0 %2662
    %2664 = vrot.lane.b32.xlu0 %v2642, 126
    %v2665 = vpop.permute.xlu0 %2664
    %2666 = vrot.lane.b32.xlu0 %v2643, 126
    %v2667 = vpop.permute.xlu0 %2666
    %v2676 = vadd.f32 %v2526, %v2653
    %v2677 = vadd.f32 %v2527, %v2655
    %v2678 = vadd.f32 %v2528, %v2657
    %v2679 = vadd.f32 %v2529, %v2659
    %v2680 = vadd.f32 %v2530, %v2661
    %v2681 = vadd.f32 %v2531, %v2663
    %v2682 = vadd.f32 %v2532, %v2665
    %v2683 = vadd.f32 %v2533, %v2667
    %s2684 = sld [smem:[#allocation7 + $0x2f]]
    %v2685 = vstv %s2684
    %v2686 = vmul.f32 %v2422, %v2685
    %v2687 = vmul.f32 %v2423, %v2685
    %v2688 = vmul.f32 %v2424, %v2685
    %v2689 = vmul.f32 %v2425, %v2685
    %v2690 = vmul.f32 %v2426, %v2685
    %v2691 = vmul.f32 %v2427, %v2685
    %v2692 = vmul.f32 %v2428, %v2685
    %v2693 = vmul.f32 %v2429, %v2685
    %2702 = vrot.lane.b32.xlu0 %v2686, 126
    %v2703 = vpop.permute.xlu0 %2702
    %2704 = vrot.lane.b32.xlu0 %v2687, 126
    %v2705 = vpop.permute.xlu0 %2704
    %2706 = vrot.lane.b32.xlu0 %v2688, 126
    %v2707 = vpop.permute.xlu0 %2706
    %2708 = vrot.lane.b32.xlu0 %v2689, 126
    %v2709 = vpop.permute.xlu0 %2708
    %2710 = vrot.lane.b32.xlu0 %v2690, 126
    %v2711 = vpop.permute.xlu0 %2710
    %2712 = vrot.lane.b32.xlu0 %v2691, 126
    %v2713 = vpop.permute.xlu0 %2712
    %2714 = vrot.lane.b32.xlu0 %v2692, 126
    %v2715 = vpop.permute.xlu0 %2714
    %2716 = vrot.lane.b32.xlu0 %v2693, 126
    %v2717 = vpop.permute.xlu0 %2716
    %v2726 = vadd.f32 %v2576, %v2703
    %v2727 = vadd.f32 %v2577, %v2705
    %v2728 = vadd.f32 %v2578, %v2707
    %v2729 = vadd.f32 %v2579, %v2709
    %v2730 = vadd.f32 %v2580, %v2711
    %v2731 = vadd.f32 %v2581, %v2713
    %v2732 = vadd.f32 %v2582, %v2715
    %v2733 = vadd.f32 %v2583, %v2717
    %s2734 = sld [smem:[#allocation7 + $0x4a]]
    %v2735 = vstv %s2734
    %v2736 = vmul.f32 %v2422, %v2735
    %v2737 = vmul.f32 %v2423, %v2735
    %v2738 = vmul.f32 %v2424, %v2735
    %v2739 = vmul.f32 %v2425, %v2735
    %v2740 = vmul.f32 %v2426, %v2735
    %v2741 = vmul.f32 %v2427, %v2735
    %v2742 = vmul.f32 %v2428, %v2735
    %v2743 = vmul.f32 %v2429, %v2735
    %2752 = vrot.lane.b32.xlu0 %v2736, 126
    %v2753 = vpop.permute.xlu0 %2752
    %2754 = vrot.lane.b32.xlu0 %v2737, 126
    %v2755 = vpop.permute.xlu0 %2754
    %2756 = vrot.lane.b32.xlu0 %v2738, 126
    %v2757 = vpop.permute.xlu0 %2756
    %2758 = vrot.lane.b32.xlu0 %v2739, 126
    %v2759 = vpop.permute.xlu0 %2758
    %2760 = vrot.lane.b32.xlu0 %v2740, 126
    %v2761 = vpop.permute.xlu0 %2760
    %2762 = vrot.lane.b32.xlu0 %v2741, 126
    %v2763 = vpop.permute.xlu0 %2762
    %2764 = vrot.lane.b32.xlu0 %v2742, 126
    %v2765 = vpop.permute.xlu0 %2764
    %2766 = vrot.lane.b32.xlu0 %v2743, 126
    %v2767 = vpop.permute.xlu0 %2766
    %v2776 = vadd.f32 %v2626, %v2753
    %v2777 = vadd.f32 %v2627, %v2755
    %v2778 = vadd.f32 %v2628, %v2757
    %v2779 = vadd.f32 %v2629, %v2759
    %v2780 = vadd.f32 %v2630, %v2761
    %v2781 = vadd.f32 %v2631, %v2763
    %v2782 = vadd.f32 %v2632, %v2765
    %v2783 = vadd.f32 %v2633, %v2767
    %s2784 = sadd.s32 %s600, 144
    %s2785 = scalar_lea.vmem [#allocation2], %s2784
    %v2786 = vld [vmem:[%s2785] sm:$0xff]
    %v2787 = vld [vmem:[%s2785 + $0x8] sm:$0xff]
    %v2788 = vld [vmem:[%s2785 + $0x10] sm:$0xff]
    %v2789 = vld [vmem:[%s2785 + $0x18] sm:$0xff]
    %v2790 = vld [vmem:[%s2785 + $0x20] sm:$0xff]
    %v2791 = vld [vmem:[%s2785 + $0x28] sm:$0xff]
    %v2792 = vld [vmem:[%s2785 + $0x30] sm:$0xff]
    %v2793 = vld [vmem:[%s2785 + $0x38] sm:$0xff]
    %s2794 = sld [smem:[#allocation7 + $0x15]]
    %v2795 = vstv %s2794
    %v2796 = vmul.f32 %v2786, %v2795
    %v2797 = vmul.f32 %v2787, %v2795
    %v2798 = vmul.f32 %v2788, %v2795
    %v2799 = vmul.f32 %v2789, %v2795
    %v2800 = vmul.f32 %v2790, %v2795
    %v2801 = vmul.f32 %v2791, %v2795
    %v2802 = vmul.f32 %v2792, %v2795
    %v2803 = vmul.f32 %v2793, %v2795
    %v2804 = vadd.f32 %v2676, %v2796
    %v2805 = vadd.f32 %v2677, %v2797
    %v2806 = vadd.f32 %v2678, %v2798
    %v2807 = vadd.f32 %v2679, %v2799
    %v2808 = vadd.f32 %v2680, %v2800
    %v2809 = vadd.f32 %v2681, %v2801
    %v2810 = vadd.f32 %v2682, %v2802
    %v2811 = vadd.f32 %v2683, %v2803
    %s2812 = sld [smem:[#allocation7 + $0x30]]
    %v2813 = vstv %s2812
    %v2814 = vmul.f32 %v2786, %v2813
    %v2815 = vmul.f32 %v2787, %v2813
    %v2816 = vmul.f32 %v2788, %v2813
    %v2817 = vmul.f32 %v2789, %v2813
    %v2818 = vmul.f32 %v2790, %v2813
    %v2819 = vmul.f32 %v2791, %v2813
    %v2820 = vmul.f32 %v2792, %v2813
    %v2821 = vmul.f32 %v2793, %v2813
    %v2822 = vadd.f32 %v2726, %v2814
    %v2823 = vadd.f32 %v2727, %v2815
    %v2824 = vadd.f32 %v2728, %v2816
    %v2825 = vadd.f32 %v2729, %v2817
    %v2826 = vadd.f32 %v2730, %v2818
    %v2827 = vadd.f32 %v2731, %v2819
    %v2828 = vadd.f32 %v2732, %v2820
    %v2829 = vadd.f32 %v2733, %v2821
    %s2830 = sld [smem:[#allocation7 + $0x4b]]
    %v2831 = vstv %s2830
    %v2832 = vmul.f32 %v2786, %v2831
    %v2833 = vmul.f32 %v2787, %v2831
    %v2834 = vmul.f32 %v2788, %v2831
    %v2835 = vmul.f32 %v2789, %v2831
    %v2836 = vmul.f32 %v2790, %v2831
    %v2837 = vmul.f32 %v2791, %v2831
    %v2838 = vmul.f32 %v2792, %v2831
    %v2839 = vmul.f32 %v2793, %v2831
    %v2840 = vadd.f32 %v2776, %v2832
    %v2841 = vadd.f32 %v2777, %v2833
    %v2842 = vadd.f32 %v2778, %v2834
    %v2843 = vadd.f32 %v2779, %v2835
    %v2844 = vadd.f32 %v2780, %v2836
    %v2845 = vadd.f32 %v2781, %v2837
    %v2846 = vadd.f32 %v2782, %v2838
    %v2847 = vadd.f32 %v2783, %v2839
    %s2848 = sld [smem:[#allocation7 + $0x16]]
    %v2849 = vstv %s2848
    %v2850 = vmul.f32 %v2786, %v2849
    %v2851 = vmul.f32 %v2787, %v2849
    %v2852 = vmul.f32 %v2788, %v2849
    %v2853 = vmul.f32 %v2789, %v2849
    %v2854 = vmul.f32 %v2790, %v2849
    %v2855 = vmul.f32 %v2791, %v2849
    %v2856 = vmul.f32 %v2792, %v2849
    %v2857 = vmul.f32 %v2793, %v2849
    %2866 = vrot.lane.b32.xlu0 %v2850, 127
    %v2867 = vpop.permute.xlu0 %2866
    %2868 = vrot.lane.b32.xlu0 %v2851, 127
    %v2869 = vpop.permute.xlu0 %2868
    %2870 = vrot.lane.b32.xlu0 %v2852, 127
    %v2871 = vpop.permute.xlu0 %2870
    %2872 = vrot.lane.b32.xlu0 %v2853, 127
    %v2873 = vpop.permute.xlu0 %2872
    %2874 = vrot.lane.b32.xlu0 %v2854, 127
    %v2875 = vpop.permute.xlu0 %2874
    %2876 = vrot.lane.b32.xlu0 %v2855, 127
    %v2877 = vpop.permute.xlu0 %2876
    %2878 = vrot.lane.b32.xlu0 %v2856, 127
    %v2879 = vpop.permute.xlu0 %2878
    %2880 = vrot.lane.b32.xlu0 %v2857, 127
    %v2881 = vpop.permute.xlu0 %2880
    %v2890 = vadd.f32 %v2804, %v2867
    %v2891 = vadd.f32 %v2805, %v2869
    %v2892 = vadd.f32 %v2806, %v2871
    %v2893 = vadd.f32 %v2807, %v2873
    %v2894 = vadd.f32 %v2808, %v2875
    %v2895 = vadd.f32 %v2809, %v2877
    %v2896 = vadd.f32 %v2810, %v2879
    %v2897 = vadd.f32 %v2811, %v2881
    %s2898 = sld [smem:[#allocation7 + $0x31]]
    %v2899 = vstv %s2898
    %v2900 = vmul.f32 %v2786, %v2899
    %v2901 = vmul.f32 %v2787, %v2899
    %v2902 = vmul.f32 %v2788, %v2899
    %v2903 = vmul.f32 %v2789, %v2899
    %v2904 = vmul.f32 %v2790, %v2899
    %v2905 = vmul.f32 %v2791, %v2899
    %v2906 = vmul.f32 %v2792, %v2899
    %v2907 = vmul.f32 %v2793, %v2899
    %2916 = vrot.lane.b32.xlu0 %v2900, 127
    %v2917 = vpop.permute.xlu0 %2916
    %2918 = vrot.lane.b32.xlu0 %v2901, 127
    %v2919 = vpop.permute.xlu0 %2918
    %2920 = vrot.lane.b32.xlu0 %v2902, 127
    %v2921 = vpop.permute.xlu0 %2920
    %2922 = vrot.lane.b32.xlu0 %v2903, 127
    %v2923 = vpop.permute.xlu0 %2922
    %2924 = vrot.lane.b32.xlu0 %v2904, 127
    %v2925 = vpop.permute.xlu0 %2924
    %2926 = vrot.lane.b32.xlu0 %v2905, 127
    %v2927 = vpop.permute.xlu0 %2926
    %2928 = vrot.lane.b32.xlu0 %v2906, 127
    %v2929 = vpop.permute.xlu0 %2928
    %2930 = vrot.lane.b32.xlu0 %v2907, 127
    %v2931 = vpop.permute.xlu0 %2930
    %v2940 = vadd.f32 %v2822, %v2917
    %v2941 = vadd.f32 %v2823, %v2919
    %v2942 = vadd.f32 %v2824, %v2921
    %v2943 = vadd.f32 %v2825, %v2923
    %v2944 = vadd.f32 %v2826, %v2925
    %v2945 = vadd.f32 %v2827, %v2927
    %v2946 = vadd.f32 %v2828, %v2929
    %v2947 = vadd.f32 %v2829, %v2931
    %s2948 = sld [smem:[#allocation7 + $0x4c]]
    %v2949 = vstv %s2948
    %v2950 = vmul.f32 %v2786, %v2949
    %v2951 = vmul.f32 %v2787, %v2949
    %v2952 = vmul.f32 %v2788, %v2949
    %v2953 = vmul.f32 %v2789, %v2949
    %v2954 = vmul.f32 %v2790, %v2949
    %v2955 = vmul.f32 %v2791, %v2949
    %v2956 = vmul.f32 %v2792, %v2949
    %v2957 = vmul.f32 %v2793, %v2949
    %2966 = vrot.lane.b32.xlu0 %v2950, 127
    %v2967 = vpop.permute.xlu0 %2966
    %2968 = vrot.lane.b32.xlu0 %v2951, 127
    %v2969 = vpop.permute.xlu0 %2968
    %2970 = vrot.lane.b32.xlu0 %v2952, 127
    %v2971 = vpop.permute.xlu0 %2970
    %2972 = vrot.lane.b32.xlu0 %v2953, 127
    %v2973 = vpop.permute.xlu0 %2972
    %2974 = vrot.lane.b32.xlu0 %v2954, 127
    %v2975 = vpop.permute.xlu0 %2974
    %2976 = vrot.lane.b32.xlu0 %v2955, 127
    %v2977 = vpop.permute.xlu0 %2976
    %2978 = vrot.lane.b32.xlu0 %v2956, 127
    %v2979 = vpop.permute.xlu0 %2978
    %2980 = vrot.lane.b32.xlu0 %v2957, 127
    %v2981 = vpop.permute.xlu0 %2980
    %v2990 = vadd.f32 %v2840, %v2967
    %v2991 = vadd.f32 %v2841, %v2969
    %v2992 = vadd.f32 %v2842, %v2971
    %v2993 = vadd.f32 %v2843, %v2973
    %v2994 = vadd.f32 %v2844, %v2975
    %v2995 = vadd.f32 %v2845, %v2977
    %v2996 = vadd.f32 %v2846, %v2979
    %v2997 = vadd.f32 %v2847, %v2981
    %s2998 = sld [smem:[#allocation7 + $0x17]]
    %v2999 = vstv %s2998
    %v3000 = vmul.f32 %v2786, %v2999
    %v3001 = vmul.f32 %v2787, %v2999
    %v3002 = vmul.f32 %v2788, %v2999
    %v3003 = vmul.f32 %v2789, %v2999
    %v3004 = vmul.f32 %v2790, %v2999
    %v3005 = vmul.f32 %v2791, %v2999
    %v3006 = vmul.f32 %v2792, %v2999
    %v3007 = vmul.f32 %v2793, %v2999
    %3016 = vrot.lane.b32.xlu0 %v3000, 126
    %v3017 = vpop.permute.xlu0 %3016
    %3018 = vrot.lane.b32.xlu0 %v3001, 126
    %v3019 = vpop.permute.xlu0 %3018
    %3020 = vrot.lane.b32.xlu0 %v3002, 126
    %v3021 = vpop.permute.xlu0 %3020
    %3022 = vrot.lane.b32.xlu0 %v3003, 126
    %v3023 = vpop.permute.xlu0 %3022
    %3024 = vrot.lane.b32.xlu0 %v3004, 126
    %v3025 = vpop.permute.xlu0 %3024
    %3026 = vrot.lane.b32.xlu0 %v3005, 126
    %v3027 = vpop.permute.xlu0 %3026
    %3028 = vrot.lane.b32.xlu0 %v3006, 126
    %v3029 = vpop.permute.xlu0 %3028
    %3030 = vrot.lane.b32.xlu0 %v3007, 126
    %v3031 = vpop.permute.xlu0 %3030
    %v3040 = vadd.f32 %v2890, %v3017
    %v3041 = vadd.f32 %v2891, %v3019
    %v3042 = vadd.f32 %v2892, %v3021
    %v3043 = vadd.f32 %v2893, %v3023
    %v3044 = vadd.f32 %v2894, %v3025
    %v3045 = vadd.f32 %v2895, %v3027
    %v3046 = vadd.f32 %v2896, %v3029
    %v3047 = vadd.f32 %v2897, %v3031
    %s3048 = sld [smem:[#allocation7 + $0x32]]
    %v3049 = vstv %s3048
    %v3050 = vmul.f32 %v2786, %v3049
    %v3051 = vmul.f32 %v2787, %v3049
    %v3052 = vmul.f32 %v2788, %v3049
    %v3053 = vmul.f32 %v2789, %v3049
    %v3054 = vmul.f32 %v2790, %v3049
    %v3055 = vmul.f32 %v2791, %v3049
    %v3056 = vmul.f32 %v2792, %v3049
    %v3057 = vmul.f32 %v2793, %v3049
    %3066 = vrot.lane.b32.xlu0 %v3050, 126
    %v3067 = vpop.permute.xlu0 %3066
    %3068 = vrot.lane.b32.xlu0 %v3051, 126
    %v3069 = vpop.permute.xlu0 %3068
    %3070 = vrot.lane.b32.xlu0 %v3052, 126
    %v3071 = vpop.permute.xlu0 %3070
    %3072 = vrot.lane.b32.xlu0 %v3053, 126
    %v3073 = vpop.permute.xlu0 %3072
    %3074 = vrot.lane.b32.xlu0 %v3054, 126
    %v3075 = vpop.permute.xlu0 %3074
    %3076 = vrot.lane.b32.xlu0 %v3055, 126
    %v3077 = vpop.permute.xlu0 %3076
    %3078 = vrot.lane.b32.xlu0 %v3056, 126
    %v3079 = vpop.permute.xlu0 %3078
    %3080 = vrot.lane.b32.xlu0 %v3057, 126
    %v3081 = vpop.permute.xlu0 %3080
    %v3090 = vadd.f32 %v2940, %v3067
    %v3091 = vadd.f32 %v2941, %v3069
    %v3092 = vadd.f32 %v2942, %v3071
    %v3093 = vadd.f32 %v2943, %v3073
    %v3094 = vadd.f32 %v2944, %v3075
    %v3095 = vadd.f32 %v2945, %v3077
    %v3096 = vadd.f32 %v2946, %v3079
    %v3097 = vadd.f32 %v2947, %v3081
    %s3098 = sld [smem:[#allocation7 + $0x4d]]
    %v3099 = vstv %s3098
    %v3100 = vmul.f32 %v2786, %v3099
    %v3101 = vmul.f32 %v2787, %v3099
    %v3102 = vmul.f32 %v2788, %v3099
    %v3103 = vmul.f32 %v2789, %v3099
    %v3104 = vmul.f32 %v2790, %v3099
    %v3105 = vmul.f32 %v2791, %v3099
    %v3106 = vmul.f32 %v2792, %v3099
    %v3107 = vmul.f32 %v2793, %v3099
    %3116 = vrot.lane.b32.xlu0 %v3100, 126
    %v3117 = vpop.permute.xlu0 %3116
    %3118 = vrot.lane.b32.xlu0 %v3101, 126
    %v3119 = vpop.permute.xlu0 %3118
    %3120 = vrot.lane.b32.xlu0 %v3102, 126
    %v3121 = vpop.permute.xlu0 %3120
    %3122 = vrot.lane.b32.xlu0 %v3103, 126
    %v3123 = vpop.permute.xlu0 %3122
    %3124 = vrot.lane.b32.xlu0 %v3104, 126
    %v3125 = vpop.permute.xlu0 %3124
    %3126 = vrot.lane.b32.xlu0 %v3105, 126
    %v3127 = vpop.permute.xlu0 %3126
    %3128 = vrot.lane.b32.xlu0 %v3106, 126
    %v3129 = vpop.permute.xlu0 %3128
    %3130 = vrot.lane.b32.xlu0 %v3107, 126
    %v3131 = vpop.permute.xlu0 %3130
    %v3140 = vadd.f32 %v2990, %v3117
    %v3141 = vadd.f32 %v2991, %v3119
    %v3142 = vadd.f32 %v2992, %v3121
    %v3143 = vadd.f32 %v2993, %v3123
    %v3144 = vadd.f32 %v2994, %v3125
    %v3145 = vadd.f32 %v2995, %v3127
    %v3146 = vadd.f32 %v2996, %v3129
    %v3147 = vadd.f32 %v2997, %v3131
    %s3148 = sadd.s32 %s964, 144
    %s3149 = scalar_lea.vmem [#allocation2], %s3148
    %v3150 = vld [vmem:[%s3149] sm:$0xff]
    %v3151 = vld [vmem:[%s3149 + $0x8] sm:$0xff]
    %v3152 = vld [vmem:[%s3149 + $0x10] sm:$0xff]
    %v3153 = vld [vmem:[%s3149 + $0x18] sm:$0xff]
    %v3154 = vld [vmem:[%s3149 + $0x20] sm:$0xff]
    %v3155 = vld [vmem:[%s3149 + $0x28] sm:$0xff]
    %v3156 = vld [vmem:[%s3149 + $0x30] sm:$0xff]
    %v3157 = vld [vmem:[%s3149 + $0x38] sm:$0xff]
    %s3158 = sld [smem:[#allocation7 + $0x18]]
    %v3159 = vstv %s3158
    %v3160 = vmul.f32 %v3150, %v3159
    %v3161 = vmul.f32 %v3151, %v3159
    %v3162 = vmul.f32 %v3152, %v3159
    %v3163 = vmul.f32 %v3153, %v3159
    %v3164 = vmul.f32 %v3154, %v3159
    %v3165 = vmul.f32 %v3155, %v3159
    %v3166 = vmul.f32 %v3156, %v3159
    %v3167 = vmul.f32 %v3157, %v3159
    %v3168 = vadd.f32 %v3040, %v3160
    %v3169 = vadd.f32 %v3041, %v3161
    %v3170 = vadd.f32 %v3042, %v3162
    %v3171 = vadd.f32 %v3043, %v3163
    %v3172 = vadd.f32 %v3044, %v3164
    %v3173 = vadd.f32 %v3045, %v3165
    %v3174 = vadd.f32 %v3046, %v3166
    %v3175 = vadd.f32 %v3047, %v3167
    %s3176 = sld [smem:[#allocation7 + $0x33]]
    %v3177 = vstv %s3176
    %v3178 = vmul.f32 %v3150, %v3177
    %v3179 = vmul.f32 %v3151, %v3177
    %v3180 = vmul.f32 %v3152, %v3177
    %v3181 = vmul.f32 %v3153, %v3177
    %v3182 = vmul.f32 %v3154, %v3177
    %v3183 = vmul.f32 %v3155, %v3177
    %v3184 = vmul.f32 %v3156, %v3177
    %v3185 = vmul.f32 %v3157, %v3177
    %v3186 = vadd.f32 %v3090, %v3178
    %v3187 = vadd.f32 %v3091, %v3179
    %v3188 = vadd.f32 %v3092, %v3180
    %v3189 = vadd.f32 %v3093, %v3181
    %v3190 = vadd.f32 %v3094, %v3182
    %v3191 = vadd.f32 %v3095, %v3183
    %v3192 = vadd.f32 %v3096, %v3184
    %v3193 = vadd.f32 %v3097, %v3185
    %s3194 = sld [smem:[#allocation7 + $0x4e]]
    %v3195 = vstv %s3194
    %v3196 = vmul.f32 %v3150, %v3195
    %v3197 = vmul.f32 %v3151, %v3195
    %v3198 = vmul.f32 %v3152, %v3195
    %v3199 = vmul.f32 %v3153, %v3195
    %v3200 = vmul.f32 %v3154, %v3195
    %v3201 = vmul.f32 %v3155, %v3195
    %v3202 = vmul.f32 %v3156, %v3195
    %v3203 = vmul.f32 %v3157, %v3195
    %v3204 = vadd.f32 %v3140, %v3196
    %v3205 = vadd.f32 %v3141, %v3197
    %v3206 = vadd.f32 %v3142, %v3198
    %v3207 = vadd.f32 %v3143, %v3199
    %v3208 = vadd.f32 %v3144, %v3200
    %v3209 = vadd.f32 %v3145, %v3201
    %v3210 = vadd.f32 %v3146, %v3202
    %v3211 = vadd.f32 %v3147, %v3203
    %s3212 = sld [smem:[#allocation7 + $0x19]]
    %v3213 = vstv %s3212
    %v3214 = vmul.f32 %v3150, %v3213
    %v3215 = vmul.f32 %v3151, %v3213
    %v3216 = vmul.f32 %v3152, %v3213
    %v3217 = vmul.f32 %v3153, %v3213
    %v3218 = vmul.f32 %v3154, %v3213
    %v3219 = vmul.f32 %v3155, %v3213
    %v3220 = vmul.f32 %v3156, %v3213
    %v3221 = vmul.f32 %v3157, %v3213
    %3230 = vrot.lane.b32.xlu0 %v3214, 127
    %v3231 = vpop.permute.xlu0 %3230
    %3232 = vrot.lane.b32.xlu0 %v3215, 127
    %v3233 = vpop.permute.xlu0 %3232
    %3234 = vrot.lane.b32.xlu0 %v3216, 127
    %v3235 = vpop.permute.xlu0 %3234
    %3236 = vrot.lane.b32.xlu0 %v3217, 127
    %v3237 = vpop.permute.xlu0 %3236
    %3238 = vrot.lane.b32.xlu0 %v3218, 127
    %v3239 = vpop.permute.xlu0 %3238
    %3240 = vrot.lane.b32.xlu0 %v3219, 127
    %v3241 = vpop.permute.xlu0 %3240
    %3242 = vrot.lane.b32.xlu0 %v3220, 127
    %v3243 = vpop.permute.xlu0 %3242
    %3244 = vrot.lane.b32.xlu0 %v3221, 127
    %v3245 = vpop.permute.xlu0 %3244
    %v3254 = vadd.f32 %v3168, %v3231
    %v3255 = vadd.f32 %v3169, %v3233
    %v3256 = vadd.f32 %v3170, %v3235
    %v3257 = vadd.f32 %v3171, %v3237
    %v3258 = vadd.f32 %v3172, %v3239
    %v3259 = vadd.f32 %v3173, %v3241
    %v3260 = vadd.f32 %v3174, %v3243
    %v3261 = vadd.f32 %v3175, %v3245
    %s3262 = sld [smem:[#allocation7 + $0x34]]
    %v3263 = vstv %s3262
    %v3264 = vmul.f32 %v3150, %v3263
    %v3265 = vmul.f32 %v3151, %v3263
    %v3266 = vmul.f32 %v3152, %v3263
    %v3267 = vmul.f32 %v3153, %v3263
    %v3268 = vmul.f32 %v3154, %v3263
    %v3269 = vmul.f32 %v3155, %v3263
    %v3270 = vmul.f32 %v3156, %v3263
    %v3271 = vmul.f32 %v3157, %v3263
    %3280 = vrot.lane.b32.xlu0 %v3264, 127
    %v3281 = vpop.permute.xlu0 %3280
    %3282 = vrot.lane.b32.xlu0 %v3265, 127
    %v3283 = vpop.permute.xlu0 %3282
    %3284 = vrot.lane.b32.xlu0 %v3266, 127
    %v3285 = vpop.permute.xlu0 %3284
    %3286 = vrot.lane.b32.xlu0 %v3267, 127
    %v3287 = vpop.permute.xlu0 %3286
    %3288 = vrot.lane.b32.xlu0 %v3268, 127
    %v3289 = vpop.permute.xlu0 %3288
    %3290 = vrot.lane.b32.xlu0 %v3269, 127
    %v3291 = vpop.permute.xlu0 %3290
    %3292 = vrot.lane.b32.xlu0 %v3270, 127
    %v3293 = vpop.permute.xlu0 %3292
    %3294 = vrot.lane.b32.xlu0 %v3271, 127
    %v3295 = vpop.permute.xlu0 %3294
    %v3304 = vadd.f32 %v3186, %v3281
    %v3305 = vadd.f32 %v3187, %v3283
    %v3306 = vadd.f32 %v3188, %v3285
    %v3307 = vadd.f32 %v3189, %v3287
    %v3308 = vadd.f32 %v3190, %v3289
    %v3309 = vadd.f32 %v3191, %v3291
    %v3310 = vadd.f32 %v3192, %v3293
    %v3311 = vadd.f32 %v3193, %v3295
    %s3312 = sld [smem:[#allocation7 + $0x4f]]
    %v3313 = vstv %s3312
    %v3314 = vmul.f32 %v3150, %v3313
    %v3315 = vmul.f32 %v3151, %v3313
    %v3316 = vmul.f32 %v3152, %v3313
    %v3317 = vmul.f32 %v3153, %v3313
    %v3318 = vmul.f32 %v3154, %v3313
    %v3319 = vmul.f32 %v3155, %v3313
    %v3320 = vmul.f32 %v3156, %v3313
    %v3321 = vmul.f32 %v3157, %v3313
    %3330 = vrot.lane.b32.xlu0 %v3314, 127
    %v3331 = vpop.permute.xlu0 %3330
    %3332 = vrot.lane.b32.xlu0 %v3315, 127
    %v3333 = vpop.permute.xlu0 %3332
    %3334 = vrot.lane.b32.xlu0 %v3316, 127
    %v3335 = vpop.permute.xlu0 %3334
    %3336 = vrot.lane.b32.xlu0 %v3317, 127
    %v3337 = vpop.permute.xlu0 %3336
    %3338 = vrot.lane.b32.xlu0 %v3318, 127
    %v3339 = vpop.permute.xlu0 %3338
    %3340 = vrot.lane.b32.xlu0 %v3319, 127
    %v3341 = vpop.permute.xlu0 %3340
    %3342 = vrot.lane.b32.xlu0 %v3320, 127
    %v3343 = vpop.permute.xlu0 %3342
    %3344 = vrot.lane.b32.xlu0 %v3321, 127
    %v3345 = vpop.permute.xlu0 %3344
    %v3354 = vadd.f32 %v3204, %v3331
    %v3355 = vadd.f32 %v3205, %v3333
    %v3356 = vadd.f32 %v3206, %v3335
    %v3357 = vadd.f32 %v3207, %v3337
    %v3358 = vadd.f32 %v3208, %v3339
    %v3359 = vadd.f32 %v3209, %v3341
    %v3360 = vadd.f32 %v3210, %v3343
    %v3361 = vadd.f32 %v3211, %v3345
    %s3362 = sld [smem:[#allocation7 + $0x1a]]
    %v3363 = vstv %s3362
    %v3364 = vmul.f32 %v3150, %v3363
    %v3365 = vmul.f32 %v3151, %v3363
    %v3366 = vmul.f32 %v3152, %v3363
    %v3367 = vmul.f32 %v3153, %v3363
    %v3368 = vmul.f32 %v3154, %v3363
    %v3369 = vmul.f32 %v3155, %v3363
    %v3370 = vmul.f32 %v3156, %v3363
    %v3371 = vmul.f32 %v3157, %v3363
    %3380 = vrot.lane.b32.xlu0 %v3364, 126
    %v3381 = vpop.permute.xlu0 %3380
    %3382 = vrot.lane.b32.xlu0 %v3365, 126
    %v3383 = vpop.permute.xlu0 %3382
    %3384 = vrot.lane.b32.xlu0 %v3366, 126
    %v3385 = vpop.permute.xlu0 %3384
    %3386 = vrot.lane.b32.xlu0 %v3367, 126
    %v3387 = vpop.permute.xlu0 %3386
    %3388 = vrot.lane.b32.xlu0 %v3368, 126
    %v3389 = vpop.permute.xlu0 %3388
    %3390 = vrot.lane.b32.xlu0 %v3369, 126
    %v3391 = vpop.permute.xlu0 %3390
    %3392 = vrot.lane.b32.xlu0 %v3370, 126
    %v3393 = vpop.permute.xlu0 %3392
    %3394 = vrot.lane.b32.xlu0 %v3371, 126
    %v3395 = vpop.permute.xlu0 %3394
    %v3404 = vadd.f32 %v3254, %v3381
    %v3405 = vadd.f32 %v3255, %v3383
    %v3406 = vadd.f32 %v3256, %v3385
    %v3407 = vadd.f32 %v3257, %v3387
    %v3408 = vadd.f32 %v3258, %v3389
    %v3409 = vadd.f32 %v3259, %v3391
    %v3410 = vadd.f32 %v3260, %v3393
    %v3411 = vadd.f32 %v3261, %v3395
    %s3412 = sld [smem:[#allocation7 + $0x35]]
    %v3413 = vstv %s3412
    %v3414 = vmul.f32 %v3150, %v3413
    %v3415 = vmul.f32 %v3151, %v3413
    %v3416 = vmul.f32 %v3152, %v3413
    %v3417 = vmul.f32 %v3153, %v3413
    %v3418 = vmul.f32 %v3154, %v3413
    %v3419 = vmul.f32 %v3155, %v3413
    %v3420 = vmul.f32 %v3156, %v3413
    %v3421 = vmul.f32 %v3157, %v3413
    %3430 = vrot.lane.b32.xlu0 %v3414, 126
    %v3431 = vpop.permute.xlu0 %3430
    %3432 = vrot.lane.b32.xlu0 %v3415, 126
    %v3433 = vpop.permute.xlu0 %3432
    %3434 = vrot.lane.b32.xlu0 %v3416, 126
    %v3435 = vpop.permute.xlu0 %3434
    %3436 = vrot.lane.b32.xlu0 %v3417, 126
    %v3437 = vpop.permute.xlu0 %3436
    %3438 = vrot.lane.b32.xlu0 %v3418, 126
    %v3439 = vpop.permute.xlu0 %3438
    %3440 = vrot.lane.b32.xlu0 %v3419, 126
    %v3441 = vpop.permute.xlu0 %3440
    %3442 = vrot.lane.b32.xlu0 %v3420, 126
    %v3443 = vpop.permute.xlu0 %3442
    %3444 = vrot.lane.b32.xlu0 %v3421, 126
    %v3445 = vpop.permute.xlu0 %3444
    %v3454 = vadd.f32 %v3304, %v3431
    %v3455 = vadd.f32 %v3305, %v3433
    %v3456 = vadd.f32 %v3306, %v3435
    %v3457 = vadd.f32 %v3307, %v3437
    %v3458 = vadd.f32 %v3308, %v3439
    %v3459 = vadd.f32 %v3309, %v3441
    %v3460 = vadd.f32 %v3310, %v3443
    %v3461 = vadd.f32 %v3311, %v3445
    %s3462 = sld [smem:[#allocation7 + $0x50]]
    %v3463 = vstv %s3462
    %v3464 = vmul.f32 %v3150, %v3463
    %v3465 = vmul.f32 %v3151, %v3463
    %v3466 = vmul.f32 %v3152, %v3463
    %v3467 = vmul.f32 %v3153, %v3463
    %v3468 = vmul.f32 %v3154, %v3463
    %v3469 = vmul.f32 %v3155, %v3463
    %v3470 = vmul.f32 %v3156, %v3463
    %v3471 = vmul.f32 %v3157, %v3463
    %3480 = vrot.lane.b32.xlu0 %v3464, 126
    %v3481 = vpop.permute.xlu0 %3480
    %3482 = vrot.lane.b32.xlu0 %v3465, 126
    %v3483 = vpop.permute.xlu0 %3482
    %3484 = vrot.lane.b32.xlu0 %v3466, 126
    %v3485 = vpop.permute.xlu0 %3484
    %3486 = vrot.lane.b32.xlu0 %v3467, 126
    %v3487 = vpop.permute.xlu0 %3486
    %3488 = vrot.lane.b32.xlu0 %v3468, 126
    %v3489 = vpop.permute.xlu0 %3488
    %3490 = vrot.lane.b32.xlu0 %v3469, 126
    %v3491 = vpop.permute.xlu0 %3490
    %3492 = vrot.lane.b32.xlu0 %v3470, 126
    %v3493 = vpop.permute.xlu0 %3492
    %3494 = vrot.lane.b32.xlu0 %v3471, 126
    %v3495 = vpop.permute.xlu0 %3494
    %v3504 = vadd.f32 %v3354, %v3481
    %v3505 = vadd.f32 %v3355, %v3483
    %v3506 = vadd.f32 %v3356, %v3485
    %v3507 = vadd.f32 %v3357, %v3487
    %v3508 = vadd.f32 %v3358, %v3489
    %v3509 = vadd.f32 %v3359, %v3491
    %v3510 = vadd.f32 %v3360, %v3493
    %v3511 = vadd.f32 %v3361, %v3495
    %v3512 = vtanh.pop %v3404
    %v3513 = vtanh.pop %v3405
    %v3514 = vtanh.pop %v3406
    %v3515 = vtanh.pop %v3407
    %v3516 = vtanh.pop %v3408
    %v3517 = vtanh.pop %v3409
    %v3518 = vtanh.pop %v3410
    %v3519 = vtanh.pop %v3411
    %vm3520 = vcmask 523264
    %3521 = vst.msk [vmem:[#allocation10] sm:$0xff] %vm3520, %v3512
    %3522 = vst.msk [vmem:[#allocation10 + $0x8] sm:$0xff] %vm3520, %v3513
    %3523 = vst.msk [vmem:[#allocation10 + $0x10] sm:$0xff] %vm3520, %v3514
    %3524 = vst.msk [vmem:[#allocation10 + $0x18] sm:$0xff] %vm3520, %v3515
    %3525 = vst.msk [vmem:[#allocation10 + $0x20] sm:$0xff] %vm3520, %v3516
    %3526 = vst.msk [vmem:[#allocation10 + $0x28] sm:$0xff] %vm3520, %v3517
    %3527 = vst.msk [vmem:[#allocation10 + $0x30] sm:$0xff] %vm3520, %v3518
    %3528 = vst.msk [vmem:[#allocation10 + $0x38] sm:$0xff] %vm3520, %v3519
    %v3529 = vtanh.pop %v3454
    %v3530 = vtanh.pop %v3455
    %v3531 = vtanh.pop %v3456
    %v3532 = vtanh.pop %v3457
    %v3533 = vtanh.pop %v3458
    %v3534 = vtanh.pop %v3459
    %v3535 = vtanh.pop %v3460
    %v3536 = vtanh.pop %v3461
    %s3537 = scalar_lea.vmem [#allocation10], 64
    %3538 = vst.msk [vmem:[%s3537] sm:$0xff] %vm3520, %v3529
    %3539 = vst.msk [vmem:[%s3537 + $0x8] sm:$0xff] %vm3520, %v3530
    %3540 = vst.msk [vmem:[%s3537 + $0x10] sm:$0xff] %vm3520, %v3531
    %3541 = vst.msk [vmem:[%s3537 + $0x18] sm:$0xff] %vm3520, %v3532
    %3542 = vst.msk [vmem:[%s3537 + $0x20] sm:$0xff] %vm3520, %v3533
    %3543 = vst.msk [vmem:[%s3537 + $0x28] sm:$0xff] %vm3520, %v3534
    %3544 = vst.msk [vmem:[%s3537 + $0x30] sm:$0xff] %vm3520, %v3535
    %3545 = vst.msk [vmem:[%s3537 + $0x38] sm:$0xff] %vm3520, %v3536
    %v3546 = vtanh.pop %v3504
    %v3547 = vtanh.pop %v3505
    %v3548 = vtanh.pop %v3506
    %v3549 = vtanh.pop %v3507
    %v3550 = vtanh.pop %v3508
    %v3551 = vtanh.pop %v3509
    %v3552 = vtanh.pop %v3510
    %v3553 = vtanh.pop %v3511
    %s3554 = scalar_lea.vmem [#allocation10], 128
    %3555 = vst.msk [vmem:[%s3554] sm:$0xff] %vm3520, %v3546
    %3556 = vst.msk [vmem:[%s3554 + $0x8] sm:$0xff] %vm3520, %v3547
    %3557 = vst.msk [vmem:[%s3554 + $0x10] sm:$0xff] %vm3520, %v3548
    %3558 = vst.msk [vmem:[%s3554 + $0x18] sm:$0xff] %vm3520, %v3549
    %3559 = vst.msk [vmem:[%s3554 + $0x20] sm:$0xff] %vm3520, %v3550
    %3560 = vst.msk [vmem:[%s3554 + $0x28] sm:$0xff] %vm3520, %v3551
    %3561 = vst.msk [vmem:[%s3554 + $0x30] sm:$0xff] %vm3520, %v3552
    %3562 = vst.msk [vmem:[%s3554 + $0x38] sm:$0xff] %vm3520, %v3553
    // Predicated region
    $region26: #{tpu_custom_call.1} parent=1 // pred_check
      _
    $region27: #{tpu_custom_call.1} parent=1 // pred_check_branch
      %3564 = sbr.rel (0) target = $region29
    $region28: #{tpu_custom_call.1} parent=1 // pred_region
      %s3566 = ssub.s32 3072, 3072
      %3567 = vsyncadd [#allocation5], %s3566
      %s3568 = sshll.u32 [#allocation10], 4
      %s3569 = int_to_ptr.vmem [resolvable:$true] %s3568
      %3574 = dma.vmem_to_hbm [thread:$0]  %s3569, 3072, %s3, [#allocation5], 128, 128, 8
    $region29: #{tpu_custom_call.1} parent=1 // pred_fallthru
      _
    // Predicated region
    $region30: #{tpu_custom_call.1} parent=1 // pred_check
      _
    $region31: #{tpu_custom_call.1} parent=1 // pred_check_branch
      %3576 = sbr.rel (0) target = $region33
    $region32: #{tpu_custom_call.1} parent=1 // pred_region
      %3577 = dma.done [#allocation5], 3072
    $region33: #{tpu_custom_call.1} parent=1 // pred_fallthru
      _
    %3578 = vsyncpa [#allocation4], 1
    %3579 = vsyncpa [#allocation5], 1
    %3580 = vsyncpa [#allocation6], 1
    %3581 = vsyncpa [#allocation9], 1

</llo_original>
